<compile_context>
chip_gen: v5e
topology: v5e:2x2
jax: 0.10.0
libtpu: 0.0.40
codegen_flags: <defaults>
</compile_context>

<pallas_src>
import functools
import math

import jax
import jax.numpy as jnp
from jax.experimental import pallas as pl
from jax.experimental.pallas import tpu as pltpu

# Make the pure-JAX reference matmuls full f32 so the 1e-4 comparison is
# apples-to-apples with the in-kernel f32 MXU matmuls.
jax.config.update("jax_default_matmul_precision", "highest")

_SQRT_HALF = 0.7071067811865476


def _erf(x):
    # Abramowitz & Stegun 7.1.26 polynomial approximation, |err| <= 1.5e-7
    # (exact-erf GELU semantics of nn.GELU() using only exp/VPU ops).
    p = 0.3275911
    a1, a2, a3, a4, a5 = (0.254829592, -0.284496736, 1.421413741,
                          -1.453152027, 1.061405429)
    sign = jnp.where(x >= 0, 1.0, -1.0)
    z = jnp.abs(x)
    t = 1.0 / (1.0 + p * z)
    poly = ((((a5 * t + a4) * t + a3) * t + a2) * t + a1) * t
    return sign * (1.0 - poly * jnp.exp(-z * z))


def _gelu_exact(x):
    return 0.5 * x * (1.0 + _erf(x * _SQRT_HALF))


def _layer_norm(x, gamma, beta, eps=1e-5):
    mean = jnp.mean(x, axis=-1, keepdims=True)
    c = x - mean
    var = jnp.mean(c * c, axis=-1, keepdims=True)
    return c * jax.lax.rsqrt(var + eps) * gamma + beta


def _cross_attn_block_kernel(xq_ref, xkv_ref, wq_ref, wk_ref, wv_ref, wo_ref,
                             bo_ref, ln1_g_ref, ln1_b_ref, fw1_ref, fb1_ref,
                             fw2_ref, fb2_ref, ln2_g_ref, ln2_b_ref,
                             out_ref, k_scr, v_scr, q_scr, ctx_scr,
                             *, n_heads, scale):
    """One grid step = (one batch element, one query tile)."""
    qt = pl.program_id(1)
    dot_dtype = k_scr.dtype

    # Stage K/V for this batch element once, with single full-D GEMMs.
    @pl.when(qt == 0)
    def _stage_kv():
        xkv = xkv_ref[0].astype(dot_dtype)                            # (Sk, D)
        k_scr[...] = jnp.dot(xkv, wk_ref[...],
                             preferred_element_type=jnp.float32
                             ).astype(dot_dtype)                      # (Sk, D)
        v_scr[...] = jnp.dot(xkv, wv_ref[...],
                             preferred_element_type=jnp.float32
                             ).astype(dot_dtype)

    xq = xq_ref[0]                                                    # (TQ, D) f32
    d_model = xq.shape[-1]
    d_k = d_model // n_heads

    # Single full-D query projection, staged to VMEM (per-head slices are read
    # back so the whole (TQ, D) slab never has to stay live in vregs).
    q_scr[...] = jnp.dot(xq.astype(dot_dtype), wq_ref[...],
                         preferred_element_type=jnp.float32).astype(dot_dtype)

    # Per-head attention; each head's context is written lane-dense at offset
    # h*d_k into the (TQ, D) context slab (no concat, no per-head Wo matmul).
    for h in range(n_heads):
        lo = h * d_k
        hi = lo + d_k
        q_h = q_scr[:, lo:hi]                                         # (TQ, d_k)
        k_h = k_scr[:, lo:hi]                                         # (Sk, d_k)
        v_h = v_scr[:, lo:hi]
        s = jax.lax.dot_general(q_h, k_h, (((1,), (1,)), ((), ())),
                                preferred_element_type=jnp.float32) * scale
        s = jnp.clip(s, -65000.0, 65000.0)
        m = jnp.max(s, axis=-1, keepdims=True)
        e = jnp.exp(s - m)
        inv_l = 1.0 / jnp.sum(e, axis=-1, keepdims=True)              # (TQ, 1)
        attn = (e * inv_l).astype(dot_dtype)
        # TODO(synk): attention dropout (p=0.1) is identity (inference mode).
        ctx_scr[:, lo:hi] = jnp.dot(attn, v_h,
                                    preferred_element_type=jnp.float32
                                    ).astype(dot_dtype)

    # One full-D output projection over the context slab.
    attended = jnp.dot(ctx_scr[...], wo_ref[...],
                       preferred_element_type=jnp.float32) + bo_ref[...]

    # Residual + LayerNorm1.
    x1 = _layer_norm(xq + attended, ln1_g_ref[...], ln1_b_ref[...])

    # FFN: Linear(D -> 4D) -> GELU(exact) -> Linear(4D -> D).  Dropouts = identity.
    hid = jnp.dot(x1.astype(dot_dtype), fw1_ref[...],
                  preferred_element_type=jnp.float32) + fb1_ref[...]
    hid = _gelu_exact(hid)
    ffn = jnp.dot(hid.astype(dot_dtype), fw2_ref[...],
                  preferred_element_type=jnp.float32) + fb2_ref[...]

    # Residual + LayerNorm2.
    out_ref[0] = _layer_norm(x1 + ffn, ln2_g_ref[...],
                             ln2_b_ref[...]).astype(out_ref.dtype)


def _vmem_limit_bytes():
    """Generation-aware scoped-VMEM limit (v7x has 64 MiB; v5e/v6e 128 MiB)."""
    try:
        kind = jax.devices()[0].device_kind.lower()
    except Exception:  # pragma: no cover - defensive
        kind = ""
    if "v7" in kind:
        return 56 * 1024 * 1024
    return 100 * 1024 * 1024


def cross_attention_block(cursor_seq, beatmap_seq, params, *, n_heads,
                          dot_dtype=jnp.float32):
    """cursor_seq, beatmap_seq: (S, B, D) float32 (PyTorch module convention).

    `dot_dtype=jnp.bfloat16` casts all matmul operands (weights, staged K/V/Q,
    attention probs) to bf16 for v6e/v7x MXU peak; the f32 default preserves
    exact parity with the f32 reference at 1e-4.
    """
    # TODO(synk): optional `mask` / `key_padding_mask` paths not implemented
    # (CrossAttention test path calls attention without a mask).
    Sq, B, D = cursor_seq.shape
    Sk, Bk, Dk = beatmap_seq.shape
    assert B == Bk and D == Dk and D % n_heads == 0
    scale = 1.0 / math.sqrt(D // n_heads)

    # Query tiling: bounds live score/softmax state at large S while amortizing
    # per-grid-step overhead; trivial (1 tile) at the toy shape.
    TQ = Sq if Sq <= 256 else 256
    assert Sq % TQ == 0, "Sq must be a multiple of the query tile"
    n_qt = Sq // TQ

    xq = jnp.transpose(cursor_seq, (1, 0, 2))    # (B, Sq, D)
    xkv = jnp.transpose(beatmap_seq, (1, 0, 2))  # (B, Sk, D)

    cast = lambda w: w.astype(dot_dtype)
    wq, wk, wv, wo = cast(params["wq"]), cast(params["wk"]), cast(params["wv"]), cast(params["wo"])
    fw1, fw2 = cast(params["fw1"]), cast(params["fw2"])
    d_ff = fw1.shape[1]

    row = lambda p: p.reshape(1, -1)
    bo, ln1_g, ln1_b = row(params["bo"]), row(params["ln1_g"]), row(params["ln1_b"])
    fb1, fb2 = row(params["fb1"]), row(params["fb2"])
    ln2_g, ln2_b = row(params["ln2_g"]), row(params["ln2_b"])

    def const_spec(shape):  # inputs whose block index never changes
        return pl.BlockSpec(shape, lambda b, qt: (0,) * len(shape))

    kernel = functools.partial(_cross_attn_block_kernel,
                               n_heads=n_heads, scale=scale)

    out_bsd = pl.pallas_call(
        kernel,
        out_shape=jax.ShapeDtypeStruct((B, Sq, D), cursor_seq.dtype),
        grid=(B, n_qt),
        in_specs=[
            pl.BlockSpec((1, TQ, D), lambda b, qt: (b, qt, 0)),   # cursor tile
            pl.BlockSpec((1, Sk, D), lambda b, qt: (b, 0, 0)),    # beatmap (full seq)
            const_spec((D, D)),                                   # wq
            const_spec((D, D)),                                   # wk
            const_spec((D, D)),                                   # wv
            const_spec((D, D)),                                   # wo
            const_spec((1, D)),                                   # bo
            const_spec((1, D)), const_spec((1, D)),               # ln1 gamma/beta
            const_spec((D, d_ff)), const_spec((1, d_ff)),         # ffn w1, b1
            const_spec((d_ff, D)), const_spec((1, D)),            # ffn w2, b2
            const_spec((1, D)), const_spec((1, D)),               # ln2 gamma/beta
        ],
        out_specs=pl.BlockSpec((1, TQ, D), lambda b, qt: (b, qt, 0)),
        scratch_shapes=[
            pltpu.VMEM((Sk, D), dot_dtype),                       # staged K (all heads)
            pltpu.VMEM((Sk, D), dot_dtype),                       # staged V
            pltpu.VMEM((TQ, D), dot_dtype),                       # staged Q slab
            pltpu.VMEM((TQ, D), dot_dtype),                       # context slab
        ],
        compiler_params=pltpu.CompilerParams(
            # batch is megacore-parallel; query-tile axis carries the K/V
            # staging dependency -> "arbitrary" (sequential).
            dimension_semantics=("parallel", "arbitrary"),
            vmem_limit_bytes=_vmem_limit_bytes()),
    )(xq, xkv, wq, wk, wv, wo, bo, ln1_g, ln1_b,
      fw1, fb1, fw2, fb2, ln2_g, ln2_b)

    return jnp.transpose(out_bsd, (1, 0, 2))                       # (S, B, D)


def _reference_forward(cursor_seq, beatmap_seq, params, *, n_heads):
    """Pure-JAX mirror of the PyTorch CrossAttention forward (eval mode)."""
    S, B, D = cursor_seq.shape
    T = beatmap_seq.shape[0]
    d_k = D // n_heads
    scale = 1.0 / math.sqrt(d_k)

    Q = (cursor_seq.reshape(S * B, D) @ params["wq"]).reshape(S, B, n_heads, d_k)
    K = (beatmap_seq.reshape(T * B, D) @ params["wk"]).reshape(T, B, n_heads, d_k)
    V = (beatmap_seq.reshape(T * B, D) @ params["wv"]).reshape(T, B, n_heads, d_k)

    scores = jnp.einsum('sbhd,tbhd->bhst', Q, K) * scale
    scores = jnp.clip(scores, -65000.0, 65000.0)
    attn = jax.nn.softmax(scores, axis=-1)                 # over key positions
    ctx = jnp.einsum('bhst,tbhd->sbhd', attn, V).reshape(S, B, D)
    attended = ctx @ params["wo"] + params["bo"]

    def ln(x, g, b, eps=1e-5):
        m = jnp.mean(x, axis=-1, keepdims=True)
        v = jnp.mean((x - m) ** 2, axis=-1, keepdims=True)
        return (x - m) / jnp.sqrt(v + eps) * g + b

    x1 = ln(cursor_seq + attended, params["ln1_g"], params["ln1_b"])
    h = jax.nn.gelu(x1 @ params["fw1"] + params["fb1"], approximate=False)
    ffn = h @ params["fw2"] + params["fb2"]
    return ln(x1 + ffn, params["ln2_g"], params["ln2_b"])


def _init_params(key, d_model):
    d_ff = 4 * d_model
    ks = jax.random.split(key, 12)
    s = 1.0 / math.sqrt(d_model)
    # Linear weights stored as (in, out) == torch weight transposed.
    return {
        "wq": jax.random.normal(ks[0], (d_model, d_model), jnp.float32) * s,
        "wk": jax.random.normal(ks[1], (d_model, d_model), jnp.float32) * s,
        "wv": jax.random.normal(ks[2], (d_model, d_model), jnp.float32) * s,
        "wo": jax.random.normal(ks[3], (d_model, d_model), jnp.float32) * s,
        "bo": 0.02 * jax.random.normal(ks[4], (d_model,), jnp.float32),
        "ln1_g": 1.0 + 0.1 * jax.random.normal(ks[5], (d_model,), jnp.float32),
        "ln1_b": 0.02 * jax.random.normal(ks[6], (d_model,), jnp.float32),
        "fw1": jax.random.normal(ks[7], (d_model, d_ff), jnp.float32) * s,
        "fb1": 0.02 * jax.random.normal(ks[8], (d_ff,), jnp.float32),
        "fw2": jax.random.normal(ks[9], (d_ff, d_model), jnp.float32)
               * (1.0 / math.sqrt(d_ff)),
        "fb2": 0.02 * jax.random.normal(ks[10], (d_model,), jnp.float32),
        "ln2_g": 1.0 + 0.1 * jax.random.normal(ks[11], (d_model,), jnp.float32),
        "ln2_b": jnp.zeros((d_model,), jnp.float32),
    }


if __name__ == "__main__":
    SEQ, BATCH, D_MODEL, N_HEADS = 8, 2, 32, 4

    key = jax.random.PRNGKey(0)
    k_param, k_cur, k_beat = jax.random.split(key, 3)
    params = _init_params(k_param, D_MODEL)
    cursor = jax.random.normal(k_cur, (SEQ, BATCH, D_MODEL), jnp.float32)
    beatmap = jax.random.normal(k_beat, (SEQ, BATCH, D_MODEL), jnp.float32)

    out = cross_attention_block(cursor, beatmap, params, n_heads=N_HEADS)
    out = jax.block_until_ready(out)

    ref = _reference_forward(cursor, beatmap, params, n_heads=N_HEADS)
    ref = jax.block_until_ready(ref)

    assert out.shape == (SEQ, BATCH, D_MODEL)
    assert jnp.allclose(out, ref, atol=1e-4, rtol=1e-4), "mismatch vs reference"

    print("KERNEL_OK")
</pallas_src>

<mosaic_0001>
module attributes {stable_mosaic.version = 11 : i64} {
  func.func @_cross_attn_block_kernel(%arg0: i32, %arg1: i32, %arg2: memref<1x8x32xf32, #tpu.memory_space<vmem>>, %arg3: memref<1x8x32xf32, #tpu.memory_space<vmem>>, %arg4: memref<32x32xf32, #tpu.memory_space<vmem>>, %arg5: memref<32x32xf32, #tpu.memory_space<vmem>>, %arg6: memref<32x32xf32, #tpu.memory_space<vmem>>, %arg7: memref<32x32xf32, #tpu.memory_space<vmem>>, %arg8: memref<1x32xf32, #tpu.memory_space<vmem>>, %arg9: memref<1x32xf32, #tpu.memory_space<vmem>>, %arg10: memref<1x32xf32, #tpu.memory_space<vmem>>, %arg11: memref<32x128xf32, #tpu.memory_space<vmem>>, %arg12: memref<1x128xf32, #tpu.memory_space<vmem>>, %arg13: memref<128x32xf32, #tpu.memory_space<vmem>>, %arg14: memref<1x32xf32, #tpu.memory_space<vmem>>, %arg15: memref<1x32xf32, #tpu.memory_space<vmem>>, %arg16: memref<1x32xf32, #tpu.memory_space<vmem>>, %arg17: memref<1x8x32xf32, #tpu.memory_space<vmem>>, %arg18: memref<8x32xf32, #tpu.memory_space<vmem>>, %arg19: memref<8x32xf32, #tpu.memory_space<vmem>>, %arg20: memref<8x32xf32, #tpu.memory_space<vmem>>, %arg21: memref<8x32xf32, #tpu.memory_space<vmem>>) attributes {dimension_semantics = [#tpu.dimension_semantics<parallel>, #tpu.dimension_semantics<arbitrary>], iteration_bounds = array<i64: 2, 1>, scalar_prefetch = 0 : i64, scratch_operands = 4 : i64, tpu.core_type = #tpu.core_type<tc>, window_params = [{transform_indices = @transform_0, window_bounds = array<i64: 1, 8, 32>}, {transform_indices = @transform_1, window_bounds = array<i64: 1, 8, 32>}, {pipeline_mode = #tpu.pipeline_mode<synchronous>, transform_indices = @transform_2, window_bounds = array<i64: 32, 32>}, {pipeline_mode = #tpu.pipeline_mode<synchronous>, transform_indices = @transform_3, window_bounds = array<i64: 32, 32>}, {pipeline_mode = #tpu.pipeline_mode<synchronous>, transform_indices = @transform_4, window_bounds = array<i64: 32, 32>}, {pipeline_mode = #tpu.pipeline_mode<synchronous>, transform_indices = @transform_5, window_bounds = array<i64: 32, 32>}, {pipeline_mode = #tpu.pipeline_mode<synchronous>, transform_indices = @transform_6, window_bounds = array<i64: 1, 32>}, {pipeline_mode = #tpu.pipeline_mode<synchronous>, transform_indices = @transform_7, window_bounds = array<i64: 1, 32>}, {pipeline_mode = #tpu.pipeline_mode<synchronous>, transform_indices = @transform_8, window_bounds = array<i64: 1, 32>}, {pipeline_mode = #tpu.pipeline_mode<synchronous>, transform_indices = @transform_9, window_bounds = array<i64: 32, 128>}, {pipeline_mode = #tpu.pipeline_mode<synchronous>, transform_indices = @transform_10, window_bounds = array<i64: 1, 128>}, {pipeline_mode = #tpu.pipeline_mode<synchronous>, transform_indices = @transform_11, window_bounds = array<i64: 128, 32>}, {pipeline_mode = #tpu.pipeline_mode<synchronous>, transform_indices = @transform_12, window_bounds = array<i64: 1, 32>}, {pipeline_mode = #tpu.pipeline_mode<synchronous>, transform_indices = @transform_13, window_bounds = array<i64: 1, 32>}, {pipeline_mode = #tpu.pipeline_mode<synchronous>, transform_indices = @transform_14, window_bounds = array<i64: 1, 32>}, {transform_indices = @transform_15, window_bounds = array<i64: 1, 8, 32>}]} {
    %c0_i32 = arith.constant 0 : i32
    %0 = arith.cmpi eq, %arg1, %c0_i32 : i32
    %1 = arith.extui %0 : i1 to i32
    %c0_i32_0 = arith.constant 0 : i32
    %2 = arith.cmpi ne, %1, %c0_i32_0 : i32
    scf.if %2 {
      %c0_122 = arith.constant 0 : index
      %c0_123 = arith.constant 0 : index
      %c0_124 = arith.constant 0 : index
      %206 = vector.load %arg3[%c0_122, %c0_123, %c0_124] : memref<1x8x32xf32, #tpu.memory_space<vmem>>, vector<1x8x32xf32>
      %207 = vector.shape_cast %206 : vector<1x8x32xf32> to vector<8x32xf32>
      %c0_125 = arith.constant 0 : index
      %c0_126 = arith.constant 0 : index
      %208 = vector.load %arg5[%c0_125, %c0_126] : memref<32x32xf32, #tpu.memory_space<vmem>>, vector<32x32xf32>
      %cst_127 = arith.constant dense<0.000000e+00> : vector<8x32xf32>
      %209 = tpu.matmul %207, %208, %cst_127 {dimension_numbers = #tpu.dot_dimension_numbers<[1], [0], [0], [1], [0, 0, 1, 1], [], []>, precision = #tpu.contract_precision<fp32>} : vector<8x32xf32>, vector<32x32xf32>, vector<8x32xf32> -> vector<8x32xf32>
      %c0_128 = arith.constant 0 : index
      %c0_129 = arith.constant 0 : index
      %210 = vector.load %arg18[%c0_128, %c0_129] : memref<8x32xf32, #tpu.memory_space<vmem>>, vector<8x32xf32>
      tpu.vector_store %arg18[%c0_128, %c0_129], %209 {strides = array<i32>} : memref<8x32xf32, #tpu.memory_space<vmem>>, vector<8x32xf32>,
      %c0_130 = arith.constant 0 : index
      %c0_131 = arith.constant 0 : index
      %211 = vector.load %arg6[%c0_130, %c0_131] : memref<32x32xf32, #tpu.memory_space<vmem>>, vector<32x32xf32>
      %cst_132 = arith.constant dense<0.000000e+00> : vector<8x32xf32>
      %212 = tpu.matmul %207, %211, %cst_132 {dimension_numbers = #tpu.dot_dimension_numbers<[1], [0], [0], [1], [0, 0, 1, 1], [], []>, precision = #tpu.contract_precision<fp32>} : vector<8x32xf32>, vector<32x32xf32>, vector<8x32xf32> -> vector<8x32xf32>
      %c0_133 = arith.constant 0 : index
      %c0_134 = arith.constant 0 : index
      %213 = vector.load %arg19[%c0_133, %c0_134] : memref<8x32xf32, #tpu.memory_space<vmem>>, vector<8x32xf32>
      tpu.vector_store %arg19[%c0_133, %c0_134], %212 {strides = array<i32>} : memref<8x32xf32, #tpu.memory_space<vmem>>, vector<8x32xf32>,
    } else {
    }
    %c0 = arith.constant 0 : index
    %c0_1 = arith.constant 0 : index
    %c0_2 = arith.constant 0 : index
    %3 = vector.load %arg2[%c0, %c0_1, %c0_2] : memref<1x8x32xf32, #tpu.memory_space<vmem>>, vector<1x8x32xf32>
    %4 = vector.shape_cast %3 : vector<1x8x32xf32> to vector<8x32xf32>
    %c0_3 = arith.constant 0 : index
    %c0_4 = arith.constant 0 : index
    %5 = vector.load %arg4[%c0_3, %c0_4] : memref<32x32xf32, #tpu.memory_space<vmem>>, vector<32x32xf32>
    %cst = arith.constant dense<0.000000e+00> : vector<8x32xf32>
    %6 = tpu.matmul %4, %5, %cst {dimension_numbers = #tpu.dot_dimension_numbers<[1], [0], [0], [1], [0, 0, 1, 1], [], []>, precision = #tpu.contract_precision<fp32>} : vector<8x32xf32>, vector<32x32xf32>, vector<8x32xf32> -> vector<8x32xf32>
    %c0_5 = arith.constant 0 : index
    %c0_6 = arith.constant 0 : index
    %7 = vector.load %arg20[%c0_5, %c0_6] : memref<8x32xf32, #tpu.memory_space<vmem>>, vector<8x32xf32>
    tpu.vector_store %arg20[%c0_5, %c0_6], %6 {strides = array<i32>} : memref<8x32xf32, #tpu.memory_space<vmem>>, vector<8x32xf32>,
    %c0_7 = arith.constant 0 : index
    %c0_8 = arith.constant 0 : index
    %8 = vector.load %arg20[%c0_7, %c0_8] : memref<8x32xf32, #tpu.memory_space<vmem>>, vector<8x8xf32>
    %c0_9 = arith.constant 0 : index
    %c0_10 = arith.constant 0 : index
    %9 = vector.load %arg18[%c0_9, %c0_10] : memref<8x32xf32, #tpu.memory_space<vmem>>, vector<8x8xf32>
    %c0_11 = arith.constant 0 : index
    %c0_12 = arith.constant 0 : index
    %10 = vector.load %arg19[%c0_11, %c0_12] : memref<8x32xf32, #tpu.memory_space<vmem>>, vector<8x8xf32>
    %cst_13 = arith.constant dense<0.000000e+00> : vector<8x8xf32>
    %11 = tpu.matmul %8, %9, %cst_13 {dimension_numbers = #tpu.dot_dimension_numbers<[1], [1], [0], [0], [0, 0, 1, 0], [], []>, precision = #tpu.contract_precision<fp32>} : vector<8x8xf32>, vector<8x8xf32>, vector<8x8xf32> -> vector<8x8xf32>
    %cst_14 = arith.constant 0.353553385 : f32
    %12 = vector.broadcast %cst_14 : f32 to vector<8x8xf32>
    %13 = arith.mulf %11, %12 : vector<8x8xf32>
    %cst_15 = arith.constant -6.500000e+04 : f32
    %cst_16 = arith.constant 6.500000e+04 : f32
    %14 = vector.broadcast %cst_15 : f32 to vector<8x8xf32>
    %15 = arith.maximumf %14, %13 : vector<8x8xf32>
    %16 = vector.broadcast %cst_16 : f32 to vector<8x8xf32>
    %17 = arith.minimumf %16, %15 : vector<8x8xf32>
    %cst_17 = arith.constant dense<0xFF800000> : vector<8xf32>
    %18 = vector.multi_reduction <maximumf>, %17, %cst_17 [1] : vector<8x8xf32> to vector<8xf32>
    %19 = vector.shape_cast %18 : vector<8xf32> to vector<8x1xf32>
    %20 = vector.broadcast %19 : vector<8x1xf32> to vector<8x8xf32>
    %21 = arith.subf %17, %20 : vector<8x8xf32>
    %22 = math.exp %21 : vector<8x8xf32>
    %cst_18 = arith.constant dense<0.000000e+00> : vector<8xf32>
    %23 = vector.multi_reduction <add>, %22, %cst_18 [1] : vector<8x8xf32> to vector<8xf32>
    %24 = vector.shape_cast %23 : vector<8xf32> to vector<8x1xf32>
    %cst_19 = arith.constant 1.000000e+00 : f32
    %25 = vector.broadcast %cst_19 : f32 to vector<8x1xf32>
    %26 = arith.divf %25, %24 : vector<8x1xf32>
    %27 = vector.broadcast %26 : vector<8x1xf32> to vector<8x8xf32>
    %28 = arith.mulf %22, %27 : vector<8x8xf32>
    %cst_20 = arith.constant dense<0.000000e+00> : vector<8x8xf32>
    %29 = tpu.matmul %28, %10, %cst_20 {dimension_numbers = #tpu.dot_dimension_numbers<[1], [0], [0], [1], [0, 0, 1, 1], [], []>, precision = #tpu.contract_precision<fp32>} : vector<8x8xf32>, vector<8x8xf32>, vector<8x8xf32> -> vector<8x8xf32>
    %c0_21 = arith.constant 0 : index
    %c0_22 = arith.constant 0 : index
    %30 = vector.load %arg21[%c0_21, %c0_22] : memref<8x32xf32, #tpu.memory_space<vmem>>, vector<8x8xf32>
    tpu.vector_store %arg21[%c0_21, %c0_22], %29 {strides = array<i32>} : memref<8x32xf32, #tpu.memory_space<vmem>>, vector<8x8xf32>,
    %c0_23 = arith.constant 0 : index
    %c8 = arith.constant 8 : index
    %31 = vector.load %arg20[%c0_23, %c8] : memref<8x32xf32, #tpu.memory_space<vmem>>, vector<8x8xf32>
    %c0_24 = arith.constant 0 : index
    %c8_25 = arith.constant 8 : index
    %32 = vector.load %arg18[%c0_24, %c8_25] : memref<8x32xf32, #tpu.memory_space<vmem>>, vector<8x8xf32>
    %c0_26 = arith.constant 0 : index
    %c8_27 = arith.constant 8 : index
    %33 = vector.load %arg19[%c0_26, %c8_27] : memref<8x32xf32, #tpu.memory_space<vmem>>, vector<8x8xf32>
    %cst_28 = arith.constant dense<0.000000e+00> : vector<8x8xf32>
    %34 = tpu.matmul %31, %32, %cst_28 {dimension_numbers = #tpu.dot_dimension_numbers<[1], [1], [0], [0], [0, 0, 1, 0], [], []>, precision = #tpu.contract_precision<fp32>} : vector<8x8xf32>, vector<8x8xf32>, vector<8x8xf32> -> vector<8x8xf32>
    %cst_29 = arith.constant 0.353553385 : f32
    %35 = vector.broadcast %cst_29 : f32 to vector<8x8xf32>
    %36 = arith.mulf %34, %35 : vector<8x8xf32>
    %cst_30 = arith.constant -6.500000e+04 : f32
    %cst_31 = arith.constant 6.500000e+04 : f32
    %37 = vector.broadcast %cst_30 : f32 to vector<8x8xf32>
    %38 = arith.maximumf %37, %36 : vector<8x8xf32>
    %39 = vector.broadcast %cst_31 : f32 to vector<8x8xf32>
    %40 = arith.minimumf %39, %38 : vector<8x8xf32>
    %cst_32 = arith.constant dense<0xFF800000> : vector<8xf32>
    %41 = vector.multi_reduction <maximumf>, %40, %cst_32 [1] : vector<8x8xf32> to vector<8xf32>
    %42 = vector.shape_cast %41 : vector<8xf32> to vector<8x1xf32>
    %43 = vector.broadcast %42 : vector<8x1xf32> to vector<8x8xf32>
    %44 = arith.subf %40, %43 : vector<8x8xf32>
    %45 = math.exp %44 : vector<8x8xf32>
    %cst_33 = arith.constant dense<0.000000e+00> : vector<8xf32>
    %46 = vector.multi_reduction <add>, %45, %cst_33 [1] : vector<8x8xf32> to vector<8xf32>
    %47 = vector.shape_cast %46 : vector<8xf32> to vector<8x1xf32>
    %cst_34 = arith.constant 1.000000e+00 : f32
    %48 = vector.broadcast %cst_34 : f32 to vector<8x1xf32>
    %49 = arith.divf %48, %47 : vector<8x1xf32>
    %50 = vector.broadcast %49 : vector<8x1xf32> to vector<8x8xf32>
    %51 = arith.mulf %45, %50 : vector<8x8xf32>
    %cst_35 = arith.constant dense<0.000000e+00> : vector<8x8xf32>
    %52 = tpu.matmul %51, %33, %cst_35 {dimension_numbers = #tpu.dot_dimension_numbers<[1], [0], [0], [1], [0, 0, 1, 1], [], []>, precision = #tpu.contract_precision<fp32>} : vector<8x8xf32>, vector<8x8xf32>, vector<8x8xf32> -> vector<8x8xf32>
    %c0_36 = arith.constant 0 : index
    %c8_37 = arith.constant 8 : index
    %53 = vector.load %arg21[%c0_36, %c8_37] : memref<8x32xf32, #tpu.memory_space<vmem>>, vector<8x8xf32>
    tpu.vector_store %arg21[%c0_36, %c8_37], %52 {strides = array<i32>} : memref<8x32xf32, #tpu.memory_space<vmem>>, vector<8x8xf32>,
    %c0_38 = arith.constant 0 : index
    %c16 = arith.constant 16 : index
    %54 = vector.load %arg20[%c0_38, %c16] : memref<8x32xf32, #tpu.memory_space<vmem>>, vector<8x8xf32>
    %c0_39 = arith.constant 0 : index
    %c16_40 = arith.constant 16 : index
    %55 = vector.load %arg18[%c0_39, %c16_40] : memref<8x32xf32, #tpu.memory_space<vmem>>, vector<8x8xf32>
    %c0_41 = arith.constant 0 : index
    %c16_42 = arith.constant 16 : index
    %56 = vector.load %arg19[%c0_41, %c16_42] : memref<8x32xf32, #tpu.memory_space<vmem>>, vector<8x8xf32>
    %cst_43 = arith.constant dense<0.000000e+00> : vector<8x8xf32>
    %57 = tpu.matmul %54, %55, %cst_43 {dimension_numbers = #tpu.dot_dimension_numbers<[1], [1], [0], [0], [0, 0, 1, 0], [], []>, precision = #tpu.contract_precision<fp32>} : vector<8x8xf32>, vector<8x8xf32>, vector<8x8xf32> -> vector<8x8xf32>
    %cst_44 = arith.constant 0.353553385 : f32
    %58 = vector.broadcast %cst_44 : f32 to vector<8x8xf32>
    %59 = arith.mulf %57, %58 : vector<8x8xf32>
    %cst_45 = arith.constant -6.500000e+04 : f32
    %cst_46 = arith.constant 6.500000e+04 : f32
    %60 = vector.broadcast %cst_45 : f32 to vector<8x8xf32>
    %61 = arith.maximumf %60, %59 : vector<8x8xf32>
    %62 = vector.broadcast %cst_46 : f32 to vector<8x8xf32>
    %63 = arith.minimumf %62, %61 : vector<8x8xf32>
    %cst_47 = arith.constant dense<0xFF800000> : vector<8xf32>
    %64 = vector.multi_reduction <maximumf>, %63, %cst_47 [1] : vector<8x8xf32> to vector<8xf32>
    %65 = vector.shape_cast %64 : vector<8xf32> to vector<8x1xf32>
    %66 = vector.broadcast %65 : vector<8x1xf32> to vector<8x8xf32>
    %67 = arith.subf %63, %66 : vector<8x8xf32>
    %68 = math.exp %67 : vector<8x8xf32>
    %cst_48 = arith.constant dense<0.000000e+00> : vector<8xf32>
    %69 = vector.multi_reduction <add>, %68, %cst_48 [1] : vector<8x8xf32> to vector<8xf32>
    %70 = vector.shape_cast %69 : vector<8xf32> to vector<8x1xf32>
    %cst_49 = arith.constant 1.000000e+00 : f32
    %71 = vector.broadcast %cst_49 : f32 to vector<8x1xf32>
    %72 = arith.divf %71, %70 : vector<8x1xf32>
    %73 = vector.broadcast %72 : vector<8x1xf32> to vector<8x8xf32>
    %74 = arith.mulf %68, %73 : vector<8x8xf32>
    %cst_50 = arith.constant dense<0.000000e+00> : vector<8x8xf32>
    %75 = tpu.matmul %74, %56, %cst_50 {dimension_numbers = #tpu.dot_dimension_numbers<[1], [0], [0], [1], [0, 0, 1, 1], [], []>, precision = #tpu.contract_precision<fp32>} : vector<8x8xf32>, vector<8x8xf32>, vector<8x8xf32> -> vector<8x8xf32>
    %c0_51 = arith.constant 0 : index
    %c16_52 = arith.constant 16 : index
    %76 = vector.load %arg21[%c0_51, %c16_52] : memref<8x32xf32, #tpu.memory_space<vmem>>, vector<8x8xf32>
    tpu.vector_store %arg21[%c0_51, %c16_52], %75 {strides = array<i32>} : memref<8x32xf32, #tpu.memory_space<vmem>>, vector<8x8xf32>,
    %c0_53 = arith.constant 0 : index
    %c24 = arith.constant 24 : index
    %77 = vector.load %arg20[%c0_53, %c24] : memref<8x32xf32, #tpu.memory_space<vmem>>, vector<8x8xf32>
    %c0_54 = arith.constant 0 : index
    %c24_55 = arith.constant 24 : index
    %78 = vector.load %arg18[%c0_54, %c24_55] : memref<8x32xf32, #tpu.memory_space<vmem>>, vector<8x8xf32>
    %c0_56 = arith.constant 0 : index
    %c24_57 = arith.constant 24 : index
    %79 = vector.load %arg19[%c0_56, %c24_57] : memref<8x32xf32, #tpu.memory_space<vmem>>, vector<8x8xf32>
    %cst_58 = arith.constant dense<0.000000e+00> : vector<8x8xf32>
    %80 = tpu.matmul %77, %78, %cst_58 {dimension_numbers = #tpu.dot_dimension_numbers<[1], [1], [0], [0], [0, 0, 1, 0], [], []>, precision = #tpu.contract_precision<fp32>} : vector<8x8xf32>, vector<8x8xf32>, vector<8x8xf32> -> vector<8x8xf32>
    %cst_59 = arith.constant 0.353553385 : f32
    %81 = vector.broadcast %cst_59 : f32 to vector<8x8xf32>
    %82 = arith.mulf %80, %81 : vector<8x8xf32>
    %cst_60 = arith.constant -6.500000e+04 : f32
    %cst_61 = arith.constant 6.500000e+04 : f32
    %83 = vector.broadcast %cst_60 : f32 to vector<8x8xf32>
    %84 = arith.maximumf %83, %82 : vector<8x8xf32>
    %85 = vector.broadcast %cst_61 : f32 to vector<8x8xf32>
    %86 = arith.minimumf %85, %84 : vector<8x8xf32>
    %cst_62 = arith.constant dense<0xFF800000> : vector<8xf32>
    %87 = vector.multi_reduction <maximumf>, %86, %cst_62 [1] : vector<8x8xf32> to vector<8xf32>
    %88 = vector.shape_cast %87 : vector<8xf32> to vector<8x1xf32>
    %89 = vector.broadcast %88 : vector<8x1xf32> to vector<8x8xf32>
    %90 = arith.subf %86, %89 : vector<8x8xf32>
    %91 = math.exp %90 : vector<8x8xf32>
    %cst_63 = arith.constant dense<0.000000e+00> : vector<8xf32>
    %92 = vector.multi_reduction <add>, %91, %cst_63 [1] : vector<8x8xf32> to vector<8xf32>
    %93 = vector.shape_cast %92 : vector<8xf32> to vector<8x1xf32>
    %cst_64 = arith.constant 1.000000e+00 : f32
    %94 = vector.broadcast %cst_64 : f32 to vector<8x1xf32>
    %95 = arith.divf %94, %93 : vector<8x1xf32>
    %96 = vector.broadcast %95 : vector<8x1xf32> to vector<8x8xf32>
    %97 = arith.mulf %91, %96 : vector<8x8xf32>
    %cst_65 = arith.constant dense<0.000000e+00> : vector<8x8xf32>
    %98 = tpu.matmul %97, %79, %cst_65 {dimension_numbers = #tpu.dot_dimension_numbers<[1], [0], [0], [1], [0, 0, 1, 1], [], []>, precision = #tpu.contract_precision<fp32>} : vector<8x8xf32>, vector<8x8xf32>, vector<8x8xf32> -> vector<8x8xf32>
    %c0_66 = arith.constant 0 : index
    %c24_67 = arith.constant 24 : index
    %99 = vector.load %arg21[%c0_66, %c24_67] : memref<8x32xf32, #tpu.memory_space<vmem>>, vector<8x8xf32>
    tpu.vector_store %arg21[%c0_66, %c24_67], %98 {strides = array<i32>} : memref<8x32xf32, #tpu.memory_space<vmem>>, vector<8x8xf32>,
    %c0_68 = arith.constant 0 : index
    %c0_69 = arith.constant 0 : index
    %100 = vector.load %arg21[%c0_68, %c0_69] : memref<8x32xf32, #tpu.memory_space<vmem>>, vector<8x32xf32>
    %c0_70 = arith.constant 0 : index
    %c0_71 = arith.constant 0 : index
    %101 = vector.load %arg7[%c0_70, %c0_71] : memref<32x32xf32, #tpu.memory_space<vmem>>, vector<32x32xf32>
    %cst_72 = arith.constant dense<0.000000e+00> : vector<8x32xf32>
    %102 = tpu.matmul %100, %101, %cst_72 {dimension_numbers = #tpu.dot_dimension_numbers<[1], [0], [0], [1], [0, 0, 1, 1], [], []>, precision = #tpu.contract_precision<fp32>} : vector<8x32xf32>, vector<32x32xf32>, vector<8x32xf32> -> vector<8x32xf32>
    %c0_73 = arith.constant 0 : index
    %c0_74 = arith.constant 0 : index
    %103 = vector.load %arg8[%c0_73, %c0_74] : memref<1x32xf32, #tpu.memory_space<vmem>>, vector<1x32xf32>
    %104 = vector.broadcast %103 : vector<1x32xf32> to vector<8x32xf32>
    %105 = arith.addf %102, %104 : vector<8x32xf32>
    %106 = arith.addf %4, %105 : vector<8x32xf32>
    %c0_75 = arith.constant 0 : index
    %c0_76 = arith.constant 0 : index
    %107 = vector.load %arg9[%c0_75, %c0_76] : memref<1x32xf32, #tpu.memory_space<vmem>>, vector<1x32xf32>
    %c0_77 = arith.constant 0 : index
    %c0_78 = arith.constant 0 : index
    %108 = vector.load %arg10[%c0_77, %c0_78] : memref<1x32xf32, #tpu.memory_space<vmem>>, vector<1x32xf32>
    %cst_79 = arith.constant dense<0.000000e+00> : vector<8xf32>
    %109 = vector.multi_reduction <add>, %106, %cst_79 [1] : vector<8x32xf32> to vector<8xf32>
    %110 = vector.shape_cast %109 : vector<8xf32> to vector<8x1xf32>
    %cst_80 = arith.constant 3.200000e+01 : f32
    %111 = vector.broadcast %cst_80 : f32 to vector<8x1xf32>
    %112 = arith.divf %110, %111 : vector<8x1xf32>
    %113 = vector.broadcast %112 : vector<8x1xf32> to vector<8x32xf32>
    %114 = arith.subf %106, %113 : vector<8x32xf32>
    %115 = arith.mulf %114, %114 : vector<8x32xf32>
    %cst_81 = arith.constant dense<0.000000e+00> : vector<8xf32>
    %116 = vector.multi_reduction <add>, %115, %cst_81 [1] : vector<8x32xf32> to vector<8xf32>
    %117 = vector.shape_cast %116 : vector<8xf32> to vector<8x1xf32>
    %cst_82 = arith.constant 3.200000e+01 : f32
    %118 = vector.broadcast %cst_82 : f32 to vector<8x1xf32>
    %119 = arith.divf %117, %118 : vector<8x1xf32>
    %cst_83 = arith.constant 9.99999974E-6 : f32
    %120 = vector.broadcast %cst_83 : f32 to vector<8x1xf32>
    %121 = arith.addf %119, %120 : vector<8x1xf32>
    %122 = math.rsqrt %121 : vector<8x1xf32>
    %123 = vector.broadcast %122 : vector<8x1xf32> to vector<8x32xf32>
    %124 = arith.mulf %114, %123 : vector<8x32xf32>
    %125 = vector.broadcast %107 : vector<1x32xf32> to vector<8x32xf32>
    %126 = arith.mulf %124, %125 : vector<8x32xf32>
    %127 = vector.broadcast %108 : vector<1x32xf32> to vector<8x32xf32>
    %128 = arith.addf %126, %127 : vector<8x32xf32>
    %c0_84 = arith.constant 0 : index
    %c0_85 = arith.constant 0 : index
    %129 = vector.load %arg11[%c0_84, %c0_85] : memref<32x128xf32, #tpu.memory_space<vmem>>, vector<32x128xf32>
    %cst_86 = arith.constant dense<0.000000e+00> : vector<8x128xf32>
    %130 = tpu.matmul %128, %129, %cst_86 {dimension_numbers = #tpu.dot_dimension_numbers<[1], [0], [0], [1], [0, 0, 1, 1], [], []>, precision = #tpu.contract_precision<fp32>} : vector<8x32xf32>, vector<32x128xf32>, vector<8x128xf32> -> vector<8x128xf32>
    %c0_87 = arith.constant 0 : index
    %c0_88 = arith.constant 0 : index
    %131 = vector.load %arg12[%c0_87, %c0_88] : memref<1x128xf32, #tpu.memory_space<vmem>>, vector<1x128xf32>
    %132 = vector.broadcast %131 : vector<1x128xf32> to vector<8x128xf32>
    %133 = arith.addf %130, %132 : vector<8x128xf32>
    %cst_89 = arith.constant 5.000000e-01 : f32
    %134 = vector.broadcast %cst_89 : f32 to vector<8x128xf32>
    %135 = arith.mulf %134, %133 : vector<8x128xf32>
    %cst_90 = arith.constant 0.707106769 : f32
    %136 = vector.broadcast %cst_90 : f32 to vector<8x128xf32>
    %137 = arith.mulf %133, %136 : vector<8x128xf32>
    %cst_91 = arith.constant 0.000000e+00 : f32
    %138 = vector.broadcast %cst_91 : f32 to vector<8x128xf32>
    %139 = arith.cmpf oge, %137, %138 : vector<8x128xf32>
    %cst_92 = arith.constant 1.000000e+00 : f32
    %cst_93 = arith.constant -1.000000e+00 : f32
    %140 = vector.broadcast %cst_92 : f32 to vector<8x128xf32>
    %141 = vector.broadcast %cst_93 : f32 to vector<8x128xf32>
    %142 = arith.select %139, %140, %141 : vector<8x128xi1>, vector<8x128xf32>
    %143 = math.absf %137 : vector<8x128xf32>
    %cst_94 = arith.constant 0.327591091 : f32
    %144 = vector.broadcast %cst_94 : f32 to vector<8x128xf32>
    %145 = arith.mulf %144, %143 : vector<8x128xf32>
    %cst_95 = arith.constant 1.000000e+00 : f32
    %146 = vector.broadcast %cst_95 : f32 to vector<8x128xf32>
    %147 = arith.addf %146, %145 : vector<8x128xf32>
    %cst_96 = arith.constant 1.000000e+00 : f32
    %148 = vector.broadcast %cst_96 : f32 to vector<8x128xf32>
    %149 = arith.divf %148, %147 : vector<8x128xf32>
    %cst_97 = arith.constant 1.06140542 : f32
    %150 = vector.broadcast %cst_97 : f32 to vector<8x128xf32>
    %151 = arith.mulf %150, %149 : vector<8x128xf32>
    %cst_98 = arith.constant -1.45315206 : f32
    %152 = vector.broadcast %cst_98 : f32 to vector<8x128xf32>
    %153 = arith.addf %151, %152 : vector<8x128xf32>
    %154 = arith.mulf %153, %149 : vector<8x128xf32>
    %cst_99 = arith.constant 1.42141378 : f32
    %155 = vector.broadcast %cst_99 : f32 to vector<8x128xf32>
    %156 = arith.addf %154, %155 : vector<8x128xf32>
    %157 = arith.mulf %156, %149 : vector<8x128xf32>
    %cst_100 = arith.constant -0.284496725 : f32
    %158 = vector.broadcast %cst_100 : f32 to vector<8x128xf32>
    %159 = arith.addf %157, %158 : vector<8x128xf32>
    %160 = arith.mulf %159, %149 : vector<8x128xf32>
    %cst_101 = arith.constant 0.254829586 : f32
    %161 = vector.broadcast %cst_101 : f32 to vector<8x128xf32>
    %162 = arith.addf %160, %161 : vector<8x128xf32>
    %163 = arith.mulf %162, %149 : vector<8x128xf32>
    %cst_102 = arith.constant 0.000000e+00 : f32
    %164 = vector.broadcast %cst_102 : f32 to vector<8x128xf32>
    %165 = arith.subf %164, %143 : vector<8x128xf32>
    %166 = arith.mulf %165, %143 : vector<8x128xf32>
    %167 = math.exp %166 : vector<8x128xf32>
    %168 = arith.mulf %163, %167 : vector<8x128xf32>
    %cst_103 = arith.constant 1.000000e+00 : f32
    %169 = vector.broadcast %cst_103 : f32 to vector<8x128xf32>
    %170 = arith.subf %169, %168 : vector<8x128xf32>
    %171 = arith.mulf %142, %170 : vector<8x128xf32>
    %cst_104 = arith.constant 1.000000e+00 : f32
    %172 = vector.broadcast %cst_104 : f32 to vector<8x128xf32>
    %173 = arith.addf %172, %171 : vector<8x128xf32>
    %174 = arith.mulf %135, %173 : vector<8x128xf32>
    %c0_105 = arith.constant 0 : index
    %c0_106 = arith.constant 0 : index
    %175 = vector.load %arg13[%c0_105, %c0_106] : memref<128x32xf32, #tpu.memory_space<vmem>>, vector<128x32xf32>
    %cst_107 = arith.constant dense<0.000000e+00> : vector<8x32xf32>
    %176 = tpu.matmul %174, %175, %cst_107 {dimension_numbers = #tpu.dot_dimension_numbers<[1], [0], [0], [1], [0, 0, 1, 1], [], []>, precision = #tpu.contract_precision<fp32>} : vector<8x128xf32>, vector<128x32xf32>, vector<8x32xf32> -> vector<8x32xf32>
    %c0_108 = arith.constant 0 : index
    %c0_109 = arith.constant 0 : index
    %177 = vector.load %arg14[%c0_108, %c0_109] : memref<1x32xf32, #tpu.memory_space<vmem>>, vector<1x32xf32>
    %178 = vector.broadcast %177 : vector<1x32xf32> to vector<8x32xf32>
    %179 = arith.addf %176, %178 : vector<8x32xf32>
    %180 = arith.addf %128, %179 : vector<8x32xf32>
    %c0_110 = arith.constant 0 : index
    %c0_111 = arith.constant 0 : index
    %181 = vector.load %arg15[%c0_110, %c0_111] : memref<1x32xf32, #tpu.memory_space<vmem>>, vector<1x32xf32>
    %c0_112 = arith.constant 0 : index
    %c0_113 = arith.constant 0 : index
    %182 = vector.load %arg16[%c0_112, %c0_113] : memref<1x32xf32, #tpu.memory_space<vmem>>, vector<1x32xf32>
    %cst_114 = arith.constant dense<0.000000e+00> : vector<8xf32>
    %183 = vector.multi_reduction <add>, %180, %cst_114 [1] : vector<8x32xf32> to vector<8xf32>
    %184 = vector.shape_cast %183 : vector<8xf32> to vector<8x1xf32>
    %cst_115 = arith.constant 3.200000e+01 : f32
    %185 = vector.broadcast %cst_115 : f32 to vector<8x1xf32>
    %186 = arith.divf %184, %185 : vector<8x1xf32>
    %187 = vector.broadcast %186 : vector<8x1xf32> to vector<8x32xf32>
    %188 = arith.subf %180, %187 : vector<8x32xf32>
    %189 = arith.mulf %188, %188 : vector<8x32xf32>
    %cst_116 = arith.constant dense<0.000000e+00> : vector<8xf32>
    %190 = vector.multi_reduction <add>, %189, %cst_116 [1] : vector<8x32xf32> to vector<8xf32>
    %191 = vector.shape_cast %190 : vector<8xf32> to vector<8x1xf32>
    %cst_117 = arith.constant 3.200000e+01 : f32
    %192 = vector.broadcast %cst_117 : f32 to vector<8x1xf32>
    %193 = arith.divf %191, %192 : vector<8x1xf32>
    %cst_118 = arith.constant 9.99999974E-6 : f32
    %194 = vector.broadcast %cst_118 : f32 to vector<8x1xf32>
    %195 = arith.addf %193, %194 : vector<8x1xf32>
    %196 = math.rsqrt %195 : vector<8x1xf32>
    %197 = vector.broadcast %196 : vector<8x1xf32> to vector<8x32xf32>
    %198 = arith.mulf %188, %197 : vector<8x32xf32>
    %199 = vector.broadcast %181 : vector<1x32xf32> to vector<8x32xf32>
    %200 = arith.mulf %198, %199 : vector<8x32xf32>
    %201 = vector.broadcast %182 : vector<1x32xf32> to vector<8x32xf32>
    %202 = arith.addf %200, %201 : vector<8x32xf32>
    %c0_119 = arith.constant 0 : index
    %c0_120 = arith.constant 0 : index
    %c0_121 = arith.constant 0 : index
    %203 = vector.load %arg17[%c0_119, %c0_120, %c0_121] : memref<1x8x32xf32, #tpu.memory_space<vmem>>, vector<1x8x32xf32>
    %204 = vector.shape_cast %203 : vector<1x8x32xf32> to vector<8x32xf32>
    %205 = vector.shape_cast %202 : vector<8x32xf32> to vector<1x8x32xf32>
    tpu.vector_store %arg17[%c0_119, %c0_120, %c0_121], %205 {strides = array<i32>} : memref<1x8x32xf32, #tpu.memory_space<vmem>>, vector<1x8x32xf32>,
    return
  }
  func.func @transform_0(%arg0: i32, %arg1: i32) -> (i32, i32, i32) {
    %c0_i32 = arith.constant 0 : i32
    %c0_i32_0 = arith.constant 0 : i32
    return %arg0, %arg1, %c0_i32 : i32, i32, i32
  }
  func.func @transform_1(%arg0: i32, %arg1: i32) -> (i32, i32, i32) {
    %c0_i32 = arith.constant 0 : i32
    %c0_i32_0 = arith.constant 0 : i32
    %c0_i32_1 = arith.constant 0 : i32
    return %arg0, %c0_i32, %c0_i32_0 : i32, i32, i32
  }
  func.func @transform_2(%arg0: i32, %arg1: i32) -> (i32, i32) {
    %c0_i32 = arith.constant 0 : i32
    %c0_i32_0 = arith.constant 0 : i32
    %c0_i32_1 = arith.constant 0 : i32
    return %c0_i32, %c0_i32_0 : i32, i32
  }
  func.func @transform_3(%arg0: i32, %arg1: i32) -> (i32, i32) {
    %c0_i32 = arith.constant 0 : i32
    %c0_i32_0 = arith.constant 0 : i32
    %c0_i32_1 = arith.constant 0 : i32
    return %c0_i32, %c0_i32_0 : i32, i32
  }
  func.func @transform_4(%arg0: i32, %arg1: i32) -> (i32, i32) {
    %c0_i32 = arith.constant 0 : i32
    %c0_i32_0 = arith.constant 0 : i32
    %c0_i32_1 = arith.constant 0 : i32
    return %c0_i32, %c0_i32_0 : i32, i32
  }
  func.func @transform_5(%arg0: i32, %arg1: i32) -> (i32, i32) {
    %c0_i32 = arith.constant 0 : i32
    %c0_i32_0 = arith.constant 0 : i32
    %c0_i32_1 = arith.constant 0 : i32
    return %c0_i32, %c0_i32_0 : i32, i32
  }
  func.func @transform_6(%arg0: i32, %arg1: i32) -> (i32, i32) {
    %c0_i32 = arith.constant 0 : i32
    %c0_i32_0 = arith.constant 0 : i32
    %c0_i32_1 = arith.constant 0 : i32
    return %c0_i32, %c0_i32_0 : i32, i32
  }
  func.func @transform_7(%arg0: i32, %arg1: i32) -> (i32, i32) {
    %c0_i32 = arith.constant 0 : i32
    %c0_i32_0 = arith.constant 0 : i32
    %c0_i32_1 = arith.constant 0 : i32
    return %c0_i32, %c0_i32_0 : i32, i32
  }
  func.func @transform_8(%arg0: i32, %arg1: i32) -> (i32, i32) {
    %c0_i32 = arith.constant 0 : i32
    %c0_i32_0 = arith.constant 0 : i32
    %c0_i32_1 = arith.constant 0 : i32
    return %c0_i32, %c0_i32_0 : i32, i32
  }
  func.func @transform_9(%arg0: i32, %arg1: i32) -> (i32, i32) {
    %c0_i32 = arith.constant 0 : i32
    %c0_i32_0 = arith.constant 0 : i32
    %c0_i32_1 = arith.constant 0 : i32
    return %c0_i32, %c0_i32_0 : i32, i32
  }
  func.func @transform_10(%arg0: i32, %arg1: i32) -> (i32, i32) {
    %c0_i32 = arith.constant 0 : i32
    %c0_i32_0 = arith.constant 0 : i32
    %c0_i32_1 = arith.constant 0 : i32
    return %c0_i32, %c0_i32_0 : i32, i32
  }
  func.func @transform_11(%arg0: i32, %arg1: i32) -> (i32, i32) {
    %c0_i32 = arith.constant 0 : i32
    %c0_i32_0 = arith.constant 0 : i32
    %c0_i32_1 = arith.constant 0 : i32
    return %c0_i32, %c0_i32_0 : i32, i32
  }
  func.func @transform_12(%arg0: i32, %arg1: i32) -> (i32, i32) {
    %c0_i32 = arith.constant 0 : i32
    %c0_i32_0 = arith.constant 0 : i32
    %c0_i32_1 = arith.constant 0 : i32
    return %c0_i32, %c0_i32_0 : i32, i32
  }
  func.func @transform_13(%arg0: i32, %arg1: i32) -> (i32, i32) {
    %c0_i32 = arith.constant 0 : i32
    %c0_i32_0 = arith.constant 0 : i32
    %c0_i32_1 = arith.constant 0 : i32
    return %c0_i32, %c0_i32_0 : i32, i32
  }
  func.func @transform_14(%arg0: i32, %arg1: i32) -> (i32, i32) {
    %c0_i32 = arith.constant 0 : i32
    %c0_i32_0 = arith.constant 0 : i32
    %c0_i32_1 = arith.constant 0 : i32
    return %c0_i32, %c0_i32_0 : i32, i32
  }
  func.func @transform_15(%arg0: i32, %arg1: i32) -> (i32, i32, i32) {
    %c0_i32 = arith.constant 0 : i32
    %c0_i32_0 = arith.constant 0 : i32
    return %arg0, %arg1, %c0_i32 : i32, i32, i32
  }
}

</mosaic_0001>

<llo_original>
// kernel: tpu_custom_call.1
$region0: #{tpu_custom_call.1}
  #allocation0 [shape = 'u32[]', space=smem, size = 0x4, offset = 0x4, fixed_abs, tag = 'smem constant byte address 0x4 - core index']
  #allocation1 [shape = 'u32[72,128]{1,0:T(1,128)}', space=vmem, size = 0x9000, scoped, tag = 'internal scratch']
  #allocation2 [shape = 'f32[8,32]{1,0:T(8,128)}', space=vmem, size = 0x1000, scoped, tag = 'scratch operand']
  #allocation3 [shape = 'f32[8,32]{1,0:T(8,128)}', space=vmem, size = 0x1000, scoped, tag = 'scratch operand']
  #allocation4 [shape = 'f32[8,32]{1,0:T(8,128)}', space=vmem, size = 0x1000, scoped, tag = 'scratch operand']
  #allocation5 [shape = 'f32[8,32]{1,0:T(8,128)}', space=vmem, size = 0x1000, scoped, tag = 'scratch operand']
  %s0 = inlined_call_operand.hbm [shape: f32[2,8,32], index: 0, kind: input, shape index: {}]
  %s1 = inlined_call_operand.hbm [shape: f32[2,8,32], index: 1, kind: input, shape index: {}]
  %s2 = inlined_call_operand.vmem [shape: f32[32,32], index: 2, kind: input, shape index: {}]
  %s3 = inlined_call_operand.vmem [shape: f32[32,32], index: 3, kind: input, shape index: {}]
  %s4 = inlined_call_operand.vmem [shape: f32[32,32], index: 4, kind: input, shape index: {}]
  %s5 = inlined_call_operand.vmem [shape: f32[32,32], index: 5, kind: input, shape index: {}]
  %s6 = inlined_call_operand.vmem [shape: f32[1,32], index: 6, kind: input, shape index: {}]
  %s7 = inlined_call_operand.vmem [shape: f32[1,32], index: 7, kind: input, shape index: {}]
  %s8 = inlined_call_operand.vmem [shape: f32[1,32], index: 8, kind: input, shape index: {}]
  %s9 = inlined_call_operand.vmem [shape: f32[32,128], index: 9, kind: input, shape index: {}]
  %s10 = inlined_call_operand.vmem [shape: f32[1,128], index: 10, kind: input, shape index: {}]
  %s11 = inlined_call_operand.vmem [shape: f32[128,32], index: 11, kind: input, shape index: {}]
  %s12 = inlined_call_operand.vmem [shape: f32[1,32], index: 12, kind: input, shape index: {}]
  %s13 = inlined_call_operand.vmem [shape: f32[1,32], index: 13, kind: input, shape index: {}]
  %s14 = inlined_call_operand.vmem [shape: f32[1,32], index: 14, kind: input, shape index: {}]
  %s15 = inlined_call_operand.hbm [shape: f32[2,8,32], index: 15, kind: output, shape index: {}]
  %s16 = sld [smem:[#allocation0]]
  $region105: #{tpu_custom_call.1} parent=0
    _
  %s18 = ssub.s32 1, %s16
  %s19 = scalar_select 0, %s18, %s16
  $region1: #{tpu_custom_call.1} parent=0
    #allocation6 [shape = 'u8[8192]{0}', space=vmem, size = 0x2000, scoped, tag = 'input window, operand 0']
    #allocation7 [shape = 's32[2]{0}', space=sflag, size = 0x8, scoped, tag = 'scoped memory for tpu_custom_call.1']
    #allocation8 [shape = 's32[2]{0}', space=sflag, size = 0x8, scoped, tag = 'scoped memory for tpu_custom_call.1']
    #allocation9 [shape = 'u8[8192]{0}', space=vmem, size = 0x2000, scoped, tag = 'input window, operand 1']
    #allocation10 [shape = 's32[2]{0}', space=sflag, size = 0x8, scoped, tag = 'scoped memory for tpu_custom_call.1']
    #allocation11 [shape = 'u8[8192]{0}', space=vmem, size = 0x2000, scoped, tag = 'output window, operand 0']
    %20 = vsyncpa [#allocation7], 0
    %s21 = scalar_lea.sflag [#allocation7], 1
    %22 = vsyncpa %s21, 0
    %23 = vsyncpa [#allocation10], 0
    %s24 = scalar_lea.sflag [#allocation10], 1
    %25 = vsyncpa %s24, 0
    %26 = vsyncpa [#allocation8], 0
    %s27 = scalar_lea.sflag [#allocation8], 1
    %28 = vsyncpa %s27, 0
    loop: start=0, step=1, limit=4
    $region2: #{tpu_custom_call.1} parent=1 // loop_pre_header
      _
    $region3: #{tpu_custom_call.1} parent=1 // loop_header
      %s30 = sphi 0, %s34
      %p31 = scmp.ge.s32.totalorder %s30, 4
      %s37 = sphi 0, %s49
      %s38 = sphi 0, %s45
      %s39 = sphi 0, %s37
      %s40 = sphi 0, %s38
      %s41 = sphi 0, %s39
      %s42 = sphi 0, %s40
      %s54 = sphi 0, %s56
      %s57 = sphi 0, %s54
      %s58 = sphi 0, %s57
      %s74 = sphi 0, %s58
      %s80 = sphi 0, %s82
      %s83 = sphi 0, %s80
      %s84 = sphi 0, %s83
      %s100 = sphi 0, %s84
      %s104 = sphi 0, %s104
      %s106 = sphi 0, %s104
      %s107 = sphi 0, %s106
      %s121 = sphi 0, %s107
      %s125 = sphi 0, %s125
      %s127 = sphi 0, %s125
      %s128 = sphi 0, %s127
      %s142 = sphi 0, %s128
      %s146 = sphi 0, %s146
      %s148 = sphi 0, %s146
      %s149 = sphi 0, %s148
      %s163 = sphi 0, %s149
      %s167 = sphi 0, %s167
      %s169 = sphi 0, %s167
      %s170 = sphi 0, %s169
      %s184 = sphi 0, %s170
      %s188 = sphi 0, %s188
      %s190 = sphi 0, %s188
      %s191 = sphi 0, %s190
      %s205 = sphi 0, %s191
      %s209 = sphi 0, %s209
      %s211 = sphi 0, %s209
      %s212 = sphi 0, %s211
      %s226 = sphi 0, %s212
      %s230 = sphi 0, %s230
      %s232 = sphi 0, %s230
      %s233 = sphi 0, %s232
      %s247 = sphi 0, %s233
      %s251 = sphi 0, %s251
      %s253 = sphi 0, %s251
      %s254 = sphi 0, %s253
      %s268 = sphi 0, %s254
      %s272 = sphi 0, %s272
      %s274 = sphi 0, %s272
      %s275 = sphi 0, %s274
      %s289 = sphi 0, %s275
      %s293 = sphi 0, %s293
      %s295 = sphi 0, %s293
      %s296 = sphi 0, %s295
      %s310 = sphi 0, %s296
      %s314 = sphi 0, %s314
      %s316 = sphi 0, %s314
      %s317 = sphi 0, %s316
      %s331 = sphi 0, %s317
      %s335 = sphi 0, %s335
      %s337 = sphi 0, %s335
      %s338 = sphi 0, %s337
      %s352 = sphi 0, %s338
      %s356 = sphi 0, %s356
      %s358 = sphi 0, %s356
      %s359 = sphi 0, %s358
      %s373 = sphi 0, %s359
      %s381 = sphi 0, %s383
      %s384 = sphi 0, %s381
      %s385 = sphi 0, %s384
      %s401 = sphi 0, %s385
    $region4: #{tpu_custom_call.1} parent=1 // loop_header_branch
      %33 = sbr.rel (%p31) target = $region8
    $region5: #{tpu_custom_call.1} parent=1 // loop_body
      %s35 = ssub.s32 %s30, 1
      %s36 = ssub.s32 %s30, 2
      %s43 = sadd.s32 1, %s38
      %p44 = scmp.ge.s32.totalorder %s43, 1
      %s45 = scalar_select %p44, 0, %s43
      %s46 = sadd.s32 1, %s37
      %s47 = scalar_select %p44, %s46, %s37
      %p48 = scmp.ge.s32.totalorder %s47, 2
      %s49 = scalar_select %p48, 0, %s47
      %s50 = ssub.s32 %s37, %s49
      %s51 = ssub.s32 %s38, %s45
      %s52 = sor.u32 %s50, %s51
      %p53 = scmp.eq.s32.totalorder %s52, 0
      %s55 = sadd.s32 %s54, 1
      %s56 = scalar_select %p53, %s54, %s55
      %p59 = pneg %p53
      %p60 = scmp.eq.s32.totalorder %s30, 1
      %p61 = por %p59, %p60
      %p62 = scmp.ne.s32.totalorder %s54, %s57
      %p63 = scmp.eq.s32.totalorder %s30, 0
      %p64 = por %p62, %p63
      %p65 = scmp.ne.s32.totalorder %s54, %s57
      %p66 = scmp.eq.s32.totalorder %s35, 1
      %p67 = por %p65, %p66
      %p68 = scmp.ne.s32.totalorder %s57, %s58
      %p69 = scmp.eq.s32.totalorder %s35, 0
      %p70 = por %p68, %p69
      %p71 = scmp.ne.s32.totalorder %s57, %s58
      %p72 = scmp.eq.s32.totalorder %s36, 1
      %p73 = por %p71, %p72
      %p75 = scmp.ne.s32.totalorder %s58, %s74
      %p76 = scmp.eq.s32.totalorder %s36, 0
      %p77 = por %p75, %p76
      %s78 = ssub.s32 %s37, %s49
      %p79 = scmp.eq.s32.totalorder %s78, 0
      %s81 = sadd.s32 %s80, 1
      %s82 = scalar_select %p79, %s80, %s81
      %p85 = pneg %p79
      %p86 = scmp.eq.s32.totalorder %s30, 1
      %p87 = por %p85, %p86
      %p88 = scmp.ne.s32.totalorder %s80, %s83
      %p89 = scmp.eq.s32.totalorder %s30, 0
      %p90 = por %p88, %p89
      %p91 = scmp.ne.s32.totalorder %s80, %s83
      %p92 = scmp.eq.s32.totalorder %s35, 1
      %p93 = por %p91, %p92
      %p94 = scmp.ne.s32.totalorder %s83, %s84
      %p95 = scmp.eq.s32.totalorder %s35, 0
      %p96 = por %p94, %p95
      %p97 = scmp.ne.s32.totalorder %s83, %s84
      %p98 = scmp.eq.s32.totalorder %s36, 1
      %p99 = por %p97, %p98
      %p101 = scmp.ne.s32.totalorder %s84, %s100
      %p102 = scmp.eq.s32.totalorder %s36, 0
      %p103 = por %p101, %p102
      %s105 = sadd.s32 %s104, 1
      %p108 = scmp.eq.s32.totalorder %s30, 1
      %p109 = scmp.ne.s32.totalorder %s104, %s106
      %p110 = scmp.eq.s32.totalorder %s30, 0
      %p111 = por %p109, %p110
      %p112 = scmp.ne.s32.totalorder %s104, %s106
      %p113 = scmp.eq.s32.totalorder %s35, 1
      %p114 = por %p112, %p113
      %p115 = scmp.ne.s32.totalorder %s106, %s107
      %p116 = scmp.eq.s32.totalorder %s35, 0
      %p117 = por %p115, %p116
      %p118 = scmp.ne.s32.totalorder %s106, %s107
      %p119 = scmp.eq.s32.totalorder %s36, 1
      %p120 = por %p118, %p119
      %p122 = scmp.ne.s32.totalorder %s107, %s121
      %p123 = scmp.eq.s32.totalorder %s36, 0
      %p124 = por %p122, %p123
      %s126 = sadd.s32 %s125, 1
      %p129 = scmp.eq.s32.totalorder %s30, 1
      %p130 = scmp.ne.s32.totalorder %s125, %s127
      %p131 = scmp.eq.s32.totalorder %s30, 0
      %p132 = por %p130, %p131
      %p133 = scmp.ne.s32.totalorder %s125, %s127
      %p134 = scmp.eq.s32.totalorder %s35, 1
      %p135 = por %p133, %p134
      %p136 = scmp.ne.s32.totalorder %s127, %s128
      %p137 = scmp.eq.s32.totalorder %s35, 0
      %p138 = por %p136, %p137
      %p139 = scmp.ne.s32.totalorder %s127, %s128
      %p140 = scmp.eq.s32.totalorder %s36, 1
      %p141 = por %p139, %p140
      %p143 = scmp.ne.s32.totalorder %s128, %s142
      %p144 = scmp.eq.s32.totalorder %s36, 0
      %p145 = por %p143, %p144
      %s147 = sadd.s32 %s146, 1
      %p150 = scmp.eq.s32.totalorder %s30, 1
      %p151 = scmp.ne.s32.totalorder %s146, %s148
      %p152 = scmp.eq.s32.totalorder %s30, 0
      %p153 = por %p151, %p152
      %p154 = scmp.ne.s32.totalorder %s146, %s148
      %p155 = scmp.eq.s32.totalorder %s35, 1
      %p156 = por %p154, %p155
      %p157 = scmp.ne.s32.totalorder %s148, %s149
      %p158 = scmp.eq.s32.totalorder %s35, 0
      %p159 = por %p157, %p158
      %p160 = scmp.ne.s32.totalorder %s148, %s149
      %p161 = scmp.eq.s32.totalorder %s36, 1
      %p162 = por %p160, %p161
      %p164 = scmp.ne.s32.totalorder %s149, %s163
      %p165 = scmp.eq.s32.totalorder %s36, 0
      %p166 = por %p164, %p165
      %s168 = sadd.s32 %s167, 1
      %p171 = scmp.eq.s32.totalorder %s30, 1
      %p172 = scmp.ne.s32.totalorder %s167, %s169
      %p173 = scmp.eq.s32.totalorder %s30, 0
      %p174 = por %p172, %p173
      %p175 = scmp.ne.s32.totalorder %s167, %s169
      %p176 = scmp.eq.s32.totalorder %s35, 1
      %p177 = por %p175, %p176
      %p178 = scmp.ne.s32.totalorder %s169, %s170
      %p179 = scmp.eq.s32.totalorder %s35, 0
      %p180 = por %p178, %p179
      %p181 = scmp.ne.s32.totalorder %s169, %s170
      %p182 = scmp.eq.s32.totalorder %s36, 1
      %p183 = por %p181, %p182
      %p185 = scmp.ne.s32.totalorder %s170, %s184
      %p186 = scmp.eq.s32.totalorder %s36, 0
      %p187 = por %p185, %p186
      %s189 = sadd.s32 %s188, 1
      %p192 = scmp.eq.s32.totalorder %s30, 1
      %p193 = scmp.ne.s32.totalorder %s188, %s190
      %p194 = scmp.eq.s32.totalorder %s30, 0
      %p195 = por %p193, %p194
      %p196 = scmp.ne.s32.totalorder %s188, %s190
      %p197 = scmp.eq.s32.totalorder %s35, 1
      %p198 = por %p196, %p197
      %p199 = scmp.ne.s32.totalorder %s190, %s191
      %p200 = scmp.eq.s32.totalorder %s35, 0
      %p201 = por %p199, %p200
      %p202 = scmp.ne.s32.totalorder %s190, %s191
      %p203 = scmp.eq.s32.totalorder %s36, 1
      %p204 = por %p202, %p203
      %p206 = scmp.ne.s32.totalorder %s191, %s205
      %p207 = scmp.eq.s32.totalorder %s36, 0
      %p208 = por %p206, %p207
      %s210 = sadd.s32 %s209, 1
      %p213 = scmp.eq.s32.totalorder %s30, 1
      %p214 = scmp.ne.s32.totalorder %s209, %s211
      %p215 = scmp.eq.s32.totalorder %s30, 0
      %p216 = por %p214, %p215
      %p217 = scmp.ne.s32.totalorder %s209, %s211
      %p218 = scmp.eq.s32.totalorder %s35, 1
      %p219 = por %p217, %p218
      %p220 = scmp.ne.s32.totalorder %s211, %s212
      %p221 = scmp.eq.s32.totalorder %s35, 0
      %p222 = por %p220, %p221
      %p223 = scmp.ne.s32.totalorder %s211, %s212
      %p224 = scmp.eq.s32.totalorder %s36, 1
      %p225 = por %p223, %p224
      %p227 = scmp.ne.s32.totalorder %s212, %s226
      %p228 = scmp.eq.s32.totalorder %s36, 0
      %p229 = por %p227, %p228
      %s231 = sadd.s32 %s230, 1
      %p234 = scmp.eq.s32.totalorder %s30, 1
      %p235 = scmp.ne.s32.totalorder %s230, %s232
      %p236 = scmp.eq.s32.totalorder %s30, 0
      %p237 = por %p235, %p236
      %p238 = scmp.ne.s32.totalorder %s230, %s232
      %p239 = scmp.eq.s32.totalorder %s35, 1
      %p240 = por %p238, %p239
      %p241 = scmp.ne.s32.totalorder %s232, %s233
      %p242 = scmp.eq.s32.totalorder %s35, 0
      %p243 = por %p241, %p242
      %p244 = scmp.ne.s32.totalorder %s232, %s233
      %p245 = scmp.eq.s32.totalorder %s36, 1
      %p246 = por %p244, %p245
      %p248 = scmp.ne.s32.totalorder %s233, %s247
      %p249 = scmp.eq.s32.totalorder %s36, 0
      %p250 = por %p248, %p249
      %s252 = sadd.s32 %s251, 1
      %p255 = scmp.eq.s32.totalorder %s30, 1
      %p256 = scmp.ne.s32.totalorder %s251, %s253
      %p257 = scmp.eq.s32.totalorder %s30, 0
      %p258 = por %p256, %p257
      %p259 = scmp.ne.s32.totalorder %s251, %s253
      %p260 = scmp.eq.s32.totalorder %s35, 1
      %p261 = por %p259, %p260
      %p262 = scmp.ne.s32.totalorder %s253, %s254
      %p263 = scmp.eq.s32.totalorder %s35, 0
      %p264 = por %p262, %p263
      %p265 = scmp.ne.s32.totalorder %s253, %s254
      %p266 = scmp.eq.s32.totalorder %s36, 1
      %p267 = por %p265, %p266
      %p269 = scmp.ne.s32.totalorder %s254, %s268
      %p270 = scmp.eq.s32.totalorder %s36, 0
      %p271 = por %p269, %p270
      %s273 = sadd.s32 %s272, 1
      %p276 = scmp.eq.s32.totalorder %s30, 1
      %p277 = scmp.ne.s32.totalorder %s272, %s274
      %p278 = scmp.eq.s32.totalorder %s30, 0
      %p279 = por %p277, %p278
      %p280 = scmp.ne.s32.totalorder %s272, %s274
      %p281 = scmp.eq.s32.totalorder %s35, 1
      %p282 = por %p280, %p281
      %p283 = scmp.ne.s32.totalorder %s274, %s275
      %p284 = scmp.eq.s32.totalorder %s35, 0
      %p285 = por %p283, %p284
      %p286 = scmp.ne.s32.totalorder %s274, %s275
      %p287 = scmp.eq.s32.totalorder %s36, 1
      %p288 = por %p286, %p287
      %p290 = scmp.ne.s32.totalorder %s275, %s289
      %p291 = scmp.eq.s32.totalorder %s36, 0
      %p292 = por %p290, %p291
      %s294 = sadd.s32 %s293, 1
      %p297 = scmp.eq.s32.totalorder %s30, 1
      %p298 = scmp.ne.s32.totalorder %s293, %s295
      %p299 = scmp.eq.s32.totalorder %s30, 0
      %p300 = por %p298, %p299
      %p301 = scmp.ne.s32.totalorder %s293, %s295
      %p302 = scmp.eq.s32.totalorder %s35, 1
      %p303 = por %p301, %p302
      %p304 = scmp.ne.s32.totalorder %s295, %s296
      %p305 = scmp.eq.s32.totalorder %s35, 0
      %p306 = por %p304, %p305
      %p307 = scmp.ne.s32.totalorder %s295, %s296
      %p308 = scmp.eq.s32.totalorder %s36, 1
      %p309 = por %p307, %p308
      %p311 = scmp.ne.s32.totalorder %s296, %s310
      %p312 = scmp.eq.s32.totalorder %s36, 0
      %p313 = por %p311, %p312
      %s315 = sadd.s32 %s314, 1
      %p318 = scmp.eq.s32.totalorder %s30, 1
      %p319 = scmp.ne.s32.totalorder %s314, %s316
      %p320 = scmp.eq.s32.totalorder %s30, 0
      %p321 = por %p319, %p320
      %p322 = scmp.ne.s32.totalorder %s314, %s316
      %p323 = scmp.eq.s32.totalorder %s35, 1
      %p324 = por %p322, %p323
      %p325 = scmp.ne.s32.totalorder %s316, %s317
      %p326 = scmp.eq.s32.totalorder %s35, 0
      %p327 = por %p325, %p326
      %p328 = scmp.ne.s32.totalorder %s316, %s317
      %p329 = scmp.eq.s32.totalorder %s36, 1
      %p330 = por %p328, %p329
      %p332 = scmp.ne.s32.totalorder %s317, %s331
      %p333 = scmp.eq.s32.totalorder %s36, 0
      %p334 = por %p332, %p333
      %s336 = sadd.s32 %s335, 1
      %p339 = scmp.eq.s32.totalorder %s30, 1
      %p340 = scmp.ne.s32.totalorder %s335, %s337
      %p341 = scmp.eq.s32.totalorder %s30, 0
      %p342 = por %p340, %p341
      %p343 = scmp.ne.s32.totalorder %s335, %s337
      %p344 = scmp.eq.s32.totalorder %s35, 1
      %p345 = por %p343, %p344
      %p346 = scmp.ne.s32.totalorder %s337, %s338
      %p347 = scmp.eq.s32.totalorder %s35, 0
      %p348 = por %p346, %p347
      %p349 = scmp.ne.s32.totalorder %s337, %s338
      %p350 = scmp.eq.s32.totalorder %s36, 1
      %p351 = por %p349, %p350
      %p353 = scmp.ne.s32.totalorder %s338, %s352
      %p354 = scmp.eq.s32.totalorder %s36, 0
      %p355 = por %p353, %p354
      %s357 = sadd.s32 %s356, 1
      %p360 = scmp.eq.s32.totalorder %s30, 1
      %p361 = scmp.ne.s32.totalorder %s356, %s358
      %p362 = scmp.eq.s32.totalorder %s30, 0
      %p363 = por %p361, %p362
      %p364 = scmp.ne.s32.totalorder %s356, %s358
      %p365 = scmp.eq.s32.totalorder %s35, 1
      %p366 = por %p364, %p365
      %p367 = scmp.ne.s32.totalorder %s358, %s359
      %p368 = scmp.eq.s32.totalorder %s35, 0
      %p369 = por %p367, %p368
      %p370 = scmp.ne.s32.totalorder %s358, %s359
      %p371 = scmp.eq.s32.totalorder %s36, 1
      %p372 = por %p370, %p371
      %p374 = scmp.ne.s32.totalorder %s359, %s373
      %p375 = scmp.eq.s32.totalorder %s36, 0
      %p376 = por %p374, %p375
      %s377 = ssub.s32 %s37, %s49
      %s378 = ssub.s32 %s38, %s45
      %s379 = sor.u32 %s377, %s378
      %p380 = scmp.eq.s32.totalorder %s379, 0
      %s382 = sadd.s32 %s381, 1
      %s383 = scalar_select %p380, %s381, %s382
      %p386 = pneg %p380
      %p387 = scmp.eq.s32.totalorder %s30, 1
      %p388 = por %p386, %p387
      %p389 = scmp.ne.s32.totalorder %s381, %s384
      %p390 = scmp.eq.s32.totalorder %s30, 0
      %p391 = por %p389, %p390
      %p392 = scmp.ne.s32.totalorder %s381, %s384
      %p393 = scmp.eq.s32.totalorder %s35, 1
      %p394 = por %p392, %p393
      %p395 = scmp.ne.s32.totalorder %s384, %s385
      %p396 = scmp.eq.s32.totalorder %s35, 0
      %p397 = por %p395, %p396
      %p398 = scmp.ne.s32.totalorder %s384, %s385
      %p399 = scmp.eq.s32.totalorder %s36, 1
      %p400 = por %p398, %p399
      %p402 = scmp.ne.s32.totalorder %s385, %s401
      %p403 = scmp.eq.s32.totalorder %s36, 0
      %p404 = por %p402, %p403
      %p405 = scmp.le.s32.totalorder 1, %s30
      %p406 = scmp.lt.s32.totalorder %s30, 3
      %p407 = pnand %p405, %p406
      %p408 = pneg %p407
      // Predicated region
      $region9: #{tpu_custom_call.1} parent=5 // pred_check
        _
      $region10: #{tpu_custom_call.1} parent=5 // pred_check_branch
        %410 = sbr.rel (%p407) target = $region12
      $region11: #{tpu_custom_call.1} parent=5 // pred_region
        %s411 = ssub.s32 %s30, 1
        // Predicated region
        $region13: #{tpu_custom_call.1} parent=11 // pred_check
          %p412 = pneg %p117
        $region14: #{tpu_custom_call.1} parent=11 // pred_check_branch
          %414 = sbr.rel (%p412) target = $region16
        $region15: #{tpu_custom_call.1} parent=11 // pred_region
          _
        $region16: #{tpu_custom_call.1} parent=11 // pred_fallthru
          _
        // Predicated region
        $region17: #{tpu_custom_call.1} parent=11 // pred_check
          %p415 = pneg %p138
        $region18: #{tpu_custom_call.1} parent=11 // pred_check_branch
          %417 = sbr.rel (%p415) target = $region20
        $region19: #{tpu_custom_call.1} parent=11 // pred_region
          _
        $region20: #{tpu_custom_call.1} parent=11 // pred_fallthru
          _
        // Predicated region
        $region21: #{tpu_custom_call.1} parent=11 // pred_check
          %p418 = pneg %p159
        $region22: #{tpu_custom_call.1} parent=11 // pred_check_branch
          %420 = sbr.rel (%p418) target = $region24
        $region23: #{tpu_custom_call.1} parent=11 // pred_region
          _
        $region24: #{tpu_custom_call.1} parent=11 // pred_fallthru
          _
        // Predicated region
        $region25: #{tpu_custom_call.1} parent=11 // pred_check
          %p421 = pneg %p180
        $region26: #{tpu_custom_call.1} parent=11 // pred_check_branch
          %423 = sbr.rel (%p421) target = $region28
        $region27: #{tpu_custom_call.1} parent=11 // pred_region
          _
        $region28: #{tpu_custom_call.1} parent=11 // pred_fallthru
          _
        // Predicated region
        $region29: #{tpu_custom_call.1} parent=11 // pred_check
          %p424 = pneg %p201
        $region30: #{tpu_custom_call.1} parent=11 // pred_check_branch
          %426 = sbr.rel (%p424) target = $region32
        $region31: #{tpu_custom_call.1} parent=11 // pred_region
          _
        $region32: #{tpu_custom_call.1} parent=11 // pred_fallthru
          _
        // Predicated region
        $region33: #{tpu_custom_call.1} parent=11 // pred_check
          %p427 = pneg %p222
        $region34: #{tpu_custom_call.1} parent=11 // pred_check_branch
          %429 = sbr.rel (%p427) target = $region36
        $region35: #{tpu_custom_call.1} parent=11 // pred_region
          _
        $region36: #{tpu_custom_call.1} parent=11 // pred_fallthru
          _
        // Predicated region
        $region37: #{tpu_custom_call.1} parent=11 // pred_check
          %p430 = pneg %p243
        $region38: #{tpu_custom_call.1} parent=11 // pred_check_branch
          %432 = sbr.rel (%p430) target = $region40
        $region39: #{tpu_custom_call.1} parent=11 // pred_region
          _
        $region40: #{tpu_custom_call.1} parent=11 // pred_fallthru
          _
        // Predicated region
        $region41: #{tpu_custom_call.1} parent=11 // pred_check
          %p433 = pneg %p264
        $region42: #{tpu_custom_call.1} parent=11 // pred_check_branch
          %435 = sbr.rel (%p433) target = $region44
        $region43: #{tpu_custom_call.1} parent=11 // pred_region
          _
        $region44: #{tpu_custom_call.1} parent=11 // pred_fallthru
          _
        // Predicated region
        $region45: #{tpu_custom_call.1} parent=11 // pred_check
          %p436 = pneg %p285
        $region46: #{tpu_custom_call.1} parent=11 // pred_check_branch
          %438 = sbr.rel (%p436) target = $region48
        $region47: #{tpu_custom_call.1} parent=11 // pred_region
          _
        $region48: #{tpu_custom_call.1} parent=11 // pred_fallthru
          _
        // Predicated region
        $region49: #{tpu_custom_call.1} parent=11 // pred_check
          %p439 = pneg %p306
        $region50: #{tpu_custom_call.1} parent=11 // pred_check_branch
          %441 = sbr.rel (%p439) target = $region52
        $region51: #{tpu_custom_call.1} parent=11 // pred_region
          _
        $region52: #{tpu_custom_call.1} parent=11 // pred_fallthru
          _
        // Predicated region
        $region53: #{tpu_custom_call.1} parent=11 // pred_check
          %p442 = pneg %p327
        $region54: #{tpu_custom_call.1} parent=11 // pred_check_branch
          %444 = sbr.rel (%p442) target = $region56
        $region55: #{tpu_custom_call.1} parent=11 // pred_region
          _
        $region56: #{tpu_custom_call.1} parent=11 // pred_fallthru
          _
        // Predicated region
        $region57: #{tpu_custom_call.1} parent=11 // pred_check
          %p445 = pneg %p348
        $region58: #{tpu_custom_call.1} parent=11 // pred_check_branch
          %447 = sbr.rel (%p445) target = $region60
        $region59: #{tpu_custom_call.1} parent=11 // pred_region
          _
        $region60: #{tpu_custom_call.1} parent=11 // pred_fallthru
          _
        // Predicated region
        $region61: #{tpu_custom_call.1} parent=11 // pred_check
          %p448 = pneg %p369
        $region62: #{tpu_custom_call.1} parent=11 // pred_check_branch
          %450 = sbr.rel (%p448) target = $region64
        $region63: #{tpu_custom_call.1} parent=11 // pred_region
          _
        $region64: #{tpu_custom_call.1} parent=11 // pred_fallthru
          _
      $region12: #{tpu_custom_call.1} parent=5 // pred_fallthru
        _
      %p451 = scmp.lt.s32.totalorder %s30, 2
      // Predicated region
      $region65: #{tpu_custom_call.1} parent=5 // pred_check
        %p452 = pneg %p451
      $region66: #{tpu_custom_call.1} parent=5 // pred_check_branch
        %454 = sbr.rel (%p452) target = $region68
      $region67: #{tpu_custom_call.1} parent=5 // pred_region
        // Predicated region
        $region69: #{tpu_custom_call.1} parent=67 // pred_check
          %p455 = pneg %p64
        $region70: #{tpu_custom_call.1} parent=67 // pred_check_branch
          %457 = sbr.rel (%p455) target = $region72
        $region71: #{tpu_custom_call.1} parent=67 // pred_region
          %s458 = sand.u32 %s54, 1
          %s459 = scalar_lea.sflag [#allocation7], %s458
          %s460 = sand.u32 %s54, 1
          %s461 = smul.addr %s460, 8
          %s462 = scalar_lea.vmem [#allocation6], %s461
          %464 = vsyncadd %s459, 0
          %s465 = sadd.s32 %s38, %s37
          %s466 = smul.addr %s465, 8
          %s467 = scalar_lea.hbm %s0, %s466
          %s469 = sshll.u32 %s467, 4
          %s470 = int_to_ptr.hbm [resolvable:$true] %s469
          %s471 = sshll.u32 %s462, 4
          %s472 = int_to_ptr.vmem [resolvable:$true] %s471
          %474 = dma.hbm_to_vmem [thread:$0]  %s470, 128, %s472, %s459
        $region72: #{tpu_custom_call.1} parent=67 // pred_fallthru
          _
        // Predicated region
        $region73: #{tpu_custom_call.1} parent=67 // pred_check
          %p475 = pneg %p90
        $region74: #{tpu_custom_call.1} parent=67 // pred_check_branch
          %477 = sbr.rel (%p475) target = $region76
        $region75: #{tpu_custom_call.1} parent=67 // pred_region
          %s478 = sand.u32 %s80, 1
          %s479 = scalar_lea.sflag [#allocation10], %s478
          %s480 = sand.u32 %s80, 1
          %s481 = smul.addr %s480, 8
          %s482 = scalar_lea.vmem [#allocation9], %s481
          %484 = vsyncadd %s479, 0
          %s485 = smul.addr %s37, 8
          %s486 = scalar_lea.hbm %s1, %s485
          %s488 = sshll.u32 %s486, 4
          %s489 = int_to_ptr.hbm [resolvable:$true] %s488
          %s490 = sshll.u32 %s482, 4
          %s491 = int_to_ptr.vmem [resolvable:$true] %s490
          %493 = dma.hbm_to_vmem [thread:$0]  %s489, 128, %s491, %s479
        $region76: #{tpu_custom_call.1} parent=67 // pred_fallthru
          _
      $region68: #{tpu_custom_call.1} parent=5 // pred_fallthru
        _
      %p494 = scmp.le.s32.totalorder 1, %s30
      %p495 = scmp.lt.s32.totalorder %s30, 3
      %p496 = pnand %p494, %p495
      %p497 = pneg %p496
      // Predicated region
      $region77: #{tpu_custom_call.1} parent=5 // pred_check
        _
      $region78: #{tpu_custom_call.1} parent=5 // pred_check_branch
        %499 = sbr.rel (%p496) target = $region80
      $region79: #{tpu_custom_call.1} parent=5 // pred_region
        %s500 = ssub.s32 %s30, 1
        %s501 = sand.u32 %s57, 1
        %s502 = scalar_lea.sflag [#allocation7], %s501
        %s503 = sand.u32 %s57, 1
        %s504 = smul.addr %s503, 8
        %s505 = scalar_lea.vmem [#allocation6], %s504
        // Predicated region
        $region81: #{tpu_custom_call.1} parent=79 // pred_check
          %p506 = pneg %p70
        $region82: #{tpu_custom_call.1} parent=79 // pred_check_branch
          %508 = sbr.rel (%p506) target = $region84
        $region83: #{tpu_custom_call.1} parent=79 // pred_region
          %510 = dma.done %s502, 128
        $region84: #{tpu_custom_call.1} parent=79 // pred_fallthru
          _
        %s511 = sand.u32 %s83, 1
        %s512 = scalar_lea.sflag [#allocation10], %s511
        %s513 = sand.u32 %s83, 1
        %s514 = smul.addr %s513, 8
        %s515 = scalar_lea.vmem [#allocation9], %s514
        // Predicated region
        $region85: #{tpu_custom_call.1} parent=79 // pred_check
          %p516 = pneg %p96
        $region86: #{tpu_custom_call.1} parent=79 // pred_check_branch
          %518 = sbr.rel (%p516) target = $region88
        $region87: #{tpu_custom_call.1} parent=79 // pred_region
          %520 = dma.done %s512, 128
        $region88: #{tpu_custom_call.1} parent=79 // pred_fallthru
          _
        %s521 = sand.u32 %s57, 1
        %s522 = scalar_lea.sflag [#allocation7], %s521
        %s523 = sand.u32 %s57, 1
        %s524 = smul.addr %s523, 8
        %s525 = scalar_lea.vmem [#allocation6], %s524
        %p526 = pneg %p70
        %p527 = pneg %p67
        %s528 = sand.u32 %s83, 1
        %s529 = scalar_lea.sflag [#allocation10], %s528
        %s530 = sand.u32 %s83, 1
        %s531 = smul.addr %s530, 8
        %s532 = scalar_lea.vmem [#allocation9], %s531
        %p533 = pneg %p96
        %p534 = pneg %p93
        %p535 = pneg %p117
        %p536 = pneg %p114
        %p537 = pneg %p138
        %p538 = pneg %p135
        %p539 = pneg %p159
        %p540 = pneg %p156
        %p541 = pneg %p180
        %p542 = pneg %p177
        %p543 = pneg %p201
        %p544 = pneg %p198
        %p545 = pneg %p222
        %p546 = pneg %p219
        %p547 = pneg %p243
        %p548 = pneg %p240
        %p549 = pneg %p264
        %p550 = pneg %p261
        %p551 = pneg %p285
        %p552 = pneg %p282
        %p553 = pneg %p306
        %p554 = pneg %p303
        %p555 = pneg %p327
        %p556 = pneg %p324
        %p557 = pneg %p348
        %p558 = pneg %p345
        %p559 = pneg %p369
        %p560 = pneg %p366
        %p561 = pneg %p397
        %p562 = pneg %p394
        %s563 = sand.u32 %s384, 1
        %s564 = scalar_lea.sflag [#allocation8], %s563
        %s565 = sand.u32 %s384, 1
        %s566 = smul.addr %s565, 8
        %s567 = scalar_lea.vmem [#allocation11], %s566
        %p568 = scmp.eq.s32.totalorder %s40, 0
        // Predicated region
        $region89: #{tpu_custom_call.1} parent=79 // pred_check
          %p569 = pneg %p568
        $region90: #{tpu_custom_call.1} parent=79 // pred_check_branch
          %571 = sbr.rel (%p569) target = $region92
        $region91: #{tpu_custom_call.1} parent=79 // pred_region
          %v572 = vld [vmem:[%s515] sm:$0xff]
          %v573 = vld [vmem:[%s3] sm:$0xff]
          %v574 = vld [vmem:[%s3 + $0x8] sm:$0xff]
          %v575 = vld [vmem:[%s3 + $0x10] sm:$0xff]
          %v576 = vld [vmem:[%s3 + $0x18] sm:$0xff]
          %vm577 = vcmask 261120
          %v579 = vsel %vm577, %v572, 0
          %581 = vmatpush.msra.mxu0 0.0
          %582 = vmatpush.msra.mxu0 0.0
          %583 = vmatpush.msra.mxu0 0.0
          %584 = vmatpush.msra.mxu0 0.0
          %585 = vmatpush.msra.mxu0 0.0
          %586 = vmatpush.msra.mxu0 0.0
          %587 = vmatpush.msra.mxu0 0.0
          %588 = vmatpush.msra.mxu0 0.0
          %589 = vmatpush.msra.mxu0 0.0
          %590 = vmatpush.msra.mxu0 0.0
          %591 = vmatpush.msra.mxu0 0.0
          %592 = vmatpush.msra.mxu0 0.0
          %v593 = vand.u32 %v576, 4294901760
          %594 = vmatpush.msra.mxu0 %v593
          %v595 = vand.u32 %v575, 4294901760
          %596 = vmatpush.msra.mxu0 %v595
          %v597 = vand.u32 %v574, 4294901760
          %598 = vmatpush.msra.mxu0 %v597
          %v599 = vand.u32 %v573, 4294901760
          %600 = vmatpush.msra.mxu0 %v599
          %v601 = vand.u32 %v579, 4294901760
          %v602 = vsub.f32 %v579, %v601
          %v603 = vand.u32 %v602, 4294901760
          %v604 = vsub.f32 %v602, %v603
          %v605 = vand.u32 %v604, 4294901760
          %606 = vmatmul.f32.gmra.mxu0 %v605
          %v607 = vpop.f32.mrf.mxu0
          %v608 = vadd.f32 0.0, %v607
          %609 = vdwg.mxu0
          %610 = vmatpush.msra.mxu0 0.0
          %611 = vmatpush.msra.mxu0 0.0
          %612 = vmatpush.msra.mxu0 0.0
          %613 = vmatpush.msra.mxu0 0.0
          %614 = vmatpush.msra.mxu0 0.0
          %615 = vmatpush.msra.mxu0 0.0
          %616 = vmatpush.msra.mxu0 0.0
          %617 = vmatpush.msra.mxu0 0.0
          %618 = vmatpush.msra.mxu0 0.0
          %619 = vmatpush.msra.mxu0 0.0
          %620 = vmatpush.msra.mxu0 0.0
          %621 = vmatpush.msra.mxu0 0.0
          %v622 = vand.u32 %v576, 4294901760
          %v623 = vsub.f32 %v576, %v622
          %v624 = vand.u32 %v623, 4294901760
          %v625 = vsub.f32 %v623, %v624
          %v626 = vand.u32 %v625, 4294901760
          %627 = vmatpush.msra.mxu0 %v626
          %v628 = vand.u32 %v575, 4294901760
          %v629 = vsub.f32 %v575, %v628
          %v630 = vand.u32 %v629, 4294901760
          %v631 = vsub.f32 %v629, %v630
          %v632 = vand.u32 %v631, 4294901760
          %633 = vmatpush.msra.mxu0 %v632
          %v634 = vand.u32 %v574, 4294901760
          %v635 = vsub.f32 %v574, %v634
          %v636 = vand.u32 %v635, 4294901760
          %v637 = vsub.f32 %v635, %v636
          %v638 = vand.u32 %v637, 4294901760
          %639 = vmatpush.msra.mxu0 %v638
          %v640 = vand.u32 %v573, 4294901760
          %v641 = vsub.f32 %v573, %v640
          %v642 = vand.u32 %v641, 4294901760
          %v643 = vsub.f32 %v641, %v642
          %v644 = vand.u32 %v643, 4294901760
          %645 = vmatpush.msra.mxu0 %v644
          %v646 = vand.u32 %v579, 4294901760
          %647 = vmatmul.f32.gmra.mxu0 %v646
          %v648 = vpop.f32.mrf.mxu0
          %v649 = vadd.f32 %v608, %v648
          %650 = vdwg.mxu0
          %651 = vmatpush.msra.mxu0 0.0
          %652 = vmatpush.msra.mxu0 0.0
          %653 = vmatpush.msra.mxu0 0.0
          %654 = vmatpush.msra.mxu0 0.0
          %655 = vmatpush.msra.mxu0 0.0
          %656 = vmatpush.msra.mxu0 0.0
          %657 = vmatpush.msra.mxu0 0.0
          %658 = vmatpush.msra.mxu0 0.0
          %659 = vmatpush.msra.mxu0 0.0
          %660 = vmatpush.msra.mxu0 0.0
          %661 = vmatpush.msra.mxu0 0.0
          %662 = vmatpush.msra.mxu0 0.0
          %v663 = vand.u32 %v576, 4294901760
          %v664 = vsub.f32 %v576, %v663
          %665 = vmatpush.msra.mxu0 %v664
          %v666 = vand.u32 %v575, 4294901760
          %v667 = vsub.f32 %v575, %v666
          %668 = vmatpush.msra.mxu0 %v667
          %v669 = vand.u32 %v574, 4294901760
          %v670 = vsub.f32 %v574, %v669
          %671 = vmatpush.msra.mxu0 %v670
          %v672 = vand.u32 %v573, 4294901760
          %v673 = vsub.f32 %v573, %v672
          %674 = vmatpush.msra.mxu0 %v673
          %v675 = vand.u32 %v579, 4294901760
          %v676 = vsub.f32 %v579, %v675
          %677 = vmatmul.f32.gmra.mxu0 %v676
          %v678 = vpop.f32.mrf.mxu0
          %v679 = vadd.f32 %v649, %v678
          %680 = vdwg.mxu0
          %681 = vmatpush.msra.mxu0 0.0
          %682 = vmatpush.msra.mxu0 0.0
          %683 = vmatpush.msra.mxu0 0.0
          %684 = vmatpush.msra.mxu0 0.0
          %685 = vmatpush.msra.mxu0 0.0
          %686 = vmatpush.msra.mxu0 0.0
          %687 = vmatpush.msra.mxu0 0.0
          %688 = vmatpush.msra.mxu0 0.0
          %689 = vmatpush.msra.mxu0 0.0
          %690 = vmatpush.msra.mxu0 0.0
          %691 = vmatpush.msra.mxu0 0.0
          %692 = vmatpush.msra.mxu0 0.0
          %v693 = vand.u32 %v576, 4294901760
          %694 = vmatpush.msra.mxu0 %v693
          %v695 = vand.u32 %v575, 4294901760
          %696 = vmatpush.msra.mxu0 %v695
          %v697 = vand.u32 %v574, 4294901760
          %698 = vmatpush.msra.mxu0 %v697
          %v699 = vand.u32 %v573, 4294901760
          %700 = vmatpush.msra.mxu0 %v699
          %v701 = vand.u32 %v579, 4294901760
          %v702 = vsub.f32 %v579, %v701
          %v703 = vand.u32 %v702, 4294901760
          %704 = vmatmul.f32.gmra.mxu0 %v703
          %v705 = vpop.f32.mrf.mxu0
          %v706 = vadd.f32 %v679, %v705
          %707 = vdwg.mxu0
          %708 = vmatpush.msra.mxu0 0.0
          %709 = vmatpush.msra.mxu0 0.0
          %710 = vmatpush.msra.mxu0 0.0
          %711 = vmatpush.msra.mxu0 0.0
          %712 = vmatpush.msra.mxu0 0.0
          %713 = vmatpush.msra.mxu0 0.0
          %714 = vmatpush.msra.mxu0 0.0
          %715 = vmatpush.msra.mxu0 0.0
          %716 = vmatpush.msra.mxu0 0.0
          %717 = vmatpush.msra.mxu0 0.0
          %718 = vmatpush.msra.mxu0 0.0
          %719 = vmatpush.msra.mxu0 0.0
          %v720 = vand.u32 %v576, 4294901760
          %v721 = vsub.f32 %v576, %v720
          %v722 = vand.u32 %v721, 4294901760
          %723 = vmatpush.msra.mxu0 %v722
          %v724 = vand.u32 %v575, 4294901760
          %v725 = vsub.f32 %v575, %v724
          %v726 = vand.u32 %v725, 4294901760
          %727 = vmatpush.msra.mxu0 %v726
          %v728 = vand.u32 %v574, 4294901760
          %v729 = vsub.f32 %v574, %v728
          %v730 = vand.u32 %v729, 4294901760
          %731 = vmatpush.msra.mxu0 %v730
          %v732 = vand.u32 %v573, 4294901760
          %v733 = vsub.f32 %v573, %v732
          %v734 = vand.u32 %v733, 4294901760
          %735 = vmatpush.msra.mxu0 %v734
          %v736 = vand.u32 %v579, 4294901760
          %737 = vmatmul.f32.gmra.mxu0 %v736
          %v738 = vpop.f32.mrf.mxu0
          %v739 = vadd.f32 %v706, %v738
          %740 = vdwg.mxu0
          %741 = vmatpush.msra.mxu0 0.0
          %742 = vmatpush.msra.mxu0 0.0
          %743 = vmatpush.msra.mxu0 0.0
          %744 = vmatpush.msra.mxu0 0.0
          %745 = vmatpush.msra.mxu0 0.0
          %746 = vmatpush.msra.mxu0 0.0
          %747 = vmatpush.msra.mxu0 0.0
          %748 = vmatpush.msra.mxu0 0.0
          %749 = vmatpush.msra.mxu0 0.0
          %750 = vmatpush.msra.mxu0 0.0
          %751 = vmatpush.msra.mxu0 0.0
          %752 = vmatpush.msra.mxu0 0.0
          %v753 = vand.u32 %v576, 4294901760
          %754 = vmatpush.msra.mxu0 %v753
          %v755 = vand.u32 %v575, 4294901760
          %756 = vmatpush.msra.mxu0 %v755
          %v757 = vand.u32 %v574, 4294901760
          %758 = vmatpush.msra.mxu0 %v757
          %v759 = vand.u32 %v573, 4294901760
          %760 = vmatpush.msra.mxu0 %v759
          %v761 = vand.u32 %v579, 4294901760
          %762 = vmatmul.f32.gmra.mxu0 %v761
          %v763 = vpop.f32.mrf.mxu0
          %v764 = vadd.f32 %v739, %v763
          %765 = vdwg.mxu0
          %766 = vst.msk [vmem:[#allocation2] sm:$0xff] %vm577, %v764
          %v767 = vld [vmem:[%s4] sm:$0xff]
          %v768 = vld [vmem:[%s4 + $0x8] sm:$0xff]
          %v769 = vld [vmem:[%s4 + $0x10] sm:$0xff]
          %v770 = vld [vmem:[%s4 + $0x18] sm:$0xff]
          %771 = vmatpush.msra.mxu0 0.0
          %772 = vmatpush.msra.mxu0 0.0
          %773 = vmatpush.msra.mxu0 0.0
          %774 = vmatpush.msra.mxu0 0.0
          %775 = vmatpush.msra.mxu0 0.0
          %776 = vmatpush.msra.mxu0 0.0
          %777 = vmatpush.msra.mxu0 0.0
          %778 = vmatpush.msra.mxu0 0.0
          %779 = vmatpush.msra.mxu0 0.0
          %780 = vmatpush.msra.mxu0 0.0
          %781 = vmatpush.msra.mxu0 0.0
          %782 = vmatpush.msra.mxu0 0.0
          %v783 = vand.u32 %v770, 4294901760
          %784 = vmatpush.msra.mxu0 %v783
          %v785 = vand.u32 %v769, 4294901760
          %786 = vmatpush.msra.mxu0 %v785
          %v787 = vand.u32 %v768, 4294901760
          %788 = vmatpush.msra.mxu0 %v787
          %v789 = vand.u32 %v767, 4294901760
          %790 = vmatpush.msra.mxu0 %v789
          %v791 = vand.u32 %v579, 4294901760
          %v792 = vsub.f32 %v579, %v791
          %v793 = vand.u32 %v792, 4294901760
          %v794 = vsub.f32 %v792, %v793
          %v795 = vand.u32 %v794, 4294901760
          %796 = vmatmul.f32.gmra.mxu0 %v795
          %v797 = vpop.f32.mrf.mxu0
          %v798 = vadd.f32 0.0, %v797
          %799 = vdwg.mxu0
          %800 = vmatpush.msra.mxu0 0.0
          %801 = vmatpush.msra.mxu0 0.0
          %802 = vmatpush.msra.mxu0 0.0
          %803 = vmatpush.msra.mxu0 0.0
          %804 = vmatpush.msra.mxu0 0.0
          %805 = vmatpush.msra.mxu0 0.0
          %806 = vmatpush.msra.mxu0 0.0
          %807 = vmatpush.msra.mxu0 0.0
          %808 = vmatpush.msra.mxu0 0.0
          %809 = vmatpush.msra.mxu0 0.0
          %810 = vmatpush.msra.mxu0 0.0
          %811 = vmatpush.msra.mxu0 0.0
          %v812 = vand.u32 %v770, 4294901760
          %v813 = vsub.f32 %v770, %v812
          %v814 = vand.u32 %v813, 4294901760
          %v815 = vsub.f32 %v813, %v814
          %v816 = vand.u32 %v815, 4294901760
          %817 = vmatpush.msra.mxu0 %v816
          %v818 = vand.u32 %v769, 4294901760
          %v819 = vsub.f32 %v769, %v818
          %v820 = vand.u32 %v819, 4294901760
          %v821 = vsub.f32 %v819, %v820
          %v822 = vand.u32 %v821, 4294901760
          %823 = vmatpush.msra.mxu0 %v822
          %v824 = vand.u32 %v768, 4294901760
          %v825 = vsub.f32 %v768, %v824
          %v826 = vand.u32 %v825, 4294901760
          %v827 = vsub.f32 %v825, %v826
          %v828 = vand.u32 %v827, 4294901760
          %829 = vmatpush.msra.mxu0 %v828
          %v830 = vand.u32 %v767, 4294901760
          %v831 = vsub.f32 %v767, %v830
          %v832 = vand.u32 %v831, 4294901760
          %v833 = vsub.f32 %v831, %v832
          %v834 = vand.u32 %v833, 4294901760
          %835 = vmatpush.msra.mxu0 %v834
          %v836 = vand.u32 %v579, 4294901760
          %837 = vmatmul.f32.gmra.mxu0 %v836
          %v838 = vpop.f32.mrf.mxu0
          %v839 = vadd.f32 %v798, %v838
          %840 = vdwg.mxu0
          %841 = vmatpush.msra.mxu0 0.0
          %842 = vmatpush.msra.mxu0 0.0
          %843 = vmatpush.msra.mxu0 0.0
          %844 = vmatpush.msra.mxu0 0.0
          %845 = vmatpush.msra.mxu0 0.0
          %846 = vmatpush.msra.mxu0 0.0
          %847 = vmatpush.msra.mxu0 0.0
          %848 = vmatpush.msra.mxu0 0.0
          %849 = vmatpush.msra.mxu0 0.0
          %850 = vmatpush.msra.mxu0 0.0
          %851 = vmatpush.msra.mxu0 0.0
          %852 = vmatpush.msra.mxu0 0.0
          %v853 = vand.u32 %v770, 4294901760
          %v854 = vsub.f32 %v770, %v853
          %855 = vmatpush.msra.mxu0 %v854
          %v856 = vand.u32 %v769, 4294901760
          %v857 = vsub.f32 %v769, %v856
          %858 = vmatpush.msra.mxu0 %v857
          %v859 = vand.u32 %v768, 4294901760
          %v860 = vsub.f32 %v768, %v859
          %861 = vmatpush.msra.mxu0 %v860
          %v862 = vand.u32 %v767, 4294901760
          %v863 = vsub.f32 %v767, %v862
          %864 = vmatpush.msra.mxu0 %v863
          %v865 = vand.u32 %v579, 4294901760
          %v866 = vsub.f32 %v579, %v865
          %867 = vmatmul.f32.gmra.mxu0 %v866
          %v868 = vpop.f32.mrf.mxu0
          %v869 = vadd.f32 %v839, %v868
          %870 = vdwg.mxu0
          %871 = vmatpush.msra.mxu0 0.0
          %872 = vmatpush.msra.mxu0 0.0
          %873 = vmatpush.msra.mxu0 0.0
          %874 = vmatpush.msra.mxu0 0.0
          %875 = vmatpush.msra.mxu0 0.0
          %876 = vmatpush.msra.mxu0 0.0
          %877 = vmatpush.msra.mxu0 0.0
          %878 = vmatpush.msra.mxu0 0.0
          %879 = vmatpush.msra.mxu0 0.0
          %880 = vmatpush.msra.mxu0 0.0
          %881 = vmatpush.msra.mxu0 0.0
          %882 = vmatpush.msra.mxu0 0.0
          %v883 = vand.u32 %v770, 4294901760
          %884 = vmatpush.msra.mxu0 %v883
          %v885 = vand.u32 %v769, 4294901760
          %886 = vmatpush.msra.mxu0 %v885
          %v887 = vand.u32 %v768, 4294901760
          %888 = vmatpush.msra.mxu0 %v887
          %v889 = vand.u32 %v767, 4294901760
          %890 = vmatpush.msra.mxu0 %v889
          %v891 = vand.u32 %v579, 4294901760
          %v892 = vsub.f32 %v579, %v891
          %v893 = vand.u32 %v892, 4294901760
          %894 = vmatmul.f32.gmra.mxu0 %v893
          %v895 = vpop.f32.mrf.mxu0
          %v896 = vadd.f32 %v869, %v895
          %897 = vdwg.mxu0
          %898 = vmatpush.msra.mxu0 0.0
          %899 = vmatpush.msra.mxu0 0.0
          %900 = vmatpush.msra.mxu0 0.0
          %901 = vmatpush.msra.mxu0 0.0
          %902 = vmatpush.msra.mxu0 0.0
          %903 = vmatpush.msra.mxu0 0.0
          %904 = vmatpush.msra.mxu0 0.0
          %905 = vmatpush.msra.mxu0 0.0
          %906 = vmatpush.msra.mxu0 0.0
          %907 = vmatpush.msra.mxu0 0.0
          %908 = vmatpush.msra.mxu0 0.0
          %909 = vmatpush.msra.mxu0 0.0
          %v910 = vand.u32 %v770, 4294901760
          %v911 = vsub.f32 %v770, %v910
          %v912 = vand.u32 %v911, 4294901760
          %913 = vmatpush.msra.mxu0 %v912
          %v914 = vand.u32 %v769, 4294901760
          %v915 = vsub.f32 %v769, %v914
          %v916 = vand.u32 %v915, 4294901760
          %917 = vmatpush.msra.mxu0 %v916
          %v918 = vand.u32 %v768, 4294901760
          %v919 = vsub.f32 %v768, %v918
          %v920 = vand.u32 %v919, 4294901760
          %921 = vmatpush.msra.mxu0 %v920
          %v922 = vand.u32 %v767, 4294901760
          %v923 = vsub.f32 %v767, %v922
          %v924 = vand.u32 %v923, 4294901760
          %925 = vmatpush.msra.mxu0 %v924
          %v926 = vand.u32 %v579, 4294901760
          %927 = vmatmul.f32.gmra.mxu0 %v926
          %v928 = vpop.f32.mrf.mxu0
          %v929 = vadd.f32 %v896, %v928
          %930 = vdwg.mxu0
          %931 = vmatpush.msra.mxu0 0.0
          %932 = vmatpush.msra.mxu0 0.0
          %933 = vmatpush.msra.mxu0 0.0
          %934 = vmatpush.msra.mxu0 0.0
          %935 = vmatpush.msra.mxu0 0.0
          %936 = vmatpush.msra.mxu0 0.0
          %937 = vmatpush.msra.mxu0 0.0
          %938 = vmatpush.msra.mxu0 0.0
          %939 = vmatpush.msra.mxu0 0.0
          %940 = vmatpush.msra.mxu0 0.0
          %941 = vmatpush.msra.mxu0 0.0
          %942 = vmatpush.msra.mxu0 0.0
          %v943 = vand.u32 %v770, 4294901760
          %944 = vmatpush.msra.mxu0 %v943
          %v945 = vand.u32 %v769, 4294901760
          %946 = vmatpush.msra.mxu0 %v945
          %v947 = vand.u32 %v768, 4294901760
          %948 = vmatpush.msra.mxu0 %v947
          %v949 = vand.u32 %v767, 4294901760
          %950 = vmatpush.msra.mxu0 %v949
          %v951 = vand.u32 %v579, 4294901760
          %952 = vmatmul.f32.gmra.mxu0 %v951
          %v953 = vpop.f32.mrf.mxu0
          %v954 = vadd.f32 %v929, %v953
          %955 = vdwg.mxu0
          %956 = vst.msk [vmem:[#allocation3] sm:$0xff] %vm577, %v954
        $region92: #{tpu_custom_call.1} parent=79 // pred_fallthru
          _
        %v957 = vld [vmem:[%s505] sm:$0xff]
        %v958 = vld [vmem:[%s2] sm:$0xff]
        %v959 = vld [vmem:[%s2 + $0x8] sm:$0xff]
        %v960 = vld [vmem:[%s2 + $0x10] sm:$0xff]
        %v961 = vld [vmem:[%s2 + $0x18] sm:$0xff]
        %vm962 = vcmask 261120
        %v964 = vsel %vm962, %v957, 0
        %966 = vmatpush.msra.mxu0 0.0
        %967 = vmatpush.msra.mxu0 0.0
        %968 = vmatpush.msra.mxu0 0.0
        %969 = vmatpush.msra.mxu0 0.0
        %970 = vmatpush.msra.mxu0 0.0
        %971 = vmatpush.msra.mxu0 0.0
        %972 = vmatpush.msra.mxu0 0.0
        %973 = vmatpush.msra.mxu0 0.0
        %974 = vmatpush.msra.mxu0 0.0
        %975 = vmatpush.msra.mxu0 0.0
        %976 = vmatpush.msra.mxu0 0.0
        %977 = vmatpush.msra.mxu0 0.0
        %v978 = vand.u32 %v961, 4294901760
        %979 = vmatpush.msra.mxu0 %v978
        %v980 = vand.u32 %v960, 4294901760
        %981 = vmatpush.msra.mxu0 %v980
        %v982 = vand.u32 %v959, 4294901760
        %983 = vmatpush.msra.mxu0 %v982
        %v984 = vand.u32 %v958, 4294901760
        %985 = vmatpush.msra.mxu0 %v984
        %v986 = vand.u32 %v964, 4294901760
        %v987 = vsub.f32 %v964, %v986
        %v988 = vand.u32 %v987, 4294901760
        %v989 = vsub.f32 %v987, %v988
        %v990 = vand.u32 %v989, 4294901760
        %991 = vmatmul.f32.gmra.mxu0 %v990
        %v992 = vpop.f32.mrf.mxu0
        %v993 = vadd.f32 0.0, %v992
        %994 = vdwg.mxu0
        %995 = vmatpush.msra.mxu0 0.0
        %996 = vmatpush.msra.mxu0 0.0
        %997 = vmatpush.msra.mxu0 0.0
        %998 = vmatpush.msra.mxu0 0.0
        %999 = vmatpush.msra.mxu0 0.0
        %1000 = vmatpush.msra.mxu0 0.0
        %1001 = vmatpush.msra.mxu0 0.0
        %1002 = vmatpush.msra.mxu0 0.0
        %1003 = vmatpush.msra.mxu0 0.0
        %1004 = vmatpush.msra.mxu0 0.0
        %1005 = vmatpush.msra.mxu0 0.0
        %1006 = vmatpush.msra.mxu0 0.0
        %v1007 = vand.u32 %v961, 4294901760
        %v1008 = vsub.f32 %v961, %v1007
        %v1009 = vand.u32 %v1008, 4294901760
        %v1010 = vsub.f32 %v1008, %v1009
        %v1011 = vand.u32 %v1010, 4294901760
        %1012 = vmatpush.msra.mxu0 %v1011
        %v1013 = vand.u32 %v960, 4294901760
        %v1014 = vsub.f32 %v960, %v1013
        %v1015 = vand.u32 %v1014, 4294901760
        %v1016 = vsub.f32 %v1014, %v1015
        %v1017 = vand.u32 %v1016, 4294901760
        %1018 = vmatpush.msra.mxu0 %v1017
        %v1019 = vand.u32 %v959, 4294901760
        %v1020 = vsub.f32 %v959, %v1019
        %v1021 = vand.u32 %v1020, 4294901760
        %v1022 = vsub.f32 %v1020, %v1021
        %v1023 = vand.u32 %v1022, 4294901760
        %1024 = vmatpush.msra.mxu0 %v1023
        %v1025 = vand.u32 %v958, 4294901760
        %v1026 = vsub.f32 %v958, %v1025
        %v1027 = vand.u32 %v1026, 4294901760
        %v1028 = vsub.f32 %v1026, %v1027
        %v1029 = vand.u32 %v1028, 4294901760
        %1030 = vmatpush.msra.mxu0 %v1029
        %v1031 = vand.u32 %v964, 4294901760
        %1032 = vmatmul.f32.gmra.mxu0 %v1031
        %v1033 = vpop.f32.mrf.mxu0
        %v1034 = vadd.f32 %v993, %v1033
        %1035 = vdwg.mxu0
        %1036 = vmatpush.msra.mxu0 0.0
        %1037 = vmatpush.msra.mxu0 0.0
        %1038 = vmatpush.msra.mxu0 0.0
        %1039 = vmatpush.msra.mxu0 0.0
        %1040 = vmatpush.msra.mxu0 0.0
        %1041 = vmatpush.msra.mxu0 0.0
        %1042 = vmatpush.msra.mxu0 0.0
        %1043 = vmatpush.msra.mxu0 0.0
        %1044 = vmatpush.msra.mxu0 0.0
        %1045 = vmatpush.msra.mxu0 0.0
        %1046 = vmatpush.msra.mxu0 0.0
        %1047 = vmatpush.msra.mxu0 0.0
        %v1048 = vand.u32 %v961, 4294901760
        %v1049 = vsub.f32 %v961, %v1048
        %1050 = vmatpush.msra.mxu0 %v1049
        %v1051 = vand.u32 %v960, 4294901760
        %v1052 = vsub.f32 %v960, %v1051
        %1053 = vmatpush.msra.mxu0 %v1052
        %v1054 = vand.u32 %v959, 4294901760
        %v1055 = vsub.f32 %v959, %v1054
        %1056 = vmatpush.msra.mxu0 %v1055
        %v1057 = vand.u32 %v958, 4294901760
        %v1058 = vsub.f32 %v958, %v1057
        %1059 = vmatpush.msra.mxu0 %v1058
        %v1060 = vand.u32 %v964, 4294901760
        %v1061 = vsub.f32 %v964, %v1060
        %1062 = vmatmul.f32.gmra.mxu0 %v1061
        %v1063 = vpop.f32.mrf.mxu0
        %v1064 = vadd.f32 %v1034, %v1063
        %1065 = vdwg.mxu0
        %1066 = vmatpush.msra.mxu0 0.0
        %1067 = vmatpush.msra.mxu0 0.0
        %1068 = vmatpush.msra.mxu0 0.0
        %1069 = vmatpush.msra.mxu0 0.0
        %1070 = vmatpush.msra.mxu0 0.0
        %1071 = vmatpush.msra.mxu0 0.0
        %1072 = vmatpush.msra.mxu0 0.0
        %1073 = vmatpush.msra.mxu0 0.0
        %1074 = vmatpush.msra.mxu0 0.0
        %1075 = vmatpush.msra.mxu0 0.0
        %1076 = vmatpush.msra.mxu0 0.0
        %1077 = vmatpush.msra.mxu0 0.0
        %v1078 = vand.u32 %v961, 4294901760
        %1079 = vmatpush.msra.mxu0 %v1078
        %v1080 = vand.u32 %v960, 4294901760
        %1081 = vmatpush.msra.mxu0 %v1080
        %v1082 = vand.u32 %v959, 4294901760
        %1083 = vmatpush.msra.mxu0 %v1082
        %v1084 = vand.u32 %v958, 4294901760
        %1085 = vmatpush.msra.mxu0 %v1084
        %v1086 = vand.u32 %v964, 4294901760
        %v1087 = vsub.f32 %v964, %v1086
        %v1088 = vand.u32 %v1087, 4294901760
        %1089 = vmatmul.f32.gmra.mxu0 %v1088
        %v1090 = vpop.f32.mrf.mxu0
        %v1091 = vadd.f32 %v1064, %v1090
        %1092 = vdwg.mxu0
        %1093 = vmatpush.msra.mxu0 0.0
        %1094 = vmatpush.msra.mxu0 0.0
        %1095 = vmatpush.msra.mxu0 0.0
        %1096 = vmatpush.msra.mxu0 0.0
        %1097 = vmatpush.msra.mxu0 0.0
        %1098 = vmatpush.msra.mxu0 0.0
        %1099 = vmatpush.msra.mxu0 0.0
        %1100 = vmatpush.msra.mxu0 0.0
        %1101 = vmatpush.msra.mxu0 0.0
        %1102 = vmatpush.msra.mxu0 0.0
        %1103 = vmatpush.msra.mxu0 0.0
        %1104 = vmatpush.msra.mxu0 0.0
        %v1105 = vand.u32 %v961, 4294901760
        %v1106 = vsub.f32 %v961, %v1105
        %v1107 = vand.u32 %v1106, 4294901760
        %1108 = vmatpush.msra.mxu0 %v1107
        %v1109 = vand.u32 %v960, 4294901760
        %v1110 = vsub.f32 %v960, %v1109
        %v1111 = vand.u32 %v1110, 4294901760
        %1112 = vmatpush.msra.mxu0 %v1111
        %v1113 = vand.u32 %v959, 4294901760
        %v1114 = vsub.f32 %v959, %v1113
        %v1115 = vand.u32 %v1114, 4294901760
        %1116 = vmatpush.msra.mxu0 %v1115
        %v1117 = vand.u32 %v958, 4294901760
        %v1118 = vsub.f32 %v958, %v1117
        %v1119 = vand.u32 %v1118, 4294901760
        %1120 = vmatpush.msra.mxu0 %v1119
        %v1121 = vand.u32 %v964, 4294901760
        %1122 = vmatmul.f32.gmra.mxu0 %v1121
        %v1123 = vpop.f32.mrf.mxu0
        %v1124 = vadd.f32 %v1091, %v1123
        %1125 = vdwg.mxu0
        %1126 = vmatpush.msra.mxu0 0.0
        %1127 = vmatpush.msra.mxu0 0.0
        %1128 = vmatpush.msra.mxu0 0.0
        %1129 = vmatpush.msra.mxu0 0.0
        %1130 = vmatpush.msra.mxu0 0.0
        %1131 = vmatpush.msra.mxu0 0.0
        %1132 = vmatpush.msra.mxu0 0.0
        %1133 = vmatpush.msra.mxu0 0.0
        %1134 = vmatpush.msra.mxu0 0.0
        %1135 = vmatpush.msra.mxu0 0.0
        %1136 = vmatpush.msra.mxu0 0.0
        %1137 = vmatpush.msra.mxu0 0.0
        %v1138 = vand.u32 %v961, 4294901760
        %1139 = vmatpush.msra.mxu0 %v1138
        %v1140 = vand.u32 %v960, 4294901760
        %1141 = vmatpush.msra.mxu0 %v1140
        %v1142 = vand.u32 %v959, 4294901760
        %1143 = vmatpush.msra.mxu0 %v1142
        %v1144 = vand.u32 %v958, 4294901760
        %1145 = vmatpush.msra.mxu0 %v1144
        %v1146 = vand.u32 %v964, 4294901760
        %1147 = vmatmul.f32.gmra.mxu0 %v1146
        %v1148 = vpop.f32.mrf.mxu0
        %v1149 = vadd.f32 %v1124, %v1148
        %1150 = vdwg.mxu0
        %1151 = vst.msk [vmem:[#allocation4] sm:$0xff] %vm962, %v1149
        %v1152 = vld [vmem:[#allocation4] sm:$0xff]
        %v1153 = vld [vmem:[#allocation2] sm:$0xff]
        %v1154 = vld [vmem:[#allocation3] sm:$0xff]
        %vm1155 = vcmask 64512
        %v1157 = vsel %vm1155, %v1152, 0
        %v1160 = vsel %vm1155, %v1153, 0
        %1162 = vmatpush.xpose.msra.mxu0 0.0
        %1163 = vmatpush.xpose.msra.mxu0 0.0
        %1164 = vmatpush.xpose.msra.mxu0 0.0
        %1165 = vmatpush.xpose.msra.mxu0 0.0
        %1166 = vmatpush.xpose.msra.mxu0 0.0
        %1167 = vmatpush.xpose.msra.mxu0 0.0
        %1168 = vmatpush.xpose.msra.mxu0 0.0
        %1169 = vmatpush.xpose.msra.mxu0 0.0
        %1170 = vmatpush.xpose.msra.mxu0 0.0
        %1171 = vmatpush.xpose.msra.mxu0 0.0
        %1172 = vmatpush.xpose.msra.mxu0 0.0
        %1173 = vmatpush.xpose.msra.mxu0 0.0
        %1174 = vmatpush.xpose.msra.mxu0 0.0
        %1175 = vmatpush.xpose.msra.mxu0 0.0
        %1176 = vmatpush.xpose.msra.mxu0 0.0
        %v1177 = vand.u32 %v1160, 4294901760
        %1178 = vmatpush.xpose.msra.mxu0 %v1177
        %v1179 = vand.u32 %v1157, 4294901760
        %v1180 = vsub.f32 %v1157, %v1179
        %v1181 = vand.u32 %v1180, 4294901760
        %v1182 = vsub.f32 %v1180, %v1181
        %v1183 = vand.u32 %v1182, 4294901760
        %1184 = vmatmul.f32.gmra.mxu0 %v1183
        %v1185 = vpop.f32.mrf.mxu0
        %v1186 = vadd.f32 0.0, %v1185
        %1187 = vdwg.mxu0
        %1188 = vmatpush.xpose.msra.mxu0 0.0
        %1189 = vmatpush.xpose.msra.mxu0 0.0
        %1190 = vmatpush.xpose.msra.mxu0 0.0
        %1191 = vmatpush.xpose.msra.mxu0 0.0
        %1192 = vmatpush.xpose.msra.mxu0 0.0
        %1193 = vmatpush.xpose.msra.mxu0 0.0
        %1194 = vmatpush.xpose.msra.mxu0 0.0
        %1195 = vmatpush.xpose.msra.mxu0 0.0
        %1196 = vmatpush.xpose.msra.mxu0 0.0
        %1197 = vmatpush.xpose.msra.mxu0 0.0
        %1198 = vmatpush.xpose.msra.mxu0 0.0
        %1199 = vmatpush.xpose.msra.mxu0 0.0
        %1200 = vmatpush.xpose.msra.mxu0 0.0
        %1201 = vmatpush.xpose.msra.mxu0 0.0
        %1202 = vmatpush.xpose.msra.mxu0 0.0
        %v1203 = vand.u32 %v1160, 4294901760
        %v1204 = vsub.f32 %v1160, %v1203
        %v1205 = vand.u32 %v1204, 4294901760
        %v1206 = vsub.f32 %v1204, %v1205
        %v1207 = vand.u32 %v1206, 4294901760
        %1208 = vmatpush.xpose.msra.mxu0 %v1207
        %v1209 = vand.u32 %v1157, 4294901760
        %1210 = vmatmul.f32.gmra.mxu0 %v1209
        %v1211 = vpop.f32.mrf.mxu0
        %v1212 = vadd.f32 %v1186, %v1211
        %1213 = vdwg.mxu0
        %1214 = vmatpush.xpose.msra.mxu0 0.0
        %1215 = vmatpush.xpose.msra.mxu0 0.0
        %1216 = vmatpush.xpose.msra.mxu0 0.0
        %1217 = vmatpush.xpose.msra.mxu0 0.0
        %1218 = vmatpush.xpose.msra.mxu0 0.0
        %1219 = vmatpush.xpose.msra.mxu0 0.0
        %1220 = vmatpush.xpose.msra.mxu0 0.0
        %1221 = vmatpush.xpose.msra.mxu0 0.0
        %1222 = vmatpush.xpose.msra.mxu0 0.0
        %1223 = vmatpush.xpose.msra.mxu0 0.0
        %1224 = vmatpush.xpose.msra.mxu0 0.0
        %1225 = vmatpush.xpose.msra.mxu0 0.0
        %1226 = vmatpush.xpose.msra.mxu0 0.0
        %1227 = vmatpush.xpose.msra.mxu0 0.0
        %1228 = vmatpush.xpose.msra.mxu0 0.0
        %v1229 = vand.u32 %v1160, 4294901760
        %v1230 = vsub.f32 %v1160, %v1229
        %1231 = vmatpush.xpose.msra.mxu0 %v1230
        %v1232 = vand.u32 %v1157, 4294901760
        %v1233 = vsub.f32 %v1157, %v1232
        %1234 = vmatmul.f32.gmra.mxu0 %v1233
        %v1235 = vpop.f32.mrf.mxu0
        %v1236 = vadd.f32 %v1212, %v1235
        %1237 = vdwg.mxu0
        %1238 = vmatpush.xpose.msra.mxu0 0.0
        %1239 = vmatpush.xpose.msra.mxu0 0.0
        %1240 = vmatpush.xpose.msra.mxu0 0.0
        %1241 = vmatpush.xpose.msra.mxu0 0.0
        %1242 = vmatpush.xpose.msra.mxu0 0.0
        %1243 = vmatpush.xpose.msra.mxu0 0.0
        %1244 = vmatpush.xpose.msra.mxu0 0.0
        %1245 = vmatpush.xpose.msra.mxu0 0.0
        %1246 = vmatpush.xpose.msra.mxu0 0.0
        %1247 = vmatpush.xpose.msra.mxu0 0.0
        %1248 = vmatpush.xpose.msra.mxu0 0.0
        %1249 = vmatpush.xpose.msra.mxu0 0.0
        %1250 = vmatpush.xpose.msra.mxu0 0.0
        %1251 = vmatpush.xpose.msra.mxu0 0.0
        %1252 = vmatpush.xpose.msra.mxu0 0.0
        %v1253 = vand.u32 %v1160, 4294901760
        %1254 = vmatpush.xpose.msra.mxu0 %v1253
        %v1255 = vand.u32 %v1157, 4294901760
        %v1256 = vsub.f32 %v1157, %v1255
        %v1257 = vand.u32 %v1256, 4294901760
        %1258 = vmatmul.f32.gmra.mxu0 %v1257
        %v1259 = vpop.f32.mrf.mxu0
        %v1260 = vadd.f32 %v1236, %v1259
        %1261 = vdwg.mxu0
        %1262 = vmatpush.xpose.msra.mxu0 0.0
        %1263 = vmatpush.xpose.msra.mxu0 0.0
        %1264 = vmatpush.xpose.msra.mxu0 0.0
        %1265 = vmatpush.xpose.msra.mxu0 0.0
        %1266 = vmatpush.xpose.msra.mxu0 0.0
        %1267 = vmatpush.xpose.msra.mxu0 0.0
        %1268 = vmatpush.xpose.msra.mxu0 0.0
        %1269 = vmatpush.xpose.msra.mxu0 0.0
        %1270 = vmatpush.xpose.msra.mxu0 0.0
        %1271 = vmatpush.xpose.msra.mxu0 0.0
        %1272 = vmatpush.xpose.msra.mxu0 0.0
        %1273 = vmatpush.xpose.msra.mxu0 0.0
        %1274 = vmatpush.xpose.msra.mxu0 0.0
        %1275 = vmatpush.xpose.msra.mxu0 0.0
        %1276 = vmatpush.xpose.msra.mxu0 0.0
        %v1277 = vand.u32 %v1160, 4294901760
        %v1278 = vsub.f32 %v1160, %v1277
        %v1279 = vand.u32 %v1278, 4294901760
        %1280 = vmatpush.xpose.msra.mxu0 %v1279
        %v1281 = vand.u32 %v1157, 4294901760
        %1282 = vmatmul.f32.gmra.mxu0 %v1281
        %v1283 = vpop.f32.mrf.mxu0
        %v1284 = vadd.f32 %v1260, %v1283
        %1285 = vdwg.mxu0
        %1286 = vmatpush.xpose.msra.mxu0 0.0
        %1287 = vmatpush.xpose.msra.mxu0 0.0
        %1288 = vmatpush.xpose.msra.mxu0 0.0
        %1289 = vmatpush.xpose.msra.mxu0 0.0
        %1290 = vmatpush.xpose.msra.mxu0 0.0
        %1291 = vmatpush.xpose.msra.mxu0 0.0
        %1292 = vmatpush.xpose.msra.mxu0 0.0
        %1293 = vmatpush.xpose.msra.mxu0 0.0
        %1294 = vmatpush.xpose.msra.mxu0 0.0
        %1295 = vmatpush.xpose.msra.mxu0 0.0
        %1296 = vmatpush.xpose.msra.mxu0 0.0
        %1297 = vmatpush.xpose.msra.mxu0 0.0
        %1298 = vmatpush.xpose.msra.mxu0 0.0
        %1299 = vmatpush.xpose.msra.mxu0 0.0
        %1300 = vmatpush.xpose.msra.mxu0 0.0
        %v1301 = vand.u32 %v1160, 4294901760
        %1302 = vmatpush.xpose.msra.mxu0 %v1301
        %v1303 = vand.u32 %v1157, 4294901760
        %1304 = vmatmul.f32.gmra.mxu0 %v1303
        %v1305 = vpop.f32.mrf.mxu0
        %v1306 = vadd.f32 %v1284, %v1305
        %1307 = vdwg.mxu0
        %v1308 = vmul.f32 %v1306, 0.35355338
        %v1309 = vmax.f32 %v1308, -65000.0
        %v1310 = vmin.f32 %v1309, 65000.0
        %v1311 = vsel %vm1155, %v1310, -inf
        %1312 = vmax.xlane.f32.xlu0 %v1311
        %v1313 = vpop.xlane.xlu0 %1312
        %v1314 = vsub.f32 %v1310, %v1313
        %v1315 = vmul.f32 %v1314, 1.442695
        %v1316 = vpow.pop %v1315
        %v1317 = vsel %vm1155, %v1316, 0.0
        %1318 = vadd.xlane.f32.xlu0 %v1317
        %v1319 = vpop.xlane.xlu0 %1318
        %v1320 = vrcp.pop %v1319
        %v1321 = vmul.f32 %v1319, %v1320
        %v1322 = vsub.f32 1.0, %v1321
        %v1323 = vmul.f32 %v1320, %v1322
        %v1324 = vadd.f32 %v1320, %v1323
        %vm1325 = vweird.f32 %v1319
        %vm1326 = vweird.f32 %v1320
        %vm1327 = vmor %vm1325, %vm1326
        %v1328 = vsel %vm1327, %v1320, %v1324
        %v1329 = vand.u32 2147483647, %v1319
        %vm1330 = vcmp.eq.f32.partialorder %v1329, 8.507059e+37
        %v1331 = vand.u32 %v1319, 2147483648
        %v1332 = vor.u32 1.1754944e-38, %v1331
        %v1333 = vsel %vm1330, %v1332, %v1328
        %v1334 = vmul.f32 1.0, %v1333
        %v1335 = vmul.f32 %v1316, %v1334
        %v1337 = vsel %vm1155, %v1335, 0
        %1339 = vmatpush.msra.mxu0 0.0
        %1340 = vmatpush.msra.mxu0 0.0
        %1341 = vmatpush.msra.mxu0 0.0
        %1342 = vmatpush.msra.mxu0 0.0
        %1343 = vmatpush.msra.mxu0 0.0
        %1344 = vmatpush.msra.mxu0 0.0
        %1345 = vmatpush.msra.mxu0 0.0
        %1346 = vmatpush.msra.mxu0 0.0
        %1347 = vmatpush.msra.mxu0 0.0
        %1348 = vmatpush.msra.mxu0 0.0
        %1349 = vmatpush.msra.mxu0 0.0
        %1350 = vmatpush.msra.mxu0 0.0
        %1351 = vmatpush.msra.mxu0 0.0
        %1352 = vmatpush.msra.mxu0 0.0
        %1353 = vmatpush.msra.mxu0 0.0
        %v1354 = vand.u32 %v1154, 4294901760
        %1355 = vmatpush.msra.mxu0 %v1354
        %v1356 = vand.u32 %v1337, 4294901760
        %v1357 = vsub.f32 %v1337, %v1356
        %v1358 = vand.u32 %v1357, 4294901760
        %v1359 = vsub.f32 %v1357, %v1358
        %v1360 = vand.u32 %v1359, 4294901760
        %1361 = vmatmul.f32.gmra.mxu0 %v1360
        %v1362 = vpop.f32.mrf.mxu0
        %v1363 = vadd.f32 0.0, %v1362
        %1364 = vdwg.mxu0
        %1365 = vmatpush.msra.mxu0 0.0
        %1366 = vmatpush.msra.mxu0 0.0
        %1367 = vmatpush.msra.mxu0 0.0
        %1368 = vmatpush.msra.mxu0 0.0
        %1369 = vmatpush.msra.mxu0 0.0
        %1370 = vmatpush.msra.mxu0 0.0
        %1371 = vmatpush.msra.mxu0 0.0
        %1372 = vmatpush.msra.mxu0 0.0
        %1373 = vmatpush.msra.mxu0 0.0
        %1374 = vmatpush.msra.mxu0 0.0
        %1375 = vmatpush.msra.mxu0 0.0
        %1376 = vmatpush.msra.mxu0 0.0
        %1377 = vmatpush.msra.mxu0 0.0
        %1378 = vmatpush.msra.mxu0 0.0
        %1379 = vmatpush.msra.mxu0 0.0
        %v1380 = vand.u32 %v1154, 4294901760
        %v1381 = vsub.f32 %v1154, %v1380
        %v1382 = vand.u32 %v1381, 4294901760
        %v1383 = vsub.f32 %v1381, %v1382
        %v1384 = vand.u32 %v1383, 4294901760
        %1385 = vmatpush.msra.mxu0 %v1384
        %v1386 = vand.u32 %v1337, 4294901760
        %1387 = vmatmul.f32.gmra.mxu0 %v1386
        %v1388 = vpop.f32.mrf.mxu0
        %v1389 = vadd.f32 %v1363, %v1388
        %1390 = vdwg.mxu0
        %1391 = vmatpush.msra.mxu0 0.0
        %1392 = vmatpush.msra.mxu0 0.0
        %1393 = vmatpush.msra.mxu0 0.0
        %1394 = vmatpush.msra.mxu0 0.0
        %1395 = vmatpush.msra.mxu0 0.0
        %1396 = vmatpush.msra.mxu0 0.0
        %1397 = vmatpush.msra.mxu0 0.0
        %1398 = vmatpush.msra.mxu0 0.0
        %1399 = vmatpush.msra.mxu0 0.0
        %1400 = vmatpush.msra.mxu0 0.0
        %1401 = vmatpush.msra.mxu0 0.0
        %1402 = vmatpush.msra.mxu0 0.0
        %1403 = vmatpush.msra.mxu0 0.0
        %1404 = vmatpush.msra.mxu0 0.0
        %1405 = vmatpush.msra.mxu0 0.0
        %v1406 = vand.u32 %v1154, 4294901760
        %v1407 = vsub.f32 %v1154, %v1406
        %1408 = vmatpush.msra.mxu0 %v1407
        %v1409 = vand.u32 %v1337, 4294901760
        %v1410 = vsub.f32 %v1337, %v1409
        %1411 = vmatmul.f32.gmra.mxu0 %v1410
        %v1412 = vpop.f32.mrf.mxu0
        %v1413 = vadd.f32 %v1389, %v1412
        %1414 = vdwg.mxu0
        %1415 = vmatpush.msra.mxu0 0.0
        %1416 = vmatpush.msra.mxu0 0.0
        %1417 = vmatpush.msra.mxu0 0.0
        %1418 = vmatpush.msra.mxu0 0.0
        %1419 = vmatpush.msra.mxu0 0.0
        %1420 = vmatpush.msra.mxu0 0.0
        %1421 = vmatpush.msra.mxu0 0.0
        %1422 = vmatpush.msra.mxu0 0.0
        %1423 = vmatpush.msra.mxu0 0.0
        %1424 = vmatpush.msra.mxu0 0.0
        %1425 = vmatpush.msra.mxu0 0.0
        %1426 = vmatpush.msra.mxu0 0.0
        %1427 = vmatpush.msra.mxu0 0.0
        %1428 = vmatpush.msra.mxu0 0.0
        %1429 = vmatpush.msra.mxu0 0.0
        %v1430 = vand.u32 %v1154, 4294901760
        %1431 = vmatpush.msra.mxu0 %v1430
        %v1432 = vand.u32 %v1337, 4294901760
        %v1433 = vsub.f32 %v1337, %v1432
        %v1434 = vand.u32 %v1433, 4294901760
        %1435 = vmatmul.f32.gmra.mxu0 %v1434
        %v1436 = vpop.f32.mrf.mxu0
        %v1437 = vadd.f32 %v1413, %v1436
        %1438 = vdwg.mxu0
        %1439 = vmatpush.msra.mxu0 0.0
        %1440 = vmatpush.msra.mxu0 0.0
        %1441 = vmatpush.msra.mxu0 0.0
        %1442 = vmatpush.msra.mxu0 0.0
        %1443 = vmatpush.msra.mxu0 0.0
        %1444 = vmatpush.msra.mxu0 0.0
        %1445 = vmatpush.msra.mxu0 0.0
        %1446 = vmatpush.msra.mxu0 0.0
        %1447 = vmatpush.msra.mxu0 0.0
        %1448 = vmatpush.msra.mxu0 0.0
        %1449 = vmatpush.msra.mxu0 0.0
        %1450 = vmatpush.msra.mxu0 0.0
        %1451 = vmatpush.msra.mxu0 0.0
        %1452 = vmatpush.msra.mxu0 0.0
        %1453 = vmatpush.msra.mxu0 0.0
        %v1454 = vand.u32 %v1154, 4294901760
        %v1455 = vsub.f32 %v1154, %v1454
        %v1456 = vand.u32 %v1455, 4294901760
        %1457 = vmatpush.msra.mxu0 %v1456
        %v1458 = vand.u32 %v1337, 4294901760
        %1459 = vmatmul.f32.gmra.mxu0 %v1458
        %v1460 = vpop.f32.mrf.mxu0
        %v1461 = vadd.f32 %v1437, %v1460
        %1462 = vdwg.mxu0
        %1463 = vmatpush.msra.mxu0 0.0
        %1464 = vmatpush.msra.mxu0 0.0
        %1465 = vmatpush.msra.mxu0 0.0
        %1466 = vmatpush.msra.mxu0 0.0
        %1467 = vmatpush.msra.mxu0 0.0
        %1468 = vmatpush.msra.mxu0 0.0
        %1469 = vmatpush.msra.mxu0 0.0
        %1470 = vmatpush.msra.mxu0 0.0
        %1471 = vmatpush.msra.mxu0 0.0
        %1472 = vmatpush.msra.mxu0 0.0
        %1473 = vmatpush.msra.mxu0 0.0
        %1474 = vmatpush.msra.mxu0 0.0
        %1475 = vmatpush.msra.mxu0 0.0
        %1476 = vmatpush.msra.mxu0 0.0
        %1477 = vmatpush.msra.mxu0 0.0
        %v1478 = vand.u32 %v1154, 4294901760
        %1479 = vmatpush.msra.mxu0 %v1478
        %v1480 = vand.u32 %v1337, 4294901760
        %1481 = vmatmul.f32.gmra.mxu0 %v1480
        %v1482 = vpop.f32.mrf.mxu0
        %v1483 = vadd.f32 %v1461, %v1482
        %1484 = vdwg.mxu0
        %1485 = vst.msk [vmem:[#allocation5] sm:$0xff] %vm1155, %v1483
        %v1486 = vld [vmem:[#allocation4] sm:$0xff]
        %v1487 = vld [vmem:[#allocation2] sm:$0xff]
        %v1488 = vld [vmem:[#allocation3] sm:$0xff]
        %1490 = vrot.lane.b32.xlu0 %v1486, 120
        %v1491 = vpop.permute.xlu0 %1490
        %1493 = vrot.lane.b32.xlu0 %v1487, 120
        %v1494 = vpop.permute.xlu0 %1493
        %v1495 = vsel %vm1155, %v1491, 0
        %v1497 = vsel %vm1155, %v1494, 0
        %1499 = vmatpush.xpose.msra.mxu0 0.0
        %1500 = vmatpush.xpose.msra.mxu0 0.0
        %1501 = vmatpush.xpose.msra.mxu0 0.0
        %1502 = vmatpush.xpose.msra.mxu0 0.0
        %1503 = vmatpush.xpose.msra.mxu0 0.0
        %1504 = vmatpush.xpose.msra.mxu0 0.0
        %1505 = vmatpush.xpose.msra.mxu0 0.0
        %1506 = vmatpush.xpose.msra.mxu0 0.0
        %1507 = vmatpush.xpose.msra.mxu0 0.0
        %1508 = vmatpush.xpose.msra.mxu0 0.0
        %1509 = vmatpush.xpose.msra.mxu0 0.0
        %1510 = vmatpush.xpose.msra.mxu0 0.0
        %1511 = vmatpush.xpose.msra.mxu0 0.0
        %1512 = vmatpush.xpose.msra.mxu0 0.0
        %1513 = vmatpush.xpose.msra.mxu0 0.0
        %v1514 = vand.u32 %v1497, 4294901760
        %1515 = vmatpush.xpose.msra.mxu0 %v1514
        %v1516 = vand.u32 %v1495, 4294901760
        %v1517 = vsub.f32 %v1495, %v1516
        %v1518 = vand.u32 %v1517, 4294901760
        %v1519 = vsub.f32 %v1517, %v1518
        %v1520 = vand.u32 %v1519, 4294901760
        %1521 = vmatmul.f32.gmra.mxu0 %v1520
        %v1522 = vpop.f32.mrf.mxu0
        %v1523 = vadd.f32 0.0, %v1522
        %1524 = vdwg.mxu0
        %1525 = vmatpush.xpose.msra.mxu0 0.0
        %1526 = vmatpush.xpose.msra.mxu0 0.0
        %1527 = vmatpush.xpose.msra.mxu0 0.0
        %1528 = vmatpush.xpose.msra.mxu0 0.0
        %1529 = vmatpush.xpose.msra.mxu0 0.0
        %1530 = vmatpush.xpose.msra.mxu0 0.0
        %1531 = vmatpush.xpose.msra.mxu0 0.0
        %1532 = vmatpush.xpose.msra.mxu0 0.0
        %1533 = vmatpush.xpose.msra.mxu0 0.0
        %1534 = vmatpush.xpose.msra.mxu0 0.0
        %1535 = vmatpush.xpose.msra.mxu0 0.0
        %1536 = vmatpush.xpose.msra.mxu0 0.0
        %1537 = vmatpush.xpose.msra.mxu0 0.0
        %1538 = vmatpush.xpose.msra.mxu0 0.0
        %1539 = vmatpush.xpose.msra.mxu0 0.0
        %v1540 = vand.u32 %v1497, 4294901760
        %v1541 = vsub.f32 %v1497, %v1540
        %v1542 = vand.u32 %v1541, 4294901760
        %v1543 = vsub.f32 %v1541, %v1542
        %v1544 = vand.u32 %v1543, 4294901760
        %1545 = vmatpush.xpose.msra.mxu0 %v1544
        %v1546 = vand.u32 %v1495, 4294901760
        %1547 = vmatmul.f32.gmra.mxu0 %v1546
        %v1548 = vpop.f32.mrf.mxu0
        %v1549 = vadd.f32 %v1523, %v1548
        %1550 = vdwg.mxu0
        %1551 = vmatpush.xpose.msra.mxu0 0.0
        %1552 = vmatpush.xpose.msra.mxu0 0.0
        %1553 = vmatpush.xpose.msra.mxu0 0.0
        %1554 = vmatpush.xpose.msra.mxu0 0.0
        %1555 = vmatpush.xpose.msra.mxu0 0.0
        %1556 = vmatpush.xpose.msra.mxu0 0.0
        %1557 = vmatpush.xpose.msra.mxu0 0.0
        %1558 = vmatpush.xpose.msra.mxu0 0.0
        %1559 = vmatpush.xpose.msra.mxu0 0.0
        %1560 = vmatpush.xpose.msra.mxu0 0.0
        %1561 = vmatpush.xpose.msra.mxu0 0.0
        %1562 = vmatpush.xpose.msra.mxu0 0.0
        %1563 = vmatpush.xpose.msra.mxu0 0.0
        %1564 = vmatpush.xpose.msra.mxu0 0.0
        %1565 = vmatpush.xpose.msra.mxu0 0.0
        %v1566 = vand.u32 %v1497, 4294901760
        %v1567 = vsub.f32 %v1497, %v1566
        %1568 = vmatpush.xpose.msra.mxu0 %v1567
        %v1569 = vand.u32 %v1495, 4294901760
        %v1570 = vsub.f32 %v1495, %v1569
        %1571 = vmatmul.f32.gmra.mxu0 %v1570
        %v1572 = vpop.f32.mrf.mxu0
        %v1573 = vadd.f32 %v1549, %v1572
        %1574 = vdwg.mxu0
        %1575 = vmatpush.xpose.msra.mxu0 0.0
        %1576 = vmatpush.xpose.msra.mxu0 0.0
        %1577 = vmatpush.xpose.msra.mxu0 0.0
        %1578 = vmatpush.xpose.msra.mxu0 0.0
        %1579 = vmatpush.xpose.msra.mxu0 0.0
        %1580 = vmatpush.xpose.msra.mxu0 0.0
        %1581 = vmatpush.xpose.msra.mxu0 0.0
        %1582 = vmatpush.xpose.msra.mxu0 0.0
        %1583 = vmatpush.xpose.msra.mxu0 0.0
        %1584 = vmatpush.xpose.msra.mxu0 0.0
        %1585 = vmatpush.xpose.msra.mxu0 0.0
        %1586 = vmatpush.xpose.msra.mxu0 0.0
        %1587 = vmatpush.xpose.msra.mxu0 0.0
        %1588 = vmatpush.xpose.msra.mxu0 0.0
        %1589 = vmatpush.xpose.msra.mxu0 0.0
        %v1590 = vand.u32 %v1497, 4294901760
        %1591 = vmatpush.xpose.msra.mxu0 %v1590
        %v1592 = vand.u32 %v1495, 4294901760
        %v1593 = vsub.f32 %v1495, %v1592
        %v1594 = vand.u32 %v1593, 4294901760
        %1595 = vmatmul.f32.gmra.mxu0 %v1594
        %v1596 = vpop.f32.mrf.mxu0
        %v1597 = vadd.f32 %v1573, %v1596
        %1598 = vdwg.mxu0
        %1599 = vmatpush.xpose.msra.mxu0 0.0
        %1600 = vmatpush.xpose.msra.mxu0 0.0
        %1601 = vmatpush.xpose.msra.mxu0 0.0
        %1602 = vmatpush.xpose.msra.mxu0 0.0
        %1603 = vmatpush.xpose.msra.mxu0 0.0
        %1604 = vmatpush.xpose.msra.mxu0 0.0
        %1605 = vmatpush.xpose.msra.mxu0 0.0
        %1606 = vmatpush.xpose.msra.mxu0 0.0
        %1607 = vmatpush.xpose.msra.mxu0 0.0
        %1608 = vmatpush.xpose.msra.mxu0 0.0
        %1609 = vmatpush.xpose.msra.mxu0 0.0
        %1610 = vmatpush.xpose.msra.mxu0 0.0
        %1611 = vmatpush.xpose.msra.mxu0 0.0
        %1612 = vmatpush.xpose.msra.mxu0 0.0
        %1613 = vmatpush.xpose.msra.mxu0 0.0
        %v1614 = vand.u32 %v1497, 4294901760
        %v1615 = vsub.f32 %v1497, %v1614
        %v1616 = vand.u32 %v1615, 4294901760
        %1617 = vmatpush.xpose.msra.mxu0 %v1616
        %v1618 = vand.u32 %v1495, 4294901760
        %1619 = vmatmul.f32.gmra.mxu0 %v1618
        %v1620 = vpop.f32.mrf.mxu0
        %v1621 = vadd.f32 %v1597, %v1620
        %1622 = vdwg.mxu0
        %1623 = vmatpush.xpose.msra.mxu0 0.0
        %1624 = vmatpush.xpose.msra.mxu0 0.0
        %1625 = vmatpush.xpose.msra.mxu0 0.0
        %1626 = vmatpush.xpose.msra.mxu0 0.0
        %1627 = vmatpush.xpose.msra.mxu0 0.0
        %1628 = vmatpush.xpose.msra.mxu0 0.0
        %1629 = vmatpush.xpose.msra.mxu0 0.0
        %1630 = vmatpush.xpose.msra.mxu0 0.0
        %1631 = vmatpush.xpose.msra.mxu0 0.0
        %1632 = vmatpush.xpose.msra.mxu0 0.0
        %1633 = vmatpush.xpose.msra.mxu0 0.0
        %1634 = vmatpush.xpose.msra.mxu0 0.0
        %1635 = vmatpush.xpose.msra.mxu0 0.0
        %1636 = vmatpush.xpose.msra.mxu0 0.0
        %1637 = vmatpush.xpose.msra.mxu0 0.0
        %v1638 = vand.u32 %v1497, 4294901760
        %1639 = vmatpush.xpose.msra.mxu0 %v1638
        %v1640 = vand.u32 %v1495, 4294901760
        %1641 = vmatmul.f32.gmra.mxu0 %v1640
        %v1642 = vpop.f32.mrf.mxu0
        %v1643 = vadd.f32 %v1621, %v1642
        %1644 = vdwg.mxu0
        %v1645 = vmul.f32 %v1643, 0.35355338
        %v1646 = vmax.f32 %v1645, -65000.0
        %v1647 = vmin.f32 %v1646, 65000.0
        %v1648 = vsel %vm1155, %v1647, -inf
        %1649 = vmax.xlane.f32.xlu0 %v1648
        %v1650 = vpop.xlane.xlu0 %1649
        %v1651 = vsub.f32 %v1647, %v1650
        %v1652 = vmul.f32 %v1651, 1.442695
        %v1653 = vpow.pop %v1652
        %v1654 = vsel %vm1155, %v1653, 0.0
        %1655 = vadd.xlane.f32.xlu0 %v1654
        %v1656 = vpop.xlane.xlu0 %1655
        %v1657 = vrcp.pop %v1656
        %v1658 = vmul.f32 %v1656, %v1657
        %v1659 = vsub.f32 1.0, %v1658
        %v1660 = vmul.f32 %v1657, %v1659
        %v1661 = vadd.f32 %v1657, %v1660
        %vm1662 = vweird.f32 %v1656
        %vm1663 = vweird.f32 %v1657
        %vm1664 = vmor %vm1662, %vm1663
        %v1665 = vsel %vm1664, %v1657, %v1661
        %v1666 = vand.u32 2147483647, %v1656
        %vm1667 = vcmp.eq.f32.partialorder %v1666, 8.507059e+37
        %v1668 = vand.u32 %v1656, 2147483648
        %v1669 = vor.u32 1.1754944e-38, %v1668
        %v1670 = vsel %vm1667, %v1669, %v1665
        %v1671 = vmul.f32 1.0, %v1670
        %v1672 = vmul.f32 %v1653, %v1671
        %1674 = vrot.lane.b32.xlu0 %v1488, 120
        %v1675 = vpop.permute.xlu0 %1674
        %v1678 = vsel %vm1155, %v1672, 0
        %1680 = vmatpush.msra.mxu0 0.0
        %1681 = vmatpush.msra.mxu0 0.0
        %1682 = vmatpush.msra.mxu0 0.0
        %1683 = vmatpush.msra.mxu0 0.0
        %1684 = vmatpush.msra.mxu0 0.0
        %1685 = vmatpush.msra.mxu0 0.0
        %1686 = vmatpush.msra.mxu0 0.0
        %1687 = vmatpush.msra.mxu0 0.0
        %1688 = vmatpush.msra.mxu0 0.0
        %1689 = vmatpush.msra.mxu0 0.0
        %1690 = vmatpush.msra.mxu0 0.0
        %1691 = vmatpush.msra.mxu0 0.0
        %1692 = vmatpush.msra.mxu0 0.0
        %1693 = vmatpush.msra.mxu0 0.0
        %1694 = vmatpush.msra.mxu0 0.0
        %v1695 = vand.u32 %v1675, 4294901760
        %1696 = vmatpush.msra.mxu0 %v1695
        %v1697 = vand.u32 %v1678, 4294901760
        %v1698 = vsub.f32 %v1678, %v1697
        %v1699 = vand.u32 %v1698, 4294901760
        %v1700 = vsub.f32 %v1698, %v1699
        %v1701 = vand.u32 %v1700, 4294901760
        %1702 = vmatmul.f32.gmra.mxu0 %v1701
        %v1703 = vpop.f32.mrf.mxu0
        %v1704 = vadd.f32 0.0, %v1703
        %1705 = vdwg.mxu0
        %1706 = vmatpush.msra.mxu0 0.0
        %1707 = vmatpush.msra.mxu0 0.0
        %1708 = vmatpush.msra.mxu0 0.0
        %1709 = vmatpush.msra.mxu0 0.0
        %1710 = vmatpush.msra.mxu0 0.0
        %1711 = vmatpush.msra.mxu0 0.0
        %1712 = vmatpush.msra.mxu0 0.0
        %1713 = vmatpush.msra.mxu0 0.0
        %1714 = vmatpush.msra.mxu0 0.0
        %1715 = vmatpush.msra.mxu0 0.0
        %1716 = vmatpush.msra.mxu0 0.0
        %1717 = vmatpush.msra.mxu0 0.0
        %1718 = vmatpush.msra.mxu0 0.0
        %1719 = vmatpush.msra.mxu0 0.0
        %1720 = vmatpush.msra.mxu0 0.0
        %v1721 = vand.u32 %v1675, 4294901760
        %v1722 = vsub.f32 %v1675, %v1721
        %v1723 = vand.u32 %v1722, 4294901760
        %v1724 = vsub.f32 %v1722, %v1723
        %v1725 = vand.u32 %v1724, 4294901760
        %1726 = vmatpush.msra.mxu0 %v1725
        %v1727 = vand.u32 %v1678, 4294901760
        %1728 = vmatmul.f32.gmra.mxu0 %v1727
        %v1729 = vpop.f32.mrf.mxu0
        %v1730 = vadd.f32 %v1704, %v1729
        %1731 = vdwg.mxu0
        %1732 = vmatpush.msra.mxu0 0.0
        %1733 = vmatpush.msra.mxu0 0.0
        %1734 = vmatpush.msra.mxu0 0.0
        %1735 = vmatpush.msra.mxu0 0.0
        %1736 = vmatpush.msra.mxu0 0.0
        %1737 = vmatpush.msra.mxu0 0.0
        %1738 = vmatpush.msra.mxu0 0.0
        %1739 = vmatpush.msra.mxu0 0.0
        %1740 = vmatpush.msra.mxu0 0.0
        %1741 = vmatpush.msra.mxu0 0.0
        %1742 = vmatpush.msra.mxu0 0.0
        %1743 = vmatpush.msra.mxu0 0.0
        %1744 = vmatpush.msra.mxu0 0.0
        %1745 = vmatpush.msra.mxu0 0.0
        %1746 = vmatpush.msra.mxu0 0.0
        %v1747 = vand.u32 %v1675, 4294901760
        %v1748 = vsub.f32 %v1675, %v1747
        %1749 = vmatpush.msra.mxu0 %v1748
        %v1750 = vand.u32 %v1678, 4294901760
        %v1751 = vsub.f32 %v1678, %v1750
        %1752 = vmatmul.f32.gmra.mxu0 %v1751
        %v1753 = vpop.f32.mrf.mxu0
        %v1754 = vadd.f32 %v1730, %v1753
        %1755 = vdwg.mxu0
        %1756 = vmatpush.msra.mxu0 0.0
        %1757 = vmatpush.msra.mxu0 0.0
        %1758 = vmatpush.msra.mxu0 0.0
        %1759 = vmatpush.msra.mxu0 0.0
        %1760 = vmatpush.msra.mxu0 0.0
        %1761 = vmatpush.msra.mxu0 0.0
        %1762 = vmatpush.msra.mxu0 0.0
        %1763 = vmatpush.msra.mxu0 0.0
        %1764 = vmatpush.msra.mxu0 0.0
        %1765 = vmatpush.msra.mxu0 0.0
        %1766 = vmatpush.msra.mxu0 0.0
        %1767 = vmatpush.msra.mxu0 0.0
        %1768 = vmatpush.msra.mxu0 0.0
        %1769 = vmatpush.msra.mxu0 0.0
        %1770 = vmatpush.msra.mxu0 0.0
        %v1771 = vand.u32 %v1675, 4294901760
        %1772 = vmatpush.msra.mxu0 %v1771
        %v1773 = vand.u32 %v1678, 4294901760
        %v1774 = vsub.f32 %v1678, %v1773
        %v1775 = vand.u32 %v1774, 4294901760
        %1776 = vmatmul.f32.gmra.mxu0 %v1775
        %v1777 = vpop.f32.mrf.mxu0
        %v1778 = vadd.f32 %v1754, %v1777
        %1779 = vdwg.mxu0
        %1780 = vmatpush.msra.mxu0 0.0
        %1781 = vmatpush.msra.mxu0 0.0
        %1782 = vmatpush.msra.mxu0 0.0
        %1783 = vmatpush.msra.mxu0 0.0
        %1784 = vmatpush.msra.mxu0 0.0
        %1785 = vmatpush.msra.mxu0 0.0
        %1786 = vmatpush.msra.mxu0 0.0
        %1787 = vmatpush.msra.mxu0 0.0
        %1788 = vmatpush.msra.mxu0 0.0
        %1789 = vmatpush.msra.mxu0 0.0
        %1790 = vmatpush.msra.mxu0 0.0
        %1791 = vmatpush.msra.mxu0 0.0
        %1792 = vmatpush.msra.mxu0 0.0
        %1793 = vmatpush.msra.mxu0 0.0
        %1794 = vmatpush.msra.mxu0 0.0
        %v1795 = vand.u32 %v1675, 4294901760
        %v1796 = vsub.f32 %v1675, %v1795
        %v1797 = vand.u32 %v1796, 4294901760
        %1798 = vmatpush.msra.mxu0 %v1797
        %v1799 = vand.u32 %v1678, 4294901760
        %1800 = vmatmul.f32.gmra.mxu0 %v1799
        %v1801 = vpop.f32.mrf.mxu0
        %v1802 = vadd.f32 %v1778, %v1801
        %1803 = vdwg.mxu0
        %1804 = vmatpush.msra.mxu0 0.0
        %1805 = vmatpush.msra.mxu0 0.0
        %1806 = vmatpush.msra.mxu0 0.0
        %1807 = vmatpush.msra.mxu0 0.0
        %1808 = vmatpush.msra.mxu0 0.0
        %1809 = vmatpush.msra.mxu0 0.0
        %1810 = vmatpush.msra.mxu0 0.0
        %1811 = vmatpush.msra.mxu0 0.0
        %1812 = vmatpush.msra.mxu0 0.0
        %1813 = vmatpush.msra.mxu0 0.0
        %1814 = vmatpush.msra.mxu0 0.0
        %1815 = vmatpush.msra.mxu0 0.0
        %1816 = vmatpush.msra.mxu0 0.0
        %1817 = vmatpush.msra.mxu0 0.0
        %1818 = vmatpush.msra.mxu0 0.0
        %v1819 = vand.u32 %v1675, 4294901760
        %1820 = vmatpush.msra.mxu0 %v1819
        %v1821 = vand.u32 %v1678, 4294901760
        %1822 = vmatmul.f32.gmra.mxu0 %v1821
        %v1823 = vpop.f32.mrf.mxu0
        %v1824 = vadd.f32 %v1802, %v1823
        %1825 = vdwg.mxu0
        %1827 = vrot.lane.b32.xlu0 %v1824, 8
        %v1828 = vpop.permute.xlu0 %1827
        %vm1830 = vcmask 130112
        %1831 = vst.msk [vmem:[#allocation5] sm:$0xff] %vm1830, %v1828
        %v1832 = vld [vmem:[#allocation4] sm:$0xff]
        %v1833 = vld [vmem:[#allocation2] sm:$0xff]
        %v1834 = vld [vmem:[#allocation3] sm:$0xff]
        %1836 = vrot.lane.b32.xlu0 %v1832, 112
        %v1837 = vpop.permute.xlu0 %1836
        %1839 = vrot.lane.b32.xlu0 %v1833, 112
        %v1840 = vpop.permute.xlu0 %1839
        %v1841 = vsel %vm1155, %v1837, 0
        %v1843 = vsel %vm1155, %v1840, 0
        %1845 = vmatpush.xpose.msra.mxu0 0.0
        %1846 = vmatpush.xpose.msra.mxu0 0.0
        %1847 = vmatpush.xpose.msra.mxu0 0.0
        %1848 = vmatpush.xpose.msra.mxu0 0.0
        %1849 = vmatpush.xpose.msra.mxu0 0.0
        %1850 = vmatpush.xpose.msra.mxu0 0.0
        %1851 = vmatpush.xpose.msra.mxu0 0.0
        %1852 = vmatpush.xpose.msra.mxu0 0.0
        %1853 = vmatpush.xpose.msra.mxu0 0.0
        %1854 = vmatpush.xpose.msra.mxu0 0.0
        %1855 = vmatpush.xpose.msra.mxu0 0.0
        %1856 = vmatpush.xpose.msra.mxu0 0.0
        %1857 = vmatpush.xpose.msra.mxu0 0.0
        %1858 = vmatpush.xpose.msra.mxu0 0.0
        %1859 = vmatpush.xpose.msra.mxu0 0.0
        %v1860 = vand.u32 %v1843, 4294901760
        %1861 = vmatpush.xpose.msra.mxu0 %v1860
        %v1862 = vand.u32 %v1841, 4294901760
        %v1863 = vsub.f32 %v1841, %v1862
        %v1864 = vand.u32 %v1863, 4294901760
        %v1865 = vsub.f32 %v1863, %v1864
        %v1866 = vand.u32 %v1865, 4294901760
        %1867 = vmatmul.f32.gmra.mxu0 %v1866
        %v1868 = vpop.f32.mrf.mxu0
        %v1869 = vadd.f32 0.0, %v1868
        %1870 = vdwg.mxu0
        %1871 = vmatpush.xpose.msra.mxu0 0.0
        %1872 = vmatpush.xpose.msra.mxu0 0.0
        %1873 = vmatpush.xpose.msra.mxu0 0.0
        %1874 = vmatpush.xpose.msra.mxu0 0.0
        %1875 = vmatpush.xpose.msra.mxu0 0.0
        %1876 = vmatpush.xpose.msra.mxu0 0.0
        %1877 = vmatpush.xpose.msra.mxu0 0.0
        %1878 = vmatpush.xpose.msra.mxu0 0.0
        %1879 = vmatpush.xpose.msra.mxu0 0.0
        %1880 = vmatpush.xpose.msra.mxu0 0.0
        %1881 = vmatpush.xpose.msra.mxu0 0.0
        %1882 = vmatpush.xpose.msra.mxu0 0.0
        %1883 = vmatpush.xpose.msra.mxu0 0.0
        %1884 = vmatpush.xpose.msra.mxu0 0.0
        %1885 = vmatpush.xpose.msra.mxu0 0.0
        %v1886 = vand.u32 %v1843, 4294901760
        %v1887 = vsub.f32 %v1843, %v1886
        %v1888 = vand.u32 %v1887, 4294901760
        %v1889 = vsub.f32 %v1887, %v1888
        %v1890 = vand.u32 %v1889, 4294901760
        %1891 = vmatpush.xpose.msra.mxu0 %v1890
        %v1892 = vand.u32 %v1841, 4294901760
        %1893 = vmatmul.f32.gmra.mxu0 %v1892
        %v1894 = vpop.f32.mrf.mxu0
        %v1895 = vadd.f32 %v1869, %v1894
        %1896 = vdwg.mxu0
        %1897 = vmatpush.xpose.msra.mxu0 0.0
        %1898 = vmatpush.xpose.msra.mxu0 0.0
        %1899 = vmatpush.xpose.msra.mxu0 0.0
        %1900 = vmatpush.xpose.msra.mxu0 0.0
        %1901 = vmatpush.xpose.msra.mxu0 0.0
        %1902 = vmatpush.xpose.msra.mxu0 0.0
        %1903 = vmatpush.xpose.msra.mxu0 0.0
        %1904 = vmatpush.xpose.msra.mxu0 0.0
        %1905 = vmatpush.xpose.msra.mxu0 0.0
        %1906 = vmatpush.xpose.msra.mxu0 0.0
        %1907 = vmatpush.xpose.msra.mxu0 0.0
        %1908 = vmatpush.xpose.msra.mxu0 0.0
        %1909 = vmatpush.xpose.msra.mxu0 0.0
        %1910 = vmatpush.xpose.msra.mxu0 0.0
        %1911 = vmatpush.xpose.msra.mxu0 0.0
        %v1912 = vand.u32 %v1843, 4294901760
        %v1913 = vsub.f32 %v1843, %v1912
        %1914 = vmatpush.xpose.msra.mxu0 %v1913
        %v1915 = vand.u32 %v1841, 4294901760
        %v1916 = vsub.f32 %v1841, %v1915
        %1917 = vmatmul.f32.gmra.mxu0 %v1916
        %v1918 = vpop.f32.mrf.mxu0
        %v1919 = vadd.f32 %v1895, %v1918
        %1920 = vdwg.mxu0
        %1921 = vmatpush.xpose.msra.mxu0 0.0
        %1922 = vmatpush.xpose.msra.mxu0 0.0
        %1923 = vmatpush.xpose.msra.mxu0 0.0
        %1924 = vmatpush.xpose.msra.mxu0 0.0
        %1925 = vmatpush.xpose.msra.mxu0 0.0
        %1926 = vmatpush.xpose.msra.mxu0 0.0
        %1927 = vmatpush.xpose.msra.mxu0 0.0
        %1928 = vmatpush.xpose.msra.mxu0 0.0
        %1929 = vmatpush.xpose.msra.mxu0 0.0
        %1930 = vmatpush.xpose.msra.mxu0 0.0
        %1931 = vmatpush.xpose.msra.mxu0 0.0
        %1932 = vmatpush.xpose.msra.mxu0 0.0
        %1933 = vmatpush.xpose.msra.mxu0 0.0
        %1934 = vmatpush.xpose.msra.mxu0 0.0
        %1935 = vmatpush.xpose.msra.mxu0 0.0
        %v1936 = vand.u32 %v1843, 4294901760
        %1937 = vmatpush.xpose.msra.mxu0 %v1936
        %v1938 = vand.u32 %v1841, 4294901760
        %v1939 = vsub.f32 %v1841, %v1938
        %v1940 = vand.u32 %v1939, 4294901760
        %1941 = vmatmul.f32.gmra.mxu0 %v1940
        %v1942 = vpop.f32.mrf.mxu0
        %v1943 = vadd.f32 %v1919, %v1942
        %1944 = vdwg.mxu0
        %1945 = vmatpush.xpose.msra.mxu0 0.0
        %1946 = vmatpush.xpose.msra.mxu0 0.0
        %1947 = vmatpush.xpose.msra.mxu0 0.0
        %1948 = vmatpush.xpose.msra.mxu0 0.0
        %1949 = vmatpush.xpose.msra.mxu0 0.0
        %1950 = vmatpush.xpose.msra.mxu0 0.0
        %1951 = vmatpush.xpose.msra.mxu0 0.0
        %1952 = vmatpush.xpose.msra.mxu0 0.0
        %1953 = vmatpush.xpose.msra.mxu0 0.0
        %1954 = vmatpush.xpose.msra.mxu0 0.0
        %1955 = vmatpush.xpose.msra.mxu0 0.0
        %1956 = vmatpush.xpose.msra.mxu0 0.0
        %1957 = vmatpush.xpose.msra.mxu0 0.0
        %1958 = vmatpush.xpose.msra.mxu0 0.0
        %1959 = vmatpush.xpose.msra.mxu0 0.0
        %v1960 = vand.u32 %v1843, 4294901760
        %v1961 = vsub.f32 %v1843, %v1960
        %v1962 = vand.u32 %v1961, 4294901760
        %1963 = vmatpush.xpose.msra.mxu0 %v1962
        %v1964 = vand.u32 %v1841, 4294901760
        %1965 = vmatmul.f32.gmra.mxu0 %v1964
        %v1966 = vpop.f32.mrf.mxu0
        %v1967 = vadd.f32 %v1943, %v1966
        %1968 = vdwg.mxu0
        %1969 = vmatpush.xpose.msra.mxu0 0.0
        %1970 = vmatpush.xpose.msra.mxu0 0.0
        %1971 = vmatpush.xpose.msra.mxu0 0.0
        %1972 = vmatpush.xpose.msra.mxu0 0.0
        %1973 = vmatpush.xpose.msra.mxu0 0.0
        %1974 = vmatpush.xpose.msra.mxu0 0.0
        %1975 = vmatpush.xpose.msra.mxu0 0.0
        %1976 = vmatpush.xpose.msra.mxu0 0.0
        %1977 = vmatpush.xpose.msra.mxu0 0.0
        %1978 = vmatpush.xpose.msra.mxu0 0.0
        %1979 = vmatpush.xpose.msra.mxu0 0.0
        %1980 = vmatpush.xpose.msra.mxu0 0.0
        %1981 = vmatpush.xpose.msra.mxu0 0.0
        %1982 = vmatpush.xpose.msra.mxu0 0.0
        %1983 = vmatpush.xpose.msra.mxu0 0.0
        %v1984 = vand.u32 %v1843, 4294901760
        %1985 = vmatpush.xpose.msra.mxu0 %v1984
        %v1986 = vand.u32 %v1841, 4294901760
        %1987 = vmatmul.f32.gmra.mxu0 %v1986
        %v1988 = vpop.f32.mrf.mxu0
        %v1989 = vadd.f32 %v1967, %v1988
        %1990 = vdwg.mxu0
        %v1991 = vmul.f32 %v1989, 0.35355338
        %v1992 = vmax.f32 %v1991, -65000.0
        %v1993 = vmin.f32 %v1992, 65000.0
        %v1994 = vsel %vm1155, %v1993, -inf
        %1995 = vmax.xlane.f32.xlu0 %v1994
        %v1996 = vpop.xlane.xlu0 %1995
        %v1997 = vsub.f32 %v1993, %v1996
        %v1998 = vmul.f32 %v1997, 1.442695
        %v1999 = vpow.pop %v1998
        %v2000 = vsel %vm1155, %v1999, 0.0
        %2001 = vadd.xlane.f32.xlu0 %v2000
        %v2002 = vpop.xlane.xlu0 %2001
        %v2003 = vrcp.pop %v2002
        %v2004 = vmul.f32 %v2002, %v2003
        %v2005 = vsub.f32 1.0, %v2004
        %v2006 = vmul.f32 %v2003, %v2005
        %v2007 = vadd.f32 %v2003, %v2006
        %vm2008 = vweird.f32 %v2002
        %vm2009 = vweird.f32 %v2003
        %vm2010 = vmor %vm2008, %vm2009
        %v2011 = vsel %vm2010, %v2003, %v2007
        %v2012 = vand.u32 2147483647, %v2002
        %vm2013 = vcmp.eq.f32.partialorder %v2012, 8.507059e+37
        %v2014 = vand.u32 %v2002, 2147483648
        %v2015 = vor.u32 1.1754944e-38, %v2014
        %v2016 = vsel %vm2013, %v2015, %v2011
        %v2017 = vmul.f32 1.0, %v2016
        %v2018 = vmul.f32 %v1999, %v2017
        %2020 = vrot.lane.b32.xlu0 %v1834, 112
        %v2021 = vpop.permute.xlu0 %2020
        %v2024 = vsel %vm1155, %v2018, 0
        %2026 = vmatpush.msra.mxu0 0.0
        %2027 = vmatpush.msra.mxu0 0.0
        %2028 = vmatpush.msra.mxu0 0.0
        %2029 = vmatpush.msra.mxu0 0.0
        %2030 = vmatpush.msra.mxu0 0.0
        %2031 = vmatpush.msra.mxu0 0.0
        %2032 = vmatpush.msra.mxu0 0.0
        %2033 = vmatpush.msra.mxu0 0.0
        %2034 = vmatpush.msra.mxu0 0.0
        %2035 = vmatpush.msra.mxu0 0.0
        %2036 = vmatpush.msra.mxu0 0.0
        %2037 = vmatpush.msra.mxu0 0.0
        %2038 = vmatpush.msra.mxu0 0.0
        %2039 = vmatpush.msra.mxu0 0.0
        %2040 = vmatpush.msra.mxu0 0.0
        %v2041 = vand.u32 %v2021, 4294901760
        %2042 = vmatpush.msra.mxu0 %v2041
        %v2043 = vand.u32 %v2024, 4294901760
        %v2044 = vsub.f32 %v2024, %v2043
        %v2045 = vand.u32 %v2044, 4294901760
        %v2046 = vsub.f32 %v2044, %v2045
        %v2047 = vand.u32 %v2046, 4294901760
        %2048 = vmatmul.f32.gmra.mxu0 %v2047
        %v2049 = vpop.f32.mrf.mxu0
        %v2050 = vadd.f32 0.0, %v2049
        %2051 = vdwg.mxu0
        %2052 = vmatpush.msra.mxu0 0.0
        %2053 = vmatpush.msra.mxu0 0.0
        %2054 = vmatpush.msra.mxu0 0.0
        %2055 = vmatpush.msra.mxu0 0.0
        %2056 = vmatpush.msra.mxu0 0.0
        %2057 = vmatpush.msra.mxu0 0.0
        %2058 = vmatpush.msra.mxu0 0.0
        %2059 = vmatpush.msra.mxu0 0.0
        %2060 = vmatpush.msra.mxu0 0.0
        %2061 = vmatpush.msra.mxu0 0.0
        %2062 = vmatpush.msra.mxu0 0.0
        %2063 = vmatpush.msra.mxu0 0.0
        %2064 = vmatpush.msra.mxu0 0.0
        %2065 = vmatpush.msra.mxu0 0.0
        %2066 = vmatpush.msra.mxu0 0.0
        %v2067 = vand.u32 %v2021, 4294901760
        %v2068 = vsub.f32 %v2021, %v2067
        %v2069 = vand.u32 %v2068, 4294901760
        %v2070 = vsub.f32 %v2068, %v2069
        %v2071 = vand.u32 %v2070, 4294901760
        %2072 = vmatpush.msra.mxu0 %v2071
        %v2073 = vand.u32 %v2024, 4294901760
        %2074 = vmatmul.f32.gmra.mxu0 %v2073
        %v2075 = vpop.f32.mrf.mxu0
        %v2076 = vadd.f32 %v2050, %v2075
        %2077 = vdwg.mxu0
        %2078 = vmatpush.msra.mxu0 0.0
        %2079 = vmatpush.msra.mxu0 0.0
        %2080 = vmatpush.msra.mxu0 0.0
        %2081 = vmatpush.msra.mxu0 0.0
        %2082 = vmatpush.msra.mxu0 0.0
        %2083 = vmatpush.msra.mxu0 0.0
        %2084 = vmatpush.msra.mxu0 0.0
        %2085 = vmatpush.msra.mxu0 0.0
        %2086 = vmatpush.msra.mxu0 0.0
        %2087 = vmatpush.msra.mxu0 0.0
        %2088 = vmatpush.msra.mxu0 0.0
        %2089 = vmatpush.msra.mxu0 0.0
        %2090 = vmatpush.msra.mxu0 0.0
        %2091 = vmatpush.msra.mxu0 0.0
        %2092 = vmatpush.msra.mxu0 0.0
        %v2093 = vand.u32 %v2021, 4294901760
        %v2094 = vsub.f32 %v2021, %v2093
        %2095 = vmatpush.msra.mxu0 %v2094
        %v2096 = vand.u32 %v2024, 4294901760
        %v2097 = vsub.f32 %v2024, %v2096
        %2098 = vmatmul.f32.gmra.mxu0 %v2097
        %v2099 = vpop.f32.mrf.mxu0
        %v2100 = vadd.f32 %v2076, %v2099
        %2101 = vdwg.mxu0
        %2102 = vmatpush.msra.mxu0 0.0
        %2103 = vmatpush.msra.mxu0 0.0
        %2104 = vmatpush.msra.mxu0 0.0
        %2105 = vmatpush.msra.mxu0 0.0
        %2106 = vmatpush.msra.mxu0 0.0
        %2107 = vmatpush.msra.mxu0 0.0
        %2108 = vmatpush.msra.mxu0 0.0
        %2109 = vmatpush.msra.mxu0 0.0
        %2110 = vmatpush.msra.mxu0 0.0
        %2111 = vmatpush.msra.mxu0 0.0
        %2112 = vmatpush.msra.mxu0 0.0
        %2113 = vmatpush.msra.mxu0 0.0
        %2114 = vmatpush.msra.mxu0 0.0
        %2115 = vmatpush.msra.mxu0 0.0
        %2116 = vmatpush.msra.mxu0 0.0
        %v2117 = vand.u32 %v2021, 4294901760
        %2118 = vmatpush.msra.mxu0 %v2117
        %v2119 = vand.u32 %v2024, 4294901760
        %v2120 = vsub.f32 %v2024, %v2119
        %v2121 = vand.u32 %v2120, 4294901760
        %2122 = vmatmul.f32.gmra.mxu0 %v2121
        %v2123 = vpop.f32.mrf.mxu0
        %v2124 = vadd.f32 %v2100, %v2123
        %2125 = vdwg.mxu0
        %2126 = vmatpush.msra.mxu0 0.0
        %2127 = vmatpush.msra.mxu0 0.0
        %2128 = vmatpush.msra.mxu0 0.0
        %2129 = vmatpush.msra.mxu0 0.0
        %2130 = vmatpush.msra.mxu0 0.0
        %2131 = vmatpush.msra.mxu0 0.0
        %2132 = vmatpush.msra.mxu0 0.0
        %2133 = vmatpush.msra.mxu0 0.0
        %2134 = vmatpush.msra.mxu0 0.0
        %2135 = vmatpush.msra.mxu0 0.0
        %2136 = vmatpush.msra.mxu0 0.0
        %2137 = vmatpush.msra.mxu0 0.0
        %2138 = vmatpush.msra.mxu0 0.0
        %2139 = vmatpush.msra.mxu0 0.0
        %2140 = vmatpush.msra.mxu0 0.0
        %v2141 = vand.u32 %v2021, 4294901760
        %v2142 = vsub.f32 %v2021, %v2141
        %v2143 = vand.u32 %v2142, 4294901760
        %2144 = vmatpush.msra.mxu0 %v2143
        %v2145 = vand.u32 %v2024, 4294901760
        %2146 = vmatmul.f32.gmra.mxu0 %v2145
        %v2147 = vpop.f32.mrf.mxu0
        %v2148 = vadd.f32 %v2124, %v2147
        %2149 = vdwg.mxu0
        %2150 = vmatpush.msra.mxu0 0.0
        %2151 = vmatpush.msra.mxu0 0.0
        %2152 = vmatpush.msra.mxu0 0.0
        %2153 = vmatpush.msra.mxu0 0.0
        %2154 = vmatpush.msra.mxu0 0.0
        %2155 = vmatpush.msra.mxu0 0.0
        %2156 = vmatpush.msra.mxu0 0.0
        %2157 = vmatpush.msra.mxu0 0.0
        %2158 = vmatpush.msra.mxu0 0.0
        %2159 = vmatpush.msra.mxu0 0.0
        %2160 = vmatpush.msra.mxu0 0.0
        %2161 = vmatpush.msra.mxu0 0.0
        %2162 = vmatpush.msra.mxu0 0.0
        %2163 = vmatpush.msra.mxu0 0.0
        %2164 = vmatpush.msra.mxu0 0.0
        %v2165 = vand.u32 %v2021, 4294901760
        %2166 = vmatpush.msra.mxu0 %v2165
        %v2167 = vand.u32 %v2024, 4294901760
        %2168 = vmatmul.f32.gmra.mxu0 %v2167
        %v2169 = vpop.f32.mrf.mxu0
        %v2170 = vadd.f32 %v2148, %v2169
        %2171 = vdwg.mxu0
        %2173 = vrot.lane.b32.xlu0 %v2170, 16
        %v2174 = vpop.permute.xlu0 %2173
        %vm2176 = vcmask 195712
        %2177 = vst.msk [vmem:[#allocation5] sm:$0xff] %vm2176, %v2174
        %v2178 = vld [vmem:[#allocation4] sm:$0xff]
        %v2179 = vld [vmem:[#allocation2] sm:$0xff]
        %v2180 = vld [vmem:[#allocation3] sm:$0xff]
        %2182 = vrot.lane.b32.xlu0 %v2178, 104
        %v2183 = vpop.permute.xlu0 %2182
        %2185 = vrot.lane.b32.xlu0 %v2179, 104
        %v2186 = vpop.permute.xlu0 %2185
        %v2187 = vsel %vm1155, %v2183, 0
        %v2189 = vsel %vm1155, %v2186, 0
        %2191 = vmatpush.xpose.msra.mxu0 0.0
        %2192 = vmatpush.xpose.msra.mxu0 0.0
        %2193 = vmatpush.xpose.msra.mxu0 0.0
        %2194 = vmatpush.xpose.msra.mxu0 0.0
        %2195 = vmatpush.xpose.msra.mxu0 0.0
        %2196 = vmatpush.xpose.msra.mxu0 0.0
        %2197 = vmatpush.xpose.msra.mxu0 0.0
        %2198 = vmatpush.xpose.msra.mxu0 0.0
        %2199 = vmatpush.xpose.msra.mxu0 0.0
        %2200 = vmatpush.xpose.msra.mxu0 0.0
        %2201 = vmatpush.xpose.msra.mxu0 0.0
        %2202 = vmatpush.xpose.msra.mxu0 0.0
        %2203 = vmatpush.xpose.msra.mxu0 0.0
        %2204 = vmatpush.xpose.msra.mxu0 0.0
        %2205 = vmatpush.xpose.msra.mxu0 0.0
        %v2206 = vand.u32 %v2189, 4294901760
        %2207 = vmatpush.xpose.msra.mxu0 %v2206
        %v2208 = vand.u32 %v2187, 4294901760
        %v2209 = vsub.f32 %v2187, %v2208
        %v2210 = vand.u32 %v2209, 4294901760
        %v2211 = vsub.f32 %v2209, %v2210
        %v2212 = vand.u32 %v2211, 4294901760
        %2213 = vmatmul.f32.gmra.mxu0 %v2212
        %v2214 = vpop.f32.mrf.mxu0
        %v2215 = vadd.f32 0.0, %v2214
        %2216 = vdwg.mxu0
        %2217 = vmatpush.xpose.msra.mxu0 0.0
        %2218 = vmatpush.xpose.msra.mxu0 0.0
        %2219 = vmatpush.xpose.msra.mxu0 0.0
        %2220 = vmatpush.xpose.msra.mxu0 0.0
        %2221 = vmatpush.xpose.msra.mxu0 0.0
        %2222 = vmatpush.xpose.msra.mxu0 0.0
        %2223 = vmatpush.xpose.msra.mxu0 0.0
        %2224 = vmatpush.xpose.msra.mxu0 0.0
        %2225 = vmatpush.xpose.msra.mxu0 0.0
        %2226 = vmatpush.xpose.msra.mxu0 0.0
        %2227 = vmatpush.xpose.msra.mxu0 0.0
        %2228 = vmatpush.xpose.msra.mxu0 0.0
        %2229 = vmatpush.xpose.msra.mxu0 0.0
        %2230 = vmatpush.xpose.msra.mxu0 0.0
        %2231 = vmatpush.xpose.msra.mxu0 0.0
        %v2232 = vand.u32 %v2189, 4294901760
        %v2233 = vsub.f32 %v2189, %v2232
        %v2234 = vand.u32 %v2233, 4294901760
        %v2235 = vsub.f32 %v2233, %v2234
        %v2236 = vand.u32 %v2235, 4294901760
        %2237 = vmatpush.xpose.msra.mxu0 %v2236
        %v2238 = vand.u32 %v2187, 4294901760
        %2239 = vmatmul.f32.gmra.mxu0 %v2238
        %v2240 = vpop.f32.mrf.mxu0
        %v2241 = vadd.f32 %v2215, %v2240
        %2242 = vdwg.mxu0
        %2243 = vmatpush.xpose.msra.mxu0 0.0
        %2244 = vmatpush.xpose.msra.mxu0 0.0
        %2245 = vmatpush.xpose.msra.mxu0 0.0
        %2246 = vmatpush.xpose.msra.mxu0 0.0
        %2247 = vmatpush.xpose.msra.mxu0 0.0
        %2248 = vmatpush.xpose.msra.mxu0 0.0
        %2249 = vmatpush.xpose.msra.mxu0 0.0
        %2250 = vmatpush.xpose.msra.mxu0 0.0
        %2251 = vmatpush.xpose.msra.mxu0 0.0
        %2252 = vmatpush.xpose.msra.mxu0 0.0
        %2253 = vmatpush.xpose.msra.mxu0 0.0
        %2254 = vmatpush.xpose.msra.mxu0 0.0
        %2255 = vmatpush.xpose.msra.mxu0 0.0
        %2256 = vmatpush.xpose.msra.mxu0 0.0
        %2257 = vmatpush.xpose.msra.mxu0 0.0
        %v2258 = vand.u32 %v2189, 4294901760
        %v2259 = vsub.f32 %v2189, %v2258
        %2260 = vmatpush.xpose.msra.mxu0 %v2259
        %v2261 = vand.u32 %v2187, 4294901760
        %v2262 = vsub.f32 %v2187, %v2261
        %2263 = vmatmul.f32.gmra.mxu0 %v2262
        %v2264 = vpop.f32.mrf.mxu0
        %v2265 = vadd.f32 %v2241, %v2264
        %2266 = vdwg.mxu0
        %2267 = vmatpush.xpose.msra.mxu0 0.0
        %2268 = vmatpush.xpose.msra.mxu0 0.0
        %2269 = vmatpush.xpose.msra.mxu0 0.0
        %2270 = vmatpush.xpose.msra.mxu0 0.0
        %2271 = vmatpush.xpose.msra.mxu0 0.0
        %2272 = vmatpush.xpose.msra.mxu0 0.0
        %2273 = vmatpush.xpose.msra.mxu0 0.0
        %2274 = vmatpush.xpose.msra.mxu0 0.0
        %2275 = vmatpush.xpose.msra.mxu0 0.0
        %2276 = vmatpush.xpose.msra.mxu0 0.0
        %2277 = vmatpush.xpose.msra.mxu0 0.0
        %2278 = vmatpush.xpose.msra.mxu0 0.0
        %2279 = vmatpush.xpose.msra.mxu0 0.0
        %2280 = vmatpush.xpose.msra.mxu0 0.0
        %2281 = vmatpush.xpose.msra.mxu0 0.0
        %v2282 = vand.u32 %v2189, 4294901760
        %2283 = vmatpush.xpose.msra.mxu0 %v2282
        %v2284 = vand.u32 %v2187, 4294901760
        %v2285 = vsub.f32 %v2187, %v2284
        %v2286 = vand.u32 %v2285, 4294901760
        %2287 = vmatmul.f32.gmra.mxu0 %v2286
        %v2288 = vpop.f32.mrf.mxu0
        %v2289 = vadd.f32 %v2265, %v2288
        %2290 = vdwg.mxu0
        %2291 = vmatpush.xpose.msra.mxu0 0.0
        %2292 = vmatpush.xpose.msra.mxu0 0.0
        %2293 = vmatpush.xpose.msra.mxu0 0.0
        %2294 = vmatpush.xpose.msra.mxu0 0.0
        %2295 = vmatpush.xpose.msra.mxu0 0.0
        %2296 = vmatpush.xpose.msra.mxu0 0.0
        %2297 = vmatpush.xpose.msra.mxu0 0.0
        %2298 = vmatpush.xpose.msra.mxu0 0.0
        %2299 = vmatpush.xpose.msra.mxu0 0.0
        %2300 = vmatpush.xpose.msra.mxu0 0.0
        %2301 = vmatpush.xpose.msra.mxu0 0.0
        %2302 = vmatpush.xpose.msra.mxu0 0.0
        %2303 = vmatpush.xpose.msra.mxu0 0.0
        %2304 = vmatpush.xpose.msra.mxu0 0.0
        %2305 = vmatpush.xpose.msra.mxu0 0.0
        %v2306 = vand.u32 %v2189, 4294901760
        %v2307 = vsub.f32 %v2189, %v2306
        %v2308 = vand.u32 %v2307, 4294901760
        %2309 = vmatpush.xpose.msra.mxu0 %v2308
        %v2310 = vand.u32 %v2187, 4294901760
        %2311 = vmatmul.f32.gmra.mxu0 %v2310
        %v2312 = vpop.f32.mrf.mxu0
        %v2313 = vadd.f32 %v2289, %v2312
        %2314 = vdwg.mxu0
        %2315 = vmatpush.xpose.msra.mxu0 0.0
        %2316 = vmatpush.xpose.msra.mxu0 0.0
        %2317 = vmatpush.xpose.msra.mxu0 0.0
        %2318 = vmatpush.xpose.msra.mxu0 0.0
        %2319 = vmatpush.xpose.msra.mxu0 0.0
        %2320 = vmatpush.xpose.msra.mxu0 0.0
        %2321 = vmatpush.xpose.msra.mxu0 0.0
        %2322 = vmatpush.xpose.msra.mxu0 0.0
        %2323 = vmatpush.xpose.msra.mxu0 0.0
        %2324 = vmatpush.xpose.msra.mxu0 0.0
        %2325 = vmatpush.xpose.msra.mxu0 0.0
        %2326 = vmatpush.xpose.msra.mxu0 0.0
        %2327 = vmatpush.xpose.msra.mxu0 0.0
        %2328 = vmatpush.xpose.msra.mxu0 0.0
        %2329 = vmatpush.xpose.msra.mxu0 0.0
        %v2330 = vand.u32 %v2189, 4294901760
        %2331 = vmatpush.xpose.msra.mxu0 %v2330
        %v2332 = vand.u32 %v2187, 4294901760
        %2333 = vmatmul.f32.gmra.mxu0 %v2332
        %v2334 = vpop.f32.mrf.mxu0
        %v2335 = vadd.f32 %v2313, %v2334
        %2336 = vdwg.mxu0
        %v2337 = vmul.f32 %v2335, 0.35355338
        %v2338 = vmax.f32 %v2337, -65000.0
        %v2339 = vmin.f32 %v2338, 65000.0
        %v2340 = vsel %vm1155, %v2339, -inf
        %2341 = vmax.xlane.f32.xlu0 %v2340
        %v2342 = vpop.xlane.xlu0 %2341
        %v2343 = vsub.f32 %v2339, %v2342
        %v2344 = vmul.f32 %v2343, 1.442695
        %v2345 = vpow.pop %v2344
        %v2346 = vsel %vm1155, %v2345, 0.0
        %2347 = vadd.xlane.f32.xlu0 %v2346
        %v2348 = vpop.xlane.xlu0 %2347
        %v2349 = vrcp.pop %v2348
        %v2350 = vmul.f32 %v2348, %v2349
        %v2351 = vsub.f32 1.0, %v2350
        %v2352 = vmul.f32 %v2349, %v2351
        %v2353 = vadd.f32 %v2349, %v2352
        %vm2354 = vweird.f32 %v2348
        %vm2355 = vweird.f32 %v2349
        %vm2356 = vmor %vm2354, %vm2355
        %v2357 = vsel %vm2356, %v2349, %v2353
        %v2358 = vand.u32 2147483647, %v2348
        %vm2359 = vcmp.eq.f32.partialorder %v2358, 8.507059e+37
        %v2360 = vand.u32 %v2348, 2147483648
        %v2361 = vor.u32 1.1754944e-38, %v2360
        %v2362 = vsel %vm2359, %v2361, %v2357
        %v2363 = vmul.f32 1.0, %v2362
        %v2364 = vmul.f32 %v2345, %v2363
        %2366 = vrot.lane.b32.xlu0 %v2180, 104
        %v2367 = vpop.permute.xlu0 %2366
        %v2370 = vsel %vm1155, %v2364, 0
        %2372 = vmatpush.msra.mxu0 0.0
        %2373 = vmatpush.msra.mxu0 0.0
        %2374 = vmatpush.msra.mxu0 0.0
        %2375 = vmatpush.msra.mxu0 0.0
        %2376 = vmatpush.msra.mxu0 0.0
        %2377 = vmatpush.msra.mxu0 0.0
        %2378 = vmatpush.msra.mxu0 0.0
        %2379 = vmatpush.msra.mxu0 0.0
        %2380 = vmatpush.msra.mxu0 0.0
        %2381 = vmatpush.msra.mxu0 0.0
        %2382 = vmatpush.msra.mxu0 0.0
        %2383 = vmatpush.msra.mxu0 0.0
        %2384 = vmatpush.msra.mxu0 0.0
        %2385 = vmatpush.msra.mxu0 0.0
        %2386 = vmatpush.msra.mxu0 0.0
        %v2387 = vand.u32 %v2367, 4294901760
        %2388 = vmatpush.msra.mxu0 %v2387
        %v2389 = vand.u32 %v2370, 4294901760
        %v2390 = vsub.f32 %v2370, %v2389
        %v2391 = vand.u32 %v2390, 4294901760
        %v2392 = vsub.f32 %v2390, %v2391
        %v2393 = vand.u32 %v2392, 4294901760
        %2394 = vmatmul.f32.gmra.mxu0 %v2393
        %v2395 = vpop.f32.mrf.mxu0
        %v2396 = vadd.f32 0.0, %v2395
        %2397 = vdwg.mxu0
        %2398 = vmatpush.msra.mxu0 0.0
        %2399 = vmatpush.msra.mxu0 0.0
        %2400 = vmatpush.msra.mxu0 0.0
        %2401 = vmatpush.msra.mxu0 0.0
        %2402 = vmatpush.msra.mxu0 0.0
        %2403 = vmatpush.msra.mxu0 0.0
        %2404 = vmatpush.msra.mxu0 0.0
        %2405 = vmatpush.msra.mxu0 0.0
        %2406 = vmatpush.msra.mxu0 0.0
        %2407 = vmatpush.msra.mxu0 0.0
        %2408 = vmatpush.msra.mxu0 0.0
        %2409 = vmatpush.msra.mxu0 0.0
        %2410 = vmatpush.msra.mxu0 0.0
        %2411 = vmatpush.msra.mxu0 0.0
        %2412 = vmatpush.msra.mxu0 0.0
        %v2413 = vand.u32 %v2367, 4294901760
        %v2414 = vsub.f32 %v2367, %v2413
        %v2415 = vand.u32 %v2414, 4294901760
        %v2416 = vsub.f32 %v2414, %v2415
        %v2417 = vand.u32 %v2416, 4294901760
        %2418 = vmatpush.msra.mxu0 %v2417
        %v2419 = vand.u32 %v2370, 4294901760
        %2420 = vmatmul.f32.gmra.mxu0 %v2419
        %v2421 = vpop.f32.mrf.mxu0
        %v2422 = vadd.f32 %v2396, %v2421
        %2423 = vdwg.mxu0
        %2424 = vmatpush.msra.mxu0 0.0
        %2425 = vmatpush.msra.mxu0 0.0
        %2426 = vmatpush.msra.mxu0 0.0
        %2427 = vmatpush.msra.mxu0 0.0
        %2428 = vmatpush.msra.mxu0 0.0
        %2429 = vmatpush.msra.mxu0 0.0
        %2430 = vmatpush.msra.mxu0 0.0
        %2431 = vmatpush.msra.mxu0 0.0
        %2432 = vmatpush.msra.mxu0 0.0
        %2433 = vmatpush.msra.mxu0 0.0
        %2434 = vmatpush.msra.mxu0 0.0
        %2435 = vmatpush.msra.mxu0 0.0
        %2436 = vmatpush.msra.mxu0 0.0
        %2437 = vmatpush.msra.mxu0 0.0
        %2438 = vmatpush.msra.mxu0 0.0
        %v2439 = vand.u32 %v2367, 4294901760
        %v2440 = vsub.f32 %v2367, %v2439
        %2441 = vmatpush.msra.mxu0 %v2440
        %v2442 = vand.u32 %v2370, 4294901760
        %v2443 = vsub.f32 %v2370, %v2442
        %2444 = vmatmul.f32.gmra.mxu0 %v2443
        %v2445 = vpop.f32.mrf.mxu0
        %v2446 = vadd.f32 %v2422, %v2445
        %2447 = vdwg.mxu0
        %2448 = vmatpush.msra.mxu0 0.0
        %2449 = vmatpush.msra.mxu0 0.0
        %2450 = vmatpush.msra.mxu0 0.0
        %2451 = vmatpush.msra.mxu0 0.0
        %2452 = vmatpush.msra.mxu0 0.0
        %2453 = vmatpush.msra.mxu0 0.0
        %2454 = vmatpush.msra.mxu0 0.0
        %2455 = vmatpush.msra.mxu0 0.0
        %2456 = vmatpush.msra.mxu0 0.0
        %2457 = vmatpush.msra.mxu0 0.0
        %2458 = vmatpush.msra.mxu0 0.0
        %2459 = vmatpush.msra.mxu0 0.0
        %2460 = vmatpush.msra.mxu0 0.0
        %2461 = vmatpush.msra.mxu0 0.0
        %2462 = vmatpush.msra.mxu0 0.0
        %v2463 = vand.u32 %v2367, 4294901760
        %2464 = vmatpush.msra.mxu0 %v2463
        %v2465 = vand.u32 %v2370, 4294901760
        %v2466 = vsub.f32 %v2370, %v2465
        %v2467 = vand.u32 %v2466, 4294901760
        %2468 = vmatmul.f32.gmra.mxu0 %v2467
        %v2469 = vpop.f32.mrf.mxu0
        %v2470 = vadd.f32 %v2446, %v2469
        %2471 = vdwg.mxu0
        %2472 = vmatpush.msra.mxu0 0.0
        %2473 = vmatpush.msra.mxu0 0.0
        %2474 = vmatpush.msra.mxu0 0.0
        %2475 = vmatpush.msra.mxu0 0.0
        %2476 = vmatpush.msra.mxu0 0.0
        %2477 = vmatpush.msra.mxu0 0.0
        %2478 = vmatpush.msra.mxu0 0.0
        %2479 = vmatpush.msra.mxu0 0.0
        %2480 = vmatpush.msra.mxu0 0.0
        %2481 = vmatpush.msra.mxu0 0.0
        %2482 = vmatpush.msra.mxu0 0.0
        %2483 = vmatpush.msra.mxu0 0.0
        %2484 = vmatpush.msra.mxu0 0.0
        %2485 = vmatpush.msra.mxu0 0.0
        %2486 = vmatpush.msra.mxu0 0.0
        %v2487 = vand.u32 %v2367, 4294901760
        %v2488 = vsub.f32 %v2367, %v2487
        %v2489 = vand.u32 %v2488, 4294901760
        %2490 = vmatpush.msra.mxu0 %v2489
        %v2491 = vand.u32 %v2370, 4294901760
        %2492 = vmatmul.f32.gmra.mxu0 %v2491
        %v2493 = vpop.f32.mrf.mxu0
        %v2494 = vadd.f32 %v2470, %v2493
        %2495 = vdwg.mxu0
        %2496 = vmatpush.msra.mxu0 0.0
        %2497 = vmatpush.msra.mxu0 0.0
        %2498 = vmatpush.msra.mxu0 0.0
        %2499 = vmatpush.msra.mxu0 0.0
        %2500 = vmatpush.msra.mxu0 0.0
        %2501 = vmatpush.msra.mxu0 0.0
        %2502 = vmatpush.msra.mxu0 0.0
        %2503 = vmatpush.msra.mxu0 0.0
        %2504 = vmatpush.msra.mxu0 0.0
        %2505 = vmatpush.msra.mxu0 0.0
        %2506 = vmatpush.msra.mxu0 0.0
        %2507 = vmatpush.msra.mxu0 0.0
        %2508 = vmatpush.msra.mxu0 0.0
        %2509 = vmatpush.msra.mxu0 0.0
        %2510 = vmatpush.msra.mxu0 0.0
        %v2511 = vand.u32 %v2367, 4294901760
        %2512 = vmatpush.msra.mxu0 %v2511
        %v2513 = vand.u32 %v2370, 4294901760
        %2514 = vmatmul.f32.gmra.mxu0 %v2513
        %v2515 = vpop.f32.mrf.mxu0
        %v2516 = vadd.f32 %v2494, %v2515
        %2517 = vdwg.mxu0
        %2519 = vrot.lane.b32.xlu0 %v2516, 24
        %v2520 = vpop.permute.xlu0 %2519
        %vm2522 = vcmask 261312
        %2523 = vst.msk [vmem:[#allocation5] sm:$0xff] %vm2522, %v2520
        %v2524 = vld [vmem:[#allocation5] sm:$0xff]
        %v2525 = vld [vmem:[%s5] sm:$0xff]
        %v2526 = vld [vmem:[%s5 + $0x8] sm:$0xff]
        %v2527 = vld [vmem:[%s5 + $0x10] sm:$0xff]
        %v2528 = vld [vmem:[%s5 + $0x18] sm:$0xff]
        %v2529 = vld [vmem:[%s6] sm:$0x1]
        %v2531 = vperm.slane %v2529, 0
        %v2534 = vsel %vm962, %v2524, 0
        %2536 = vmatpush.msra.mxu0 0.0
        %2537 = vmatpush.msra.mxu0 0.0
        %2538 = vmatpush.msra.mxu0 0.0
        %2539 = vmatpush.msra.mxu0 0.0
        %2540 = vmatpush.msra.mxu0 0.0
        %2541 = vmatpush.msra.mxu0 0.0
        %2542 = vmatpush.msra.mxu0 0.0
        %2543 = vmatpush.msra.mxu0 0.0
        %2544 = vmatpush.msra.mxu0 0.0
        %2545 = vmatpush.msra.mxu0 0.0
        %2546 = vmatpush.msra.mxu0 0.0
        %2547 = vmatpush.msra.mxu0 0.0
        %v2548 = vand.u32 %v2528, 4294901760
        %2549 = vmatpush.msra.mxu0 %v2548
        %v2550 = vand.u32 %v2527, 4294901760
        %2551 = vmatpush.msra.mxu0 %v2550
        %v2552 = vand.u32 %v2526, 4294901760
        %2553 = vmatpush.msra.mxu0 %v2552
        %v2554 = vand.u32 %v2525, 4294901760
        %2555 = vmatpush.msra.mxu0 %v2554
        %v2556 = vand.u32 %v2534, 4294901760
        %v2557 = vsub.f32 %v2534, %v2556
        %v2558 = vand.u32 %v2557, 4294901760
        %v2559 = vsub.f32 %v2557, %v2558
        %v2560 = vand.u32 %v2559, 4294901760
        %2561 = vmatmul.f32.gmra.mxu0 %v2560
        %v2562 = vpop.f32.mrf.mxu0
        %v2563 = vadd.f32 %v2531, %v2562
        %2564 = vdwg.mxu0
        %2565 = vmatpush.msra.mxu0 0.0
        %2566 = vmatpush.msra.mxu0 0.0
        %2567 = vmatpush.msra.mxu0 0.0
        %2568 = vmatpush.msra.mxu0 0.0
        %2569 = vmatpush.msra.mxu0 0.0
        %2570 = vmatpush.msra.mxu0 0.0
        %2571 = vmatpush.msra.mxu0 0.0
        %2572 = vmatpush.msra.mxu0 0.0
        %2573 = vmatpush.msra.mxu0 0.0
        %2574 = vmatpush.msra.mxu0 0.0
        %2575 = vmatpush.msra.mxu0 0.0
        %2576 = vmatpush.msra.mxu0 0.0
        %v2577 = vand.u32 %v2528, 4294901760
        %v2578 = vsub.f32 %v2528, %v2577
        %v2579 = vand.u32 %v2578, 4294901760
        %v2580 = vsub.f32 %v2578, %v2579
        %v2581 = vand.u32 %v2580, 4294901760
        %2582 = vmatpush.msra.mxu0 %v2581
        %v2583 = vand.u32 %v2527, 4294901760
        %v2584 = vsub.f32 %v2527, %v2583
        %v2585 = vand.u32 %v2584, 4294901760
        %v2586 = vsub.f32 %v2584, %v2585
        %v2587 = vand.u32 %v2586, 4294901760
        %2588 = vmatpush.msra.mxu0 %v2587
        %v2589 = vand.u32 %v2526, 4294901760
        %v2590 = vsub.f32 %v2526, %v2589
        %v2591 = vand.u32 %v2590, 4294901760
        %v2592 = vsub.f32 %v2590, %v2591
        %v2593 = vand.u32 %v2592, 4294901760
        %2594 = vmatpush.msra.mxu0 %v2593
        %v2595 = vand.u32 %v2525, 4294901760
        %v2596 = vsub.f32 %v2525, %v2595
        %v2597 = vand.u32 %v2596, 4294901760
        %v2598 = vsub.f32 %v2596, %v2597
        %v2599 = vand.u32 %v2598, 4294901760
        %2600 = vmatpush.msra.mxu0 %v2599
        %v2601 = vand.u32 %v2534, 4294901760
        %2602 = vmatmul.f32.gmra.mxu0 %v2601
        %v2603 = vpop.f32.mrf.mxu0
        %v2604 = vadd.f32 %v2563, %v2603
        %2605 = vdwg.mxu0
        %2606 = vmatpush.msra.mxu0 0.0
        %2607 = vmatpush.msra.mxu0 0.0
        %2608 = vmatpush.msra.mxu0 0.0
        %2609 = vmatpush.msra.mxu0 0.0
        %2610 = vmatpush.msra.mxu0 0.0
        %2611 = vmatpush.msra.mxu0 0.0
        %2612 = vmatpush.msra.mxu0 0.0
        %2613 = vmatpush.msra.mxu0 0.0
        %2614 = vmatpush.msra.mxu0 0.0
        %2615 = vmatpush.msra.mxu0 0.0
        %2616 = vmatpush.msra.mxu0 0.0
        %2617 = vmatpush.msra.mxu0 0.0
        %v2618 = vand.u32 %v2528, 4294901760
        %v2619 = vsub.f32 %v2528, %v2618
        %2620 = vmatpush.msra.mxu0 %v2619
        %v2621 = vand.u32 %v2527, 4294901760
        %v2622 = vsub.f32 %v2527, %v2621
        %2623 = vmatpush.msra.mxu0 %v2622
        %v2624 = vand.u32 %v2526, 4294901760
        %v2625 = vsub.f32 %v2526, %v2624
        %2626 = vmatpush.msra.mxu0 %v2625
        %v2627 = vand.u32 %v2525, 4294901760
        %v2628 = vsub.f32 %v2525, %v2627
        %2629 = vmatpush.msra.mxu0 %v2628
        %v2630 = vand.u32 %v2534, 4294901760
        %v2631 = vsub.f32 %v2534, %v2630
        %2632 = vmatmul.f32.gmra.mxu0 %v2631
        %v2633 = vpop.f32.mrf.mxu0
        %v2634 = vadd.f32 %v2604, %v2633
        %2635 = vdwg.mxu0
        %2636 = vmatpush.msra.mxu0 0.0
        %2637 = vmatpush.msra.mxu0 0.0
        %2638 = vmatpush.msra.mxu0 0.0
        %2639 = vmatpush.msra.mxu0 0.0
        %2640 = vmatpush.msra.mxu0 0.0
        %2641 = vmatpush.msra.mxu0 0.0
        %2642 = vmatpush.msra.mxu0 0.0
        %2643 = vmatpush.msra.mxu0 0.0
        %2644 = vmatpush.msra.mxu0 0.0
        %2645 = vmatpush.msra.mxu0 0.0
        %2646 = vmatpush.msra.mxu0 0.0
        %2647 = vmatpush.msra.mxu0 0.0
        %v2648 = vand.u32 %v2528, 4294901760
        %2649 = vmatpush.msra.mxu0 %v2648
        %v2650 = vand.u32 %v2527, 4294901760
        %2651 = vmatpush.msra.mxu0 %v2650
        %v2652 = vand.u32 %v2526, 4294901760
        %2653 = vmatpush.msra.mxu0 %v2652
        %v2654 = vand.u32 %v2525, 4294901760
        %2655 = vmatpush.msra.mxu0 %v2654
        %v2656 = vand.u32 %v2534, 4294901760
        %v2657 = vsub.f32 %v2534, %v2656
        %v2658 = vand.u32 %v2657, 4294901760
        %2659 = vmatmul.f32.gmra.mxu0 %v2658
        %v2660 = vpop.f32.mrf.mxu0
        %v2661 = vadd.f32 %v2634, %v2660
        %2662 = vdwg.mxu0
        %2663 = vmatpush.msra.mxu0 0.0
        %2664 = vmatpush.msra.mxu0 0.0
        %2665 = vmatpush.msra.mxu0 0.0
        %2666 = vmatpush.msra.mxu0 0.0
        %2667 = vmatpush.msra.mxu0 0.0
        %2668 = vmatpush.msra.mxu0 0.0
        %2669 = vmatpush.msra.mxu0 0.0
        %2670 = vmatpush.msra.mxu0 0.0
        %2671 = vmatpush.msra.mxu0 0.0
        %2672 = vmatpush.msra.mxu0 0.0
        %2673 = vmatpush.msra.mxu0 0.0
        %2674 = vmatpush.msra.mxu0 0.0
        %v2675 = vand.u32 %v2528, 4294901760
        %v2676 = vsub.f32 %v2528, %v2675
        %v2677 = vand.u32 %v2676, 4294901760
        %2678 = vmatpush.msra.mxu0 %v2677
        %v2679 = vand.u32 %v2527, 4294901760
        %v2680 = vsub.f32 %v2527, %v2679
        %v2681 = vand.u32 %v2680, 4294901760
        %2682 = vmatpush.msra.mxu0 %v2681
        %v2683 = vand.u32 %v2526, 4294901760
        %v2684 = vsub.f32 %v2526, %v2683
        %v2685 = vand.u32 %v2684, 4294901760
        %2686 = vmatpush.msra.mxu0 %v2685
        %v2687 = vand.u32 %v2525, 4294901760
        %v2688 = vsub.f32 %v2525, %v2687
        %v2689 = vand.u32 %v2688, 4294901760
        %2690 = vmatpush.msra.mxu0 %v2689
        %v2691 = vand.u32 %v2534, 4294901760
        %2692 = vmatmul.f32.gmra.mxu0 %v2691
        %v2693 = vpop.f32.mrf.mxu0
        %v2694 = vadd.f32 %v2661, %v2693
        %2695 = vdwg.mxu0
        %2696 = vmatpush.msra.mxu0 0.0
        %2697 = vmatpush.msra.mxu0 0.0
        %2698 = vmatpush.msra.mxu0 0.0
        %2699 = vmatpush.msra.mxu0 0.0
        %2700 = vmatpush.msra.mxu0 0.0
        %2701 = vmatpush.msra.mxu0 0.0
        %2702 = vmatpush.msra.mxu0 0.0
        %2703 = vmatpush.msra.mxu0 0.0
        %2704 = vmatpush.msra.mxu0 0.0
        %2705 = vmatpush.msra.mxu0 0.0
        %2706 = vmatpush.msra.mxu0 0.0
        %2707 = vmatpush.msra.mxu0 0.0
        %v2708 = vand.u32 %v2528, 4294901760
        %2709 = vmatpush.msra.mxu0 %v2708
        %v2710 = vand.u32 %v2527, 4294901760
        %2711 = vmatpush.msra.mxu0 %v2710
        %v2712 = vand.u32 %v2526, 4294901760
        %2713 = vmatpush.msra.mxu0 %v2712
        %v2714 = vand.u32 %v2525, 4294901760
        %2715 = vmatpush.msra.mxu0 %v2714
        %v2716 = vand.u32 %v2534, 4294901760
        %2717 = vmatmul.f32.gmra.mxu0 %v2716
        %v2718 = vpop.f32.mrf.mxu0
        %v2719 = vadd.f32 %v2694, %v2718
        %2720 = vdwg.mxu0
        %v2721 = vadd.f32 %v957, %v2719
        %v2722 = vld [vmem:[%s7] sm:$0x1]
        %v2723 = vld [vmem:[%s8] sm:$0x1]
        %v2724 = vsel %vm962, %v2721, 0.0
        %2725 = vadd.xlane.f32.xlu0 %v2724
        %v2726 = vpop.xlane.xlu0 %2725
        %v2727 = vrcp.pop 32.0
        %v2728 = vmul.f32 32.0, %v2727
        %v2729 = vsub.f32 1.0, %v2728
        %v2730 = vmul.f32 %v2727, %v2729
        %v2731 = vadd.f32 %v2727, %v2730
        %vm2732 = vweird.f32 %v2727
        %v2733 = vsel %vm2732, %v2727, %v2731
        %v2734 = vmul.f32 %v2726, %v2733
        %v2735 = vsub.f32 %v2721, %v2734
        %v2736 = vmul.f32 %v2735, %v2735
        %v2737 = vsel %vm962, %v2736, 0.0
        %2738 = vadd.xlane.f32.xlu0 %v2737
        %v2739 = vpop.xlane.xlu0 %2738
        %v2740 = vmul.f32 %v2739, %v2733
        %v2741 = vadd.f32 %v2740, 1e-05
        %v2742 = vrsqrt.pop %v2741
        %v2743 = vmul.f32 %v2742, %v2741
        %v2744 = vmul.f32 %v2743, %v2742
        %v2745 = vmul.f32 0.5, %v2744
        %v2746 = vsub.f32 1.5, %v2745
        %v2747 = vmul.f32 %v2742, %v2746
        %vm2748 = vweird.f32 %v2741
        %vm2749 = vweird.f32 %v2742
        %vm2750 = vmor %vm2748, %vm2749
        %v2751 = vsel %vm2750, %v2742, %v2747
        %v2752 = vmul.f32 %v2735, %v2751
        %v2754 = vperm.slane %v2722, 0
        %v2756 = vmul.f32 %v2752, %v2754
        %v2758 = vperm.slane %v2723, 0
        %v2760 = vadd.f32 %v2756, %v2758
        %v2761 = vld [vmem:[%s9] sm:$0xff]
        %v2762 = vld [vmem:[%s9 + $0x8] sm:$0xff]
        %v2763 = vld [vmem:[%s9 + $0x10] sm:$0xff]
        %v2764 = vld [vmem:[%s9 + $0x18] sm:$0xff]
        %v2765 = vld [vmem:[%s10] sm:$0x1]
        %v2767 = vperm.slane %v2765, 0
        %v2770 = vsel %vm962, %v2760, 0
        %2772 = vmatpush.msra.mxu0 0.0
        %2773 = vmatpush.msra.mxu0 0.0
        %2774 = vmatpush.msra.mxu0 0.0
        %2775 = vmatpush.msra.mxu0 0.0
        %2776 = vmatpush.msra.mxu0 0.0
        %2777 = vmatpush.msra.mxu0 0.0
        %2778 = vmatpush.msra.mxu0 0.0
        %2779 = vmatpush.msra.mxu0 0.0
        %2780 = vmatpush.msra.mxu0 0.0
        %2781 = vmatpush.msra.mxu0 0.0
        %2782 = vmatpush.msra.mxu0 0.0
        %2783 = vmatpush.msra.mxu0 0.0
        %v2784 = vand.u32 %v2764, 4294901760
        %2785 = vmatpush.msra.mxu0 %v2784
        %v2786 = vand.u32 %v2763, 4294901760
        %2787 = vmatpush.msra.mxu0 %v2786
        %v2788 = vand.u32 %v2762, 4294901760
        %2789 = vmatpush.msra.mxu0 %v2788
        %v2790 = vand.u32 %v2761, 4294901760
        %2791 = vmatpush.msra.mxu0 %v2790
        %v2792 = vand.u32 %v2770, 4294901760
        %v2793 = vsub.f32 %v2770, %v2792
        %v2794 = vand.u32 %v2793, 4294901760
        %v2795 = vsub.f32 %v2793, %v2794
        %v2796 = vand.u32 %v2795, 4294901760
        %2797 = vmatmul.f32.gmra.mxu0 %v2796
        %v2798 = vpop.f32.mrf.mxu0
        %v2799 = vadd.f32 %v2767, %v2798
        %2800 = vdwg.mxu0
        %2801 = vmatpush.msra.mxu0 0.0
        %2802 = vmatpush.msra.mxu0 0.0
        %2803 = vmatpush.msra.mxu0 0.0
        %2804 = vmatpush.msra.mxu0 0.0
        %2805 = vmatpush.msra.mxu0 0.0
        %2806 = vmatpush.msra.mxu0 0.0
        %2807 = vmatpush.msra.mxu0 0.0
        %2808 = vmatpush.msra.mxu0 0.0
        %2809 = vmatpush.msra.mxu0 0.0
        %2810 = vmatpush.msra.mxu0 0.0
        %2811 = vmatpush.msra.mxu0 0.0
        %2812 = vmatpush.msra.mxu0 0.0
        %v2813 = vand.u32 %v2764, 4294901760
        %v2814 = vsub.f32 %v2764, %v2813
        %v2815 = vand.u32 %v2814, 4294901760
        %v2816 = vsub.f32 %v2814, %v2815
        %v2817 = vand.u32 %v2816, 4294901760
        %2818 = vmatpush.msra.mxu0 %v2817
        %v2819 = vand.u32 %v2763, 4294901760
        %v2820 = vsub.f32 %v2763, %v2819
        %v2821 = vand.u32 %v2820, 4294901760
        %v2822 = vsub.f32 %v2820, %v2821
        %v2823 = vand.u32 %v2822, 4294901760
        %2824 = vmatpush.msra.mxu0 %v2823
        %v2825 = vand.u32 %v2762, 4294901760
        %v2826 = vsub.f32 %v2762, %v2825
        %v2827 = vand.u32 %v2826, 4294901760
        %v2828 = vsub.f32 %v2826, %v2827
        %v2829 = vand.u32 %v2828, 4294901760
        %2830 = vmatpush.msra.mxu0 %v2829
        %v2831 = vand.u32 %v2761, 4294901760
        %v2832 = vsub.f32 %v2761, %v2831
        %v2833 = vand.u32 %v2832, 4294901760
        %v2834 = vsub.f32 %v2832, %v2833
        %v2835 = vand.u32 %v2834, 4294901760
        %2836 = vmatpush.msra.mxu0 %v2835
        %v2837 = vand.u32 %v2770, 4294901760
        %2838 = vmatmul.f32.gmra.mxu0 %v2837
        %v2839 = vpop.f32.mrf.mxu0
        %v2840 = vadd.f32 %v2799, %v2839
        %2841 = vdwg.mxu0
        %2842 = vmatpush.msra.mxu0 0.0
        %2843 = vmatpush.msra.mxu0 0.0
        %2844 = vmatpush.msra.mxu0 0.0
        %2845 = vmatpush.msra.mxu0 0.0
        %2846 = vmatpush.msra.mxu0 0.0
        %2847 = vmatpush.msra.mxu0 0.0
        %2848 = vmatpush.msra.mxu0 0.0
        %2849 = vmatpush.msra.mxu0 0.0
        %2850 = vmatpush.msra.mxu0 0.0
        %2851 = vmatpush.msra.mxu0 0.0
        %2852 = vmatpush.msra.mxu0 0.0
        %2853 = vmatpush.msra.mxu0 0.0
        %v2854 = vand.u32 %v2764, 4294901760
        %v2855 = vsub.f32 %v2764, %v2854
        %2856 = vmatpush.msra.mxu0 %v2855
        %v2857 = vand.u32 %v2763, 4294901760
        %v2858 = vsub.f32 %v2763, %v2857
        %2859 = vmatpush.msra.mxu0 %v2858
        %v2860 = vand.u32 %v2762, 4294901760
        %v2861 = vsub.f32 %v2762, %v2860
        %2862 = vmatpush.msra.mxu0 %v2861
        %v2863 = vand.u32 %v2761, 4294901760
        %v2864 = vsub.f32 %v2761, %v2863
        %2865 = vmatpush.msra.mxu0 %v2864
        %v2866 = vand.u32 %v2770, 4294901760
        %v2867 = vsub.f32 %v2770, %v2866
        %2868 = vmatmul.f32.gmra.mxu0 %v2867
        %v2869 = vpop.f32.mrf.mxu0
        %v2870 = vadd.f32 %v2840, %v2869
        %2871 = vdwg.mxu0
        %2872 = vmatpush.msra.mxu0 0.0
        %2873 = vmatpush.msra.mxu0 0.0
        %2874 = vmatpush.msra.mxu0 0.0
        %2875 = vmatpush.msra.mxu0 0.0
        %2876 = vmatpush.msra.mxu0 0.0
        %2877 = vmatpush.msra.mxu0 0.0
        %2878 = vmatpush.msra.mxu0 0.0
        %2879 = vmatpush.msra.mxu0 0.0
        %2880 = vmatpush.msra.mxu0 0.0
        %2881 = vmatpush.msra.mxu0 0.0
        %2882 = vmatpush.msra.mxu0 0.0
        %2883 = vmatpush.msra.mxu0 0.0
        %v2884 = vand.u32 %v2764, 4294901760
        %2885 = vmatpush.msra.mxu0 %v2884
        %v2886 = vand.u32 %v2763, 4294901760
        %2887 = vmatpush.msra.mxu0 %v2886
        %v2888 = vand.u32 %v2762, 4294901760
        %2889 = vmatpush.msra.mxu0 %v2888
        %v2890 = vand.u32 %v2761, 4294901760
        %2891 = vmatpush.msra.mxu0 %v2890
        %v2892 = vand.u32 %v2770, 4294901760
        %v2893 = vsub.f32 %v2770, %v2892
        %v2894 = vand.u32 %v2893, 4294901760
        %2895 = vmatmul.f32.gmra.mxu0 %v2894
        %v2896 = vpop.f32.mrf.mxu0
        %v2897 = vadd.f32 %v2870, %v2896
        %2898 = vdwg.mxu0
        %2899 = vmatpush.msra.mxu0 0.0
        %2900 = vmatpush.msra.mxu0 0.0
        %2901 = vmatpush.msra.mxu0 0.0
        %2902 = vmatpush.msra.mxu0 0.0
        %2903 = vmatpush.msra.mxu0 0.0
        %2904 = vmatpush.msra.mxu0 0.0
        %2905 = vmatpush.msra.mxu0 0.0
        %2906 = vmatpush.msra.mxu0 0.0
        %2907 = vmatpush.msra.mxu0 0.0
        %2908 = vmatpush.msra.mxu0 0.0
        %2909 = vmatpush.msra.mxu0 0.0
        %2910 = vmatpush.msra.mxu0 0.0
        %v2911 = vand.u32 %v2764, 4294901760
        %v2912 = vsub.f32 %v2764, %v2911
        %v2913 = vand.u32 %v2912, 4294901760
        %2914 = vmatpush.msra.mxu0 %v2913
        %v2915 = vand.u32 %v2763, 4294901760
        %v2916 = vsub.f32 %v2763, %v2915
        %v2917 = vand.u32 %v2916, 4294901760
        %2918 = vmatpush.msra.mxu0 %v2917
        %v2919 = vand.u32 %v2762, 4294901760
        %v2920 = vsub.f32 %v2762, %v2919
        %v2921 = vand.u32 %v2920, 4294901760
        %2922 = vmatpush.msra.mxu0 %v2921
        %v2923 = vand.u32 %v2761, 4294901760
        %v2924 = vsub.f32 %v2761, %v2923
        %v2925 = vand.u32 %v2924, 4294901760
        %2926 = vmatpush.msra.mxu0 %v2925
        %v2927 = vand.u32 %v2770, 4294901760
        %2928 = vmatmul.f32.gmra.mxu0 %v2927
        %v2929 = vpop.f32.mrf.mxu0
        %v2930 = vadd.f32 %v2897, %v2929
        %2931 = vdwg.mxu0
        %2932 = vmatpush.msra.mxu0 0.0
        %2933 = vmatpush.msra.mxu0 0.0
        %2934 = vmatpush.msra.mxu0 0.0
        %2935 = vmatpush.msra.mxu0 0.0
        %2936 = vmatpush.msra.mxu0 0.0
        %2937 = vmatpush.msra.mxu0 0.0
        %2938 = vmatpush.msra.mxu0 0.0
        %2939 = vmatpush.msra.mxu0 0.0
        %2940 = vmatpush.msra.mxu0 0.0
        %2941 = vmatpush.msra.mxu0 0.0
        %2942 = vmatpush.msra.mxu0 0.0
        %2943 = vmatpush.msra.mxu0 0.0
        %v2944 = vand.u32 %v2764, 4294901760
        %2945 = vmatpush.msra.mxu0 %v2944
        %v2946 = vand.u32 %v2763, 4294901760
        %2947 = vmatpush.msra.mxu0 %v2946
        %v2948 = vand.u32 %v2762, 4294901760
        %2949 = vmatpush.msra.mxu0 %v2948
        %v2950 = vand.u32 %v2761, 4294901760
        %2951 = vmatpush.msra.mxu0 %v2950
        %v2952 = vand.u32 %v2770, 4294901760
        %2953 = vmatmul.f32.gmra.mxu0 %v2952
        %v2954 = vpop.f32.mrf.mxu0
        %v2955 = vadd.f32 %v2930, %v2954
        %2956 = vdwg.mxu0
        %v2957 = vmul.f32 %v2955, 0.5
        %v2958 = vmul.f32 %v2955, 0.70710677
        %vm2959 = vcmp.ge.f32.partialorder %v2958, 0.0
        %v2960 = vsel %vm2959, 1.0, -1.0
        %v2961 = vand.u32 2147483647, %v2958
        %v2962 = vmul.f32 %v2961, 0.3275911
        %v2963 = vadd.f32 %v2962, 1.0
        %v2964 = vrcp.pop %v2963
        %v2965 = vmul.f32 %v2963, %v2964
        %v2966 = vsub.f32 1.0, %v2965
        %v2967 = vmul.f32 %v2964, %v2966
        %v2968 = vadd.f32 %v2964, %v2967
        %vm2969 = vweird.f32 %v2963
        %vm2970 = vweird.f32 %v2964
        %vm2971 = vmor %vm2969, %vm2970
        %v2972 = vsel %vm2971, %v2964, %v2968
        %v2973 = vand.u32 2147483647, %v2963
        %vm2974 = vcmp.eq.f32.partialorder %v2973, 8.507059e+37
        %v2975 = vand.u32 %v2963, 2147483648
        %v2976 = vor.u32 1.1754944e-38, %v2975
        %v2977 = vsel %vm2974, %v2976, %v2972
        %v2978 = vmul.f32 1.0, %v2977
        %v2979 = vmul.f32 %v2978, 1.0614054
        %v2980 = vadd.f32 %v2979, -1.4531521
        %v2981 = vmul.f32 %v2980, %v2978
        %v2982 = vadd.f32 %v2981, 1.4214138
        %v2983 = vmul.f32 %v2982, %v2978
        %v2984 = vadd.f32 %v2983, -0.28449672
        %v2985 = vmul.f32 %v2984, %v2978
        %v2986 = vadd.f32 %v2985, 0.2548296
        %v2987 = vmul.f32 %v2986, %v2978
        %v2988 = vsub.f32 0.0, %v2961
        %v2989 = vmul.f32 %v2988, %v2961
        %v2990 = vmul.f32 %v2989, 1.442695
        %v2991 = vpow.pop %v2990
        %v2992 = vmul.f32 %v2987, %v2991
        %v2993 = vsub.f32 1.0, %v2992
        %v2994 = vmul.f32 %v2960, %v2993
        %v2995 = vadd.f32 %v2994, 1.0
        %v2996 = vmul.f32 %v2957, %v2995
        %v2997 = vld [vmem:[%s11] sm:$0xff]
        %v2998 = vld [vmem:[%s11 + $0x8] sm:$0xff]
        %v2999 = vld [vmem:[%s11 + $0x10] sm:$0xff]
        %v3000 = vld [vmem:[%s11 + $0x18] sm:$0xff]
        %v3001 = vld [vmem:[%s11 + $0x20] sm:$0xff]
        %v3002 = vld [vmem:[%s11 + $0x28] sm:$0xff]
        %v3003 = vld [vmem:[%s11 + $0x30] sm:$0xff]
        %v3004 = vld [vmem:[%s11 + $0x38] sm:$0xff]
        %v3005 = vld [vmem:[%s11 + $0x40] sm:$0xff]
        %v3006 = vld [vmem:[%s11 + $0x48] sm:$0xff]
        %v3007 = vld [vmem:[%s11 + $0x50] sm:$0xff]
        %v3008 = vld [vmem:[%s11 + $0x58] sm:$0xff]
        %v3009 = vld [vmem:[%s11 + $0x60] sm:$0xff]
        %v3010 = vld [vmem:[%s11 + $0x68] sm:$0xff]
        %v3011 = vld [vmem:[%s11 + $0x70] sm:$0xff]
        %v3012 = vld [vmem:[%s11 + $0x78] sm:$0xff]
        %v3013 = vld [vmem:[%s12] sm:$0x1]
        %v3015 = vperm.slane %v3013, 0
        %v3017 = vand.u32 %v3012, 4294901760
        %3018 = vmatpush.msra.mxu0 %v3017
        %v3019 = vand.u32 %v3011, 4294901760
        %3020 = vmatpush.msra.mxu0 %v3019
        %v3021 = vand.u32 %v3010, 4294901760
        %3022 = vmatpush.msra.mxu0 %v3021
        %v3023 = vand.u32 %v3009, 4294901760
        %3024 = vmatpush.msra.mxu0 %v3023
        %v3025 = vand.u32 %v3008, 4294901760
        %3026 = vmatpush.msra.mxu0 %v3025
        %v3027 = vand.u32 %v3007, 4294901760
        %3028 = vmatpush.msra.mxu0 %v3027
        %v3029 = vand.u32 %v3006, 4294901760
        %3030 = vmatpush.msra.mxu0 %v3029
        %v3031 = vand.u32 %v3005, 4294901760
        %3032 = vmatpush.msra.mxu0 %v3031
        %v3033 = vand.u32 %v3004, 4294901760
        %3034 = vmatpush.msra.mxu0 %v3033
        %v3035 = vand.u32 %v3003, 4294901760
        %3036 = vmatpush.msra.mxu0 %v3035
        %v3037 = vand.u32 %v3002, 4294901760
        %3038 = vmatpush.msra.mxu0 %v3037
        %v3039 = vand.u32 %v3001, 4294901760
        %3040 = vmatpush.msra.mxu0 %v3039
        %v3041 = vand.u32 %v3000, 4294901760
        %3042 = vmatpush.msra.mxu0 %v3041
        %v3043 = vand.u32 %v2999, 4294901760
        %3044 = vmatpush.msra.mxu0 %v3043
        %v3045 = vand.u32 %v2998, 4294901760
        %3046 = vmatpush.msra.mxu0 %v3045
        %v3047 = vand.u32 %v2997, 4294901760
        %3048 = vmatpush.msra.mxu0 %v3047
        %v3049 = vand.u32 %v2996, 4294901760
        %v3050 = vsub.f32 %v2996, %v3049
        %v3051 = vand.u32 %v3050, 4294901760
        %v3052 = vsub.f32 %v3050, %v3051
        %v3053 = vand.u32 %v3052, 4294901760
        %3054 = vmatmul.f32.gmra.mxu0 %v3053
        %v3055 = vpop.f32.mrf.mxu0
        %v3056 = vadd.f32 %v3015, %v3055
        %3057 = vdwg.mxu0
        %v3058 = vand.u32 %v3012, 4294901760
        %v3059 = vsub.f32 %v3012, %v3058
        %v3060 = vand.u32 %v3059, 4294901760
        %v3061 = vsub.f32 %v3059, %v3060
        %v3062 = vand.u32 %v3061, 4294901760
        %3063 = vmatpush.msra.mxu0 %v3062
        %v3064 = vand.u32 %v3011, 4294901760
        %v3065 = vsub.f32 %v3011, %v3064
        %v3066 = vand.u32 %v3065, 4294901760
        %v3067 = vsub.f32 %v3065, %v3066
        %v3068 = vand.u32 %v3067, 4294901760
        %3069 = vmatpush.msra.mxu0 %v3068
        %v3070 = vand.u32 %v3010, 4294901760
        %v3071 = vsub.f32 %v3010, %v3070
        %v3072 = vand.u32 %v3071, 4294901760
        %v3073 = vsub.f32 %v3071, %v3072
        %v3074 = vand.u32 %v3073, 4294901760
        %3075 = vmatpush.msra.mxu0 %v3074
        %v3076 = vand.u32 %v3009, 4294901760
        %v3077 = vsub.f32 %v3009, %v3076
        %v3078 = vand.u32 %v3077, 4294901760
        %v3079 = vsub.f32 %v3077, %v3078
        %v3080 = vand.u32 %v3079, 4294901760
        %3081 = vmatpush.msra.mxu0 %v3080
        %v3082 = vand.u32 %v3008, 4294901760
        %v3083 = vsub.f32 %v3008, %v3082
        %v3084 = vand.u32 %v3083, 4294901760
        %v3085 = vsub.f32 %v3083, %v3084
        %v3086 = vand.u32 %v3085, 4294901760
        %3087 = vmatpush.msra.mxu0 %v3086
        %v3088 = vand.u32 %v3007, 4294901760
        %v3089 = vsub.f32 %v3007, %v3088
        %v3090 = vand.u32 %v3089, 4294901760
        %v3091 = vsub.f32 %v3089, %v3090
        %v3092 = vand.u32 %v3091, 4294901760
        %3093 = vmatpush.msra.mxu0 %v3092
        %v3094 = vand.u32 %v3006, 4294901760
        %v3095 = vsub.f32 %v3006, %v3094
        %v3096 = vand.u32 %v3095, 4294901760
        %v3097 = vsub.f32 %v3095, %v3096
        %v3098 = vand.u32 %v3097, 4294901760
        %3099 = vmatpush.msra.mxu0 %v3098
        %v3100 = vand.u32 %v3005, 4294901760
        %v3101 = vsub.f32 %v3005, %v3100
        %v3102 = vand.u32 %v3101, 4294901760
        %v3103 = vsub.f32 %v3101, %v3102
        %v3104 = vand.u32 %v3103, 4294901760
        %3105 = vmatpush.msra.mxu0 %v3104
        %v3106 = vand.u32 %v3004, 4294901760
        %v3107 = vsub.f32 %v3004, %v3106
        %v3108 = vand.u32 %v3107, 4294901760
        %v3109 = vsub.f32 %v3107, %v3108
        %v3110 = vand.u32 %v3109, 4294901760
        %3111 = vmatpush.msra.mxu0 %v3110
        %v3112 = vand.u32 %v3003, 4294901760
        %v3113 = vsub.f32 %v3003, %v3112
        %v3114 = vand.u32 %v3113, 4294901760
        %v3115 = vsub.f32 %v3113, %v3114
        %v3116 = vand.u32 %v3115, 4294901760
        %3117 = vmatpush.msra.mxu0 %v3116
        %v3118 = vand.u32 %v3002, 4294901760
        %v3119 = vsub.f32 %v3002, %v3118
        %v3120 = vand.u32 %v3119, 4294901760
        %v3121 = vsub.f32 %v3119, %v3120
        %v3122 = vand.u32 %v3121, 4294901760
        %3123 = vmatpush.msra.mxu0 %v3122
        %v3124 = vand.u32 %v3001, 4294901760
        %v3125 = vsub.f32 %v3001, %v3124
        %v3126 = vand.u32 %v3125, 4294901760
        %v3127 = vsub.f32 %v3125, %v3126
        %v3128 = vand.u32 %v3127, 4294901760
        %3129 = vmatpush.msra.mxu0 %v3128
        %v3130 = vand.u32 %v3000, 4294901760
        %v3131 = vsub.f32 %v3000, %v3130
        %v3132 = vand.u32 %v3131, 4294901760
        %v3133 = vsub.f32 %v3131, %v3132
        %v3134 = vand.u32 %v3133, 4294901760
        %3135 = vmatpush.msra.mxu0 %v3134
        %v3136 = vand.u32 %v2999, 4294901760
        %v3137 = vsub.f32 %v2999, %v3136
        %v3138 = vand.u32 %v3137, 4294901760
        %v3139 = vsub.f32 %v3137, %v3138
        %v3140 = vand.u32 %v3139, 4294901760
        %3141 = vmatpush.msra.mxu0 %v3140
        %v3142 = vand.u32 %v2998, 4294901760
        %v3143 = vsub.f32 %v2998, %v3142
        %v3144 = vand.u32 %v3143, 4294901760
        %v3145 = vsub.f32 %v3143, %v3144
        %v3146 = vand.u32 %v3145, 4294901760
        %3147 = vmatpush.msra.mxu0 %v3146
        %v3148 = vand.u32 %v2997, 4294901760
        %v3149 = vsub.f32 %v2997, %v3148
        %v3150 = vand.u32 %v3149, 4294901760
        %v3151 = vsub.f32 %v3149, %v3150
        %v3152 = vand.u32 %v3151, 4294901760
        %3153 = vmatpush.msra.mxu0 %v3152
        %v3154 = vand.u32 %v2996, 4294901760
        %3155 = vmatmul.f32.gmra.mxu0 %v3154
        %v3156 = vpop.f32.mrf.mxu0
        %v3157 = vadd.f32 %v3056, %v3156
        %3158 = vdwg.mxu0
        %v3159 = vand.u32 %v3012, 4294901760
        %v3160 = vsub.f32 %v3012, %v3159
        %3161 = vmatpush.msra.mxu0 %v3160
        %v3162 = vand.u32 %v3011, 4294901760
        %v3163 = vsub.f32 %v3011, %v3162
        %3164 = vmatpush.msra.mxu0 %v3163
        %v3165 = vand.u32 %v3010, 4294901760
        %v3166 = vsub.f32 %v3010, %v3165
        %3167 = vmatpush.msra.mxu0 %v3166
        %v3168 = vand.u32 %v3009, 4294901760
        %v3169 = vsub.f32 %v3009, %v3168
        %3170 = vmatpush.msra.mxu0 %v3169
        %v3171 = vand.u32 %v3008, 4294901760
        %v3172 = vsub.f32 %v3008, %v3171
        %3173 = vmatpush.msra.mxu0 %v3172
        %v3174 = vand.u32 %v3007, 4294901760
        %v3175 = vsub.f32 %v3007, %v3174
        %3176 = vmatpush.msra.mxu0 %v3175
        %v3177 = vand.u32 %v3006, 4294901760
        %v3178 = vsub.f32 %v3006, %v3177
        %3179 = vmatpush.msra.mxu0 %v3178
        %v3180 = vand.u32 %v3005, 4294901760
        %v3181 = vsub.f32 %v3005, %v3180
        %3182 = vmatpush.msra.mxu0 %v3181
        %v3183 = vand.u32 %v3004, 4294901760
        %v3184 = vsub.f32 %v3004, %v3183
        %3185 = vmatpush.msra.mxu0 %v3184
        %v3186 = vand.u32 %v3003, 4294901760
        %v3187 = vsub.f32 %v3003, %v3186
        %3188 = vmatpush.msra.mxu0 %v3187
        %v3189 = vand.u32 %v3002, 4294901760
        %v3190 = vsub.f32 %v3002, %v3189
        %3191 = vmatpush.msra.mxu0 %v3190
        %v3192 = vand.u32 %v3001, 4294901760
        %v3193 = vsub.f32 %v3001, %v3192
        %3194 = vmatpush.msra.mxu0 %v3193
        %v3195 = vand.u32 %v3000, 4294901760
        %v3196 = vsub.f32 %v3000, %v3195
        %3197 = vmatpush.msra.mxu0 %v3196
        %v3198 = vand.u32 %v2999, 4294901760
        %v3199 = vsub.f32 %v2999, %v3198
        %3200 = vmatpush.msra.mxu0 %v3199
        %v3201 = vand.u32 %v2998, 4294901760
        %v3202 = vsub.f32 %v2998, %v3201
        %3203 = vmatpush.msra.mxu0 %v3202
        %v3204 = vand.u32 %v2997, 4294901760
        %v3205 = vsub.f32 %v2997, %v3204
        %3206 = vmatpush.msra.mxu0 %v3205
        %v3207 = vand.u32 %v2996, 4294901760
        %v3208 = vsub.f32 %v2996, %v3207
        %3209 = vmatmul.f32.gmra.mxu0 %v3208
        %v3210 = vpop.f32.mrf.mxu0
        %v3211 = vadd.f32 %v3157, %v3210
        %3212 = vdwg.mxu0
        %v3213 = vand.u32 %v3012, 4294901760
        %3214 = vmatpush.msra.mxu0 %v3213
        %v3215 = vand.u32 %v3011, 4294901760
        %3216 = vmatpush.msra.mxu0 %v3215
        %v3217 = vand.u32 %v3010, 4294901760
        %3218 = vmatpush.msra.mxu0 %v3217
        %v3219 = vand.u32 %v3009, 4294901760
        %3220 = vmatpush.msra.mxu0 %v3219
        %v3221 = vand.u32 %v3008, 4294901760
        %3222 = vmatpush.msra.mxu0 %v3221
        %v3223 = vand.u32 %v3007, 4294901760
        %3224 = vmatpush.msra.mxu0 %v3223
        %v3225 = vand.u32 %v3006, 4294901760
        %3226 = vmatpush.msra.mxu0 %v3225
        %v3227 = vand.u32 %v3005, 4294901760
        %3228 = vmatpush.msra.mxu0 %v3227
        %v3229 = vand.u32 %v3004, 4294901760
        %3230 = vmatpush.msra.mxu0 %v3229
        %v3231 = vand.u32 %v3003, 4294901760
        %3232 = vmatpush.msra.mxu0 %v3231
        %v3233 = vand.u32 %v3002, 4294901760
        %3234 = vmatpush.msra.mxu0 %v3233
        %v3235 = vand.u32 %v3001, 4294901760
        %3236 = vmatpush.msra.mxu0 %v3235
        %v3237 = vand.u32 %v3000, 4294901760
        %3238 = vmatpush.msra.mxu0 %v3237
        %v3239 = vand.u32 %v2999, 4294901760
        %3240 = vmatpush.msra.mxu0 %v3239
        %v3241 = vand.u32 %v2998, 4294901760
        %3242 = vmatpush.msra.mxu0 %v3241
        %v3243 = vand.u32 %v2997, 4294901760
        %3244 = vmatpush.msra.mxu0 %v3243
        %v3245 = vand.u32 %v2996, 4294901760
        %v3246 = vsub.f32 %v2996, %v3245
        %v3247 = vand.u32 %v3246, 4294901760
        %3248 = vmatmul.f32.gmra.mxu0 %v3247
        %v3249 = vpop.f32.mrf.mxu0
        %v3250 = vadd.f32 %v3211, %v3249
        %3251 = vdwg.mxu0
        %v3252 = vand.u32 %v3012, 4294901760
        %v3253 = vsub.f32 %v3012, %v3252
        %v3254 = vand.u32 %v3253, 4294901760
        %3255 = vmatpush.msra.mxu0 %v3254
        %v3256 = vand.u32 %v3011, 4294901760
        %v3257 = vsub.f32 %v3011, %v3256
        %v3258 = vand.u32 %v3257, 4294901760
        %3259 = vmatpush.msra.mxu0 %v3258
        %v3260 = vand.u32 %v3010, 4294901760
        %v3261 = vsub.f32 %v3010, %v3260
        %v3262 = vand.u32 %v3261, 4294901760
        %3263 = vmatpush.msra.mxu0 %v3262
        %v3264 = vand.u32 %v3009, 4294901760
        %v3265 = vsub.f32 %v3009, %v3264
        %v3266 = vand.u32 %v3265, 4294901760
        %3267 = vmatpush.msra.mxu0 %v3266
        %v3268 = vand.u32 %v3008, 4294901760
        %v3269 = vsub.f32 %v3008, %v3268
        %v3270 = vand.u32 %v3269, 4294901760
        %3271 = vmatpush.msra.mxu0 %v3270
        %v3272 = vand.u32 %v3007, 4294901760
        %v3273 = vsub.f32 %v3007, %v3272
        %v3274 = vand.u32 %v3273, 4294901760
        %3275 = vmatpush.msra.mxu0 %v3274
        %v3276 = vand.u32 %v3006, 4294901760
        %v3277 = vsub.f32 %v3006, %v3276
        %v3278 = vand.u32 %v3277, 4294901760
        %3279 = vmatpush.msra.mxu0 %v3278
        %v3280 = vand.u32 %v3005, 4294901760
        %v3281 = vsub.f32 %v3005, %v3280
        %v3282 = vand.u32 %v3281, 4294901760
        %3283 = vmatpush.msra.mxu0 %v3282
        %v3284 = vand.u32 %v3004, 4294901760
        %v3285 = vsub.f32 %v3004, %v3284
        %v3286 = vand.u32 %v3285, 4294901760
        %3287 = vmatpush.msra.mxu0 %v3286
        %v3288 = vand.u32 %v3003, 4294901760
        %v3289 = vsub.f32 %v3003, %v3288
        %v3290 = vand.u32 %v3289, 4294901760
        %3291 = vmatpush.msra.mxu0 %v3290
        %v3292 = vand.u32 %v3002, 4294901760
        %v3293 = vsub.f32 %v3002, %v3292
        %v3294 = vand.u32 %v3293, 4294901760
        %3295 = vmatpush.msra.mxu0 %v3294
        %v3296 = vand.u32 %v3001, 4294901760
        %v3297 = vsub.f32 %v3001, %v3296
        %v3298 = vand.u32 %v3297, 4294901760
        %3299 = vmatpush.msra.mxu0 %v3298
        %v3300 = vand.u32 %v3000, 4294901760
        %v3301 = vsub.f32 %v3000, %v3300
        %v3302 = vand.u32 %v3301, 4294901760
        %3303 = vmatpush.msra.mxu0 %v3302
        %v3304 = vand.u32 %v2999, 4294901760
        %v3305 = vsub.f32 %v2999, %v3304
        %v3306 = vand.u32 %v3305, 4294901760
        %3307 = vmatpush.msra.mxu0 %v3306
        %v3308 = vand.u32 %v2998, 4294901760
        %v3309 = vsub.f32 %v2998, %v3308
        %v3310 = vand.u32 %v3309, 4294901760
        %3311 = vmatpush.msra.mxu0 %v3310
        %v3312 = vand.u32 %v2997, 4294901760
        %v3313 = vsub.f32 %v2997, %v3312
        %v3314 = vand.u32 %v3313, 4294901760
        %3315 = vmatpush.msra.mxu0 %v3314
        %v3316 = vand.u32 %v2996, 4294901760
        %3317 = vmatmul.f32.gmra.mxu0 %v3316
        %v3318 = vpop.f32.mrf.mxu0
        %v3319 = vadd.f32 %v3250, %v3318
        %3320 = vdwg.mxu0
        %v3321 = vand.u32 %v3012, 4294901760
        %3322 = vmatpush.msra.mxu0 %v3321
        %v3323 = vand.u32 %v3011, 4294901760
        %3324 = vmatpush.msra.mxu0 %v3323
        %v3325 = vand.u32 %v3010, 4294901760
        %3326 = vmatpush.msra.mxu0 %v3325
        %v3327 = vand.u32 %v3009, 4294901760
        %3328 = vmatpush.msra.mxu0 %v3327
        %v3329 = vand.u32 %v3008, 4294901760
        %3330 = vmatpush.msra.mxu0 %v3329
        %v3331 = vand.u32 %v3007, 4294901760
        %3332 = vmatpush.msra.mxu0 %v3331
        %v3333 = vand.u32 %v3006, 4294901760
        %3334 = vmatpush.msra.mxu0 %v3333
        %v3335 = vand.u32 %v3005, 4294901760
        %3336 = vmatpush.msra.mxu0 %v3335
        %v3337 = vand.u32 %v3004, 4294901760
        %3338 = vmatpush.msra.mxu0 %v3337
        %v3339 = vand.u32 %v3003, 4294901760
        %3340 = vmatpush.msra.mxu0 %v3339
        %v3341 = vand.u32 %v3002, 4294901760
        %3342 = vmatpush.msra.mxu0 %v3341
        %v3343 = vand.u32 %v3001, 4294901760
        %3344 = vmatpush.msra.mxu0 %v3343
        %v3345 = vand.u32 %v3000, 4294901760
        %3346 = vmatpush.msra.mxu0 %v3345
        %v3347 = vand.u32 %v2999, 4294901760
        %3348 = vmatpush.msra.mxu0 %v3347
        %v3349 = vand.u32 %v2998, 4294901760
        %3350 = vmatpush.msra.mxu0 %v3349
        %v3351 = vand.u32 %v2997, 4294901760
        %3352 = vmatpush.msra.mxu0 %v3351
        %v3353 = vand.u32 %v2996, 4294901760
        %3354 = vmatmul.f32.gmra.mxu0 %v3353
        %v3355 = vpop.f32.mrf.mxu0
        %v3356 = vadd.f32 %v3319, %v3355
        %3357 = vdwg.mxu0
        %v3358 = vadd.f32 %v2760, %v3356
        %v3359 = vld [vmem:[%s13] sm:$0x1]
        %v3360 = vld [vmem:[%s14] sm:$0x1]
        %v3361 = vsel %vm962, %v3358, 0.0
        %3362 = vadd.xlane.f32.xlu0 %v3361
        %v3363 = vpop.xlane.xlu0 %3362
        %v3364 = vmul.f32 %v3363, %v2733
        %v3365 = vsub.f32 %v3358, %v3364
        %v3366 = vmul.f32 %v3365, %v3365
        %v3367 = vsel %vm962, %v3366, 0.0
        %3368 = vadd.xlane.f32.xlu0 %v3367
        %v3369 = vpop.xlane.xlu0 %3368
        %v3370 = vmul.f32 %v3369, %v2733
        %v3371 = vadd.f32 %v3370, 1e-05
        %v3372 = vrsqrt.pop %v3371
        %v3373 = vmul.f32 %v3372, %v3371
        %v3374 = vmul.f32 %v3373, %v3372
        %v3375 = vmul.f32 0.5, %v3374
        %v3376 = vsub.f32 1.5, %v3375
        %v3377 = vmul.f32 %v3372, %v3376
        %vm3378 = vweird.f32 %v3371
        %vm3379 = vweird.f32 %v3372
        %vm3380 = vmor %vm3378, %vm3379
        %v3381 = vsel %vm3380, %v3372, %v3377
        %v3382 = vmul.f32 %v3365, %v3381
        %v3384 = vperm.slane %v3359, 0
        %v3386 = vmul.f32 %v3382, %v3384
        %v3388 = vperm.slane %v3360, 0
        %v3390 = vadd.f32 %v3386, %v3388
        %3391 = vst.msk [vmem:[%s567] sm:$0xff] %vm962, %v3390
        %s3392 = sand.u32 %s384, 1
        %s3393 = scalar_lea.sflag [#allocation8], %s3392
        %s3394 = sand.u32 %s384, 1
        %s3395 = smul.addr %s3394, 8
        %s3396 = scalar_lea.vmem [#allocation11], %s3395
        // Predicated region
        $region93: #{tpu_custom_call.1} parent=79 // pred_check
          %p3397 = pneg %p394
        $region94: #{tpu_custom_call.1} parent=79 // pred_check_branch
          %3399 = sbr.rel (%p3397) target = $region96
        $region95: #{tpu_custom_call.1} parent=79 // pred_region
          %3401 = vsyncadd %s3393, 0
          %s3402 = sadd.s32 %s40, %s39
          %s3403 = smul.addr %s3402, 8
          %s3404 = scalar_lea.hbm %s15, %s3403
          %s3406 = sshll.u32 %s3396, 4
          %s3407 = int_to_ptr.vmem [resolvable:$true] %s3406
          %s3408 = sshll.u32 %s3404, 4
          %s3409 = int_to_ptr.hbm [resolvable:$true] %s3408
          %3411 = dma.vmem_to_hbm [thread:$0]  %s3407, 128, %s3409, %s3393
        $region96: #{tpu_custom_call.1} parent=79 // pred_fallthru
          _
      $region80: #{tpu_custom_call.1} parent=5 // pred_fallthru
        _
      %p3412 = scmp.le.s32.totalorder 2, %s30
      // Predicated region
      $region97: #{tpu_custom_call.1} parent=5 // pred_check
        %p3413 = pneg %p3412
      $region98: #{tpu_custom_call.1} parent=5 // pred_check_branch
        %3415 = sbr.rel (%p3413) target = $region100
      $region99: #{tpu_custom_call.1} parent=5 // pred_region
        %s3416 = ssub.s32 %s30, 2
        // Predicated region
        $region101: #{tpu_custom_call.1} parent=99 // pred_check
          %p3417 = pneg %p400
        $region102: #{tpu_custom_call.1} parent=99 // pred_check_branch
          %3419 = sbr.rel (%p3417) target = $region104
        $region103: #{tpu_custom_call.1} parent=99 // pred_region
          %s3420 = sand.u32 %s385, 1
          %s3421 = scalar_lea.sflag [#allocation8], %s3420
          %s3422 = sand.u32 %s385, 1
          %s3423 = smul.addr %s3422, 8
          %s3424 = scalar_lea.vmem [#allocation11], %s3423
          %3426 = dma.done %s3421, 128
        $region104: #{tpu_custom_call.1} parent=99 // pred_fallthru
          _
      $region100: #{tpu_custom_call.1} parent=5 // pred_fallthru
        _
    $region6: #{tpu_custom_call.1} parent=1 // loop_footer
      %s34 = sadd.s32 1, %s30
    $region7: #{tpu_custom_call.1} parent=1 // loop_footer_branch
      %29 = sbr.rel target = $region3
    $region8: #{tpu_custom_call.1} parent=1 // loop_exit
      _
    %3427 = vsyncpa [#allocation7], 1
    %s3428 = scalar_lea.sflag [#allocation7], 1
    %3429 = vsyncpa %s3428, 1
    %3430 = vsyncpa [#allocation10], 1
    %s3431 = scalar_lea.sflag [#allocation10], 1
    %3432 = vsyncpa %s3431, 1
    %3433 = vsyncpa [#allocation8], 1
    %s3434 = scalar_lea.sflag [#allocation8], 1
    %3435 = vsyncpa %s3434, 1

</llo_original>
